<compile_context>
chip_gen: v5e
topology: v5e:2x2
jax: 0.10.0
libtpu: 0.0.40
codegen_flags: <defaults>
</compile_context>

<pallas_src>
import functools

import jax
import jax.numpy as jnp
from jax.experimental import pallas as pl
from jax.experimental.pallas import tpu as pltpu

LANE = 128
FUSED_VMEM_BUDGET = 20 * 1024 * 1024   # bytes; when exceeded -> tiled path
RESIDENT_Z_BUDGET = 8 * 1024 * 1024    # bytes (double-buffered) for resident Z
VMEM_LIMIT = 32 * 1024 * 1024          # safe on v5e/v6e/v7x


def _round_up(x, m):
    return ((x + m - 1) // m) * m


def _pad2(x, rows, cols):
    r, c = x.shape
    return jnp.pad(x, ((0, rows - r), (0, cols - c)))


def _pick_tiles(n_pad):
    """Tile sizes for the tiled path. n_pad is a multiple of 256."""
    # tm: keep >= 2 row tiles so the "parallel" axis splits across v7x's 2 TCs.
    if n_pad % 512 == 0 and n_pad // 512 >= 2:
        tm = 512
    else:
        tm = min(256, n_pad)
    # tk: multiple of 256 (fills the 256-deep MXU on v6e/v7x), as large as divides.
    tk = next(t for t in (1024, 512, 256) if t <= n_pad and n_pad % t == 0)
    return tm, tk


# ---------------------------------------------------------------------------
# Fused single-call kernel (whole problem resident in VMEM).
# ---------------------------------------------------------------------------
def gcn_fused_kernel(a_ref, x_ref, w1_ref, b1_ref, w2_ref, b2_ref, o_ref, *,
                     valid_cols):
    a = a_ref[...]
    # layer 1: relu(A @ (X @ W1) + b1)        (bf16 operands, f32 accumulation)
    xw1 = jnp.dot(x_ref[...], w1_ref[...], preferred_element_type=jnp.float32)
    h1 = jnp.dot(a, xw1.astype(a.dtype), preferred_element_type=jnp.float32)
    h1 = jnp.maximum(h1 + b1_ref[...], 0.0)
    # layer 2: relu(A @ (h1 @ W2) + b2)
    z2 = jnp.dot(h1.astype(w2_ref.dtype), w2_ref[...],
                 preferred_element_type=jnp.float32)
    h2 = jnp.dot(a, z2.astype(a.dtype), preferred_element_type=jnp.float32)
    h2 = jnp.maximum(h2 + b2_ref[...], 0.0)
    # masked log_softmax over the (lane) feature axis.
    lane = jax.lax.broadcasted_iota(jnp.int32, h2.shape, 1)
    mask = lane < valid_cols
    hm = jnp.where(mask, h2, -jnp.inf)
    m = jnp.max(hm, axis=1, keepdims=True)
    zc = hm - m
    lse = jnp.log(jnp.sum(jnp.where(mask, jnp.exp(zc), 0.0),
                          axis=1, keepdims=True))
    o_ref[...] = jnp.where(mask, zc - lse, 0.0).astype(o_ref.dtype)


def _gcn_fused(a, x, w1, b1, w2, b2, *, valid_cols):
    n_pad = a.shape[0]
    f_pad = x.shape[1]
    h1_pad = w1.shape[1]
    h2_pad = w2.shape[1]

    cost = pl.CostEstimate(
        flops=int(2 * n_pad * f_pad * h1_pad + 2 * n_pad * n_pad * h1_pad
                  + 2 * n_pad * h1_pad * h2_pad + 2 * n_pad * n_pad * h2_pad),
        transcendentals=int(n_pad * h2_pad),
        bytes_accessed=int(n_pad * n_pad * 2 + n_pad * f_pad * 2
                           + f_pad * h1_pad * 2 + h1_pad * h2_pad * 2
                           + (h1_pad + h2_pad) * 4 + n_pad * h2_pad * 4))

    return pl.pallas_call(
        functools.partial(gcn_fused_kernel, valid_cols=valid_cols),
        out_shape=jax.ShapeDtypeStruct((n_pad, h2_pad), jnp.float32),
        grid_spec=pltpu.PrefetchScalarGridSpec(
            num_scalar_prefetch=0,
            grid=(1,),
            in_specs=[
                pl.BlockSpec((n_pad, n_pad), lambda i: (0, 0)),
                pl.BlockSpec((n_pad, f_pad), lambda i: (0, 0)),
                pl.BlockSpec((f_pad, h1_pad), lambda i: (0, 0)),
                pl.BlockSpec((1, h1_pad), lambda i: (0, 0)),
                pl.BlockSpec((h1_pad, h2_pad), lambda i: (0, 0)),
                pl.BlockSpec((1, h2_pad), lambda i: (0, 0)),
            ],
            out_specs=pl.BlockSpec((n_pad, h2_pad), lambda i: (0, 0)),
        ),
        compiler_params=pltpu.CompilerParams(
            dimension_semantics=("arbitrary",),
            vmem_limit_bytes=VMEM_LIMIT),
        cost_estimate=cost,
    )(a, x, w1, b1, w2, b2)


# ---------------------------------------------------------------------------
# Tiled layer kernel: acc += A_tile @ Z_tile, finalize with bias/relu,
# optional fused @W_next, optional masked log_softmax.
# ---------------------------------------------------------------------------
def gcn_layer_kernel(*refs, tk, z_resident, has_wnext, valid_cols,
                     apply_log_softmax):
    if has_wnext:
        a_ref, z_ref, wnext_ref, b_ref, o_ref, acc_ref = refs
    else:
        a_ref, z_ref, b_ref, o_ref, acc_ref = refs
        wnext_ref = None

    k = pl.program_id(1)

    @pl.when(k == 0)
    def _():
        acc_ref[...] = jnp.zeros_like(acc_ref)

    if z_resident:
        start = pl.multiple_of(k * tk, tk)
        z_tile = z_ref[pl.ds(start, tk), :]
    else:
        z_tile = z_ref[...]

    acc_ref[...] += jnp.dot(a_ref[...], z_tile,
                            preferred_element_type=jnp.float32)

    @pl.when(k == pl.num_programs(1) - 1)
    def _():
        # TODO(synk): F.dropout is identity in eval mode; intentionally omitted.
        h = jnp.maximum(acc_ref[...] + b_ref[...], 0.0)
        if has_wnext:
            # fuse the NEXT layer's X@W so layer 2 only needs A@Z2.
            h = jnp.dot(h.astype(wnext_ref.dtype), wnext_ref[...],
                        preferred_element_type=jnp.float32)
        if apply_log_softmax:
            lane = jax.lax.broadcasted_iota(jnp.int32, h.shape, 1)
            mask = lane < valid_cols
            hm = jnp.where(mask, h, -jnp.inf)
            m = jnp.max(hm, axis=1, keepdims=True)
            zc = hm - m
            lse = jnp.log(jnp.sum(jnp.where(mask, jnp.exp(zc), 0.0),
                                  axis=1, keepdims=True))
            h = jnp.where(mask, zc - lse, 0.0)
        o_ref[...] = h.astype(o_ref.dtype)


def _gcn_layer_tiled(a, z, wnext, b, *, valid_cols, apply_log_softmax,
                     out_dtype, tm, tk):
    n_pad = a.shape[0]
    d_in = z.shape[1]
    has_wnext = wnext is not None
    d_out = wnext.shape[1] if has_wnext else d_in
    grid = (n_pad // tm, n_pad // tk)

    # Hold Z fully resident (fetched once) when it fits; otherwise stream k-tiles.
    z_resident = (2 * n_pad * d_in * z.dtype.itemsize) <= RESIDENT_Z_BUDGET

    in_specs = [pl.BlockSpec((tm, tk), lambda i, k: (i, k))]          # A tile
    args = [a]
    if z_resident:
        in_specs.append(pl.BlockSpec((n_pad, d_in), lambda i, k: (0, 0)))
    else:
        in_specs.append(pl.BlockSpec((tk, d_in), lambda i, k: (k, 0)))
    args.append(z)
    if has_wnext:
        in_specs.append(pl.BlockSpec((d_in, d_out), lambda i, k: (0, 0)))
        args.append(wnext)
    in_specs.append(pl.BlockSpec((1, d_in), lambda i, k: (0, 0)))
    args.append(b)

    kernel = functools.partial(
        gcn_layer_kernel, tk=tk, z_resident=z_resident, has_wnext=has_wnext,
        valid_cols=valid_cols, apply_log_softmax=apply_log_softmax)

    z_reads = 1 if z_resident else (n_pad // tm)
    out_bytes = n_pad * d_out * jnp.dtype(out_dtype).itemsize
    cost = pl.CostEstimate(
        flops=int(2 * n_pad * n_pad * d_in
                  + (2 * n_pad * d_in * d_out if has_wnext else 0)),
        transcendentals=int(n_pad * d_out if apply_log_softmax else 0),
        bytes_accessed=int(n_pad * n_pad * a.dtype.itemsize
                           + z_reads * n_pad * d_in * z.dtype.itemsize
                           + (d_in * d_out * 2 if has_wnext else 0)
                           + d_in * 4 + out_bytes))

    return pl.pallas_call(
        kernel,
        out_shape=jax.ShapeDtypeStruct((n_pad, d_out), out_dtype),
        grid_spec=pltpu.PrefetchScalarGridSpec(
            num_scalar_prefetch=0,
            grid=grid,
            in_specs=in_specs,
            out_specs=pl.BlockSpec((tm, d_out), lambda i, k: (i, 0)),
            scratch_shapes=[pltpu.VMEM((tm, d_in), jnp.float32)],
        ),
        compiler_params=pltpu.CompilerParams(
            dimension_semantics=("parallel", "arbitrary"),
            vmem_limit_bytes=VMEM_LIMIT),
        cost_estimate=cost,
    )(*args)


# ---------------------------------------------------------------------------
# Glue + full forward.
# ---------------------------------------------------------------------------
def build_normalized_adjacency(edge_index, num_nodes, n_pad, dtype=jnp.bfloat16):
    """Dense D^-1/2 (A + I) D^-1/2 built DIRECTLY at padded shape & target dtype.

    Duplicate edges are summed (PyG gcn_norm semantics) and weight-1 self loops
    are added only where none exist (add_remaining_self_loops). Padded
    rows/cols stay exactly zero (degree 0 -> d_inv_sqrt 0).
    """
    src, dst = edge_index[0], edge_index[1]
    a = jnp.zeros((n_pad, n_pad), jnp.float32).at[dst, src].add(1.0)
    idx = jnp.arange(num_nodes)
    diag = jnp.diagonal(a)[:num_nodes]
    a = a.at[idx, idx].add(jnp.where(diag == 0.0, 1.0, 0.0))
    deg = jnp.sum(a, axis=1)
    d_inv_sqrt = jnp.where(deg > 0.0, jax.lax.rsqrt(deg), 0.0)
    a = a * d_inv_sqrt[:, None] * d_inv_sqrt[None, :]
    return a.astype(dtype)


def gcn_net_forward(x_ids, edge_index, edge_attr, embed_weight, w1, b1, w2, b2,
                    *, force_tiled=False):
    """relu(gcn1) -> relu(gcn2) -> log_softmax(dim=1). edge_attr is unused
    (the reference module never forwards it into GCNConv)."""
    del edge_attr
    x_feat = embed_weight[x_ids]            # embedding gather (plain-JAX glue)
    n, f = x_feat.shape
    h1 = w1.shape[1]
    h2 = w2.shape[1]
    f_pad = _round_up(f, LANE)
    h1_pad = _round_up(h1, LANE)
    h2_pad = _round_up(h2, LANE)

    # --- fused single-kernel path for graphs whose padded A fits in VMEM ---
    n_pad_f = _round_up(n, LANE)
    fused_bytes = (2 * n_pad_f * n_pad_f * 2        # A (double-buffered) bf16
                   + 2 * n_pad_f * f_pad * 2        # X
                   + 2 * n_pad_f * h2_pad * 4       # output
                   + n_pad_f * (f_pad + 2 * h1_pad + 2 * h2_pad) * 4)  # temps
    if not force_tiled and fused_bytes <= FUSED_VMEM_BUDGET:
        a = build_normalized_adjacency(edge_index, n, n_pad_f, jnp.bfloat16)
        x_p = _pad2(x_feat, n_pad_f, f_pad).astype(jnp.bfloat16)
        w1_p = _pad2(w1, f_pad, h1_pad).astype(jnp.bfloat16)
        b1_p = _pad2(b1, 1, h1_pad).astype(jnp.float32)
        w2_p = _pad2(w2, h1_pad, h2_pad).astype(jnp.bfloat16)
        b2_p = _pad2(b2, 1, h2_pad).astype(jnp.float32)
        out = _gcn_fused(a, x_p, w1_p, b1_p, w2_p, b2_p, valid_cols=h2)
        return out[:n, :h2]

    # --- tiled two-call path for large graphs ---
    n_pad = _round_up(n, 256)
    tm, tk = _pick_tiles(n_pad)
    a = build_normalized_adjacency(edge_index, n, n_pad, jnp.bfloat16)

    # Tiny XW1 precompute in f32 (keeps the A@Z accumulation a single f32 chain).
    xw1 = x_feat.astype(jnp.float32) @ w1.astype(jnp.float32)        # [n, h1]
    z1 = _pad2(xw1, n_pad, h1_pad).astype(jnp.bfloat16)
    w2_p = _pad2(w2, h1_pad, h2_pad).astype(jnp.bfloat16)
    b1_p = _pad2(b1, 1, h1_pad).astype(jnp.float32)
    b2_p = _pad2(b2, 1, h2_pad).astype(jnp.float32)

    # Layer 1 (+ fused @W2 at finalize) -> Z2 = relu(A@XW1+b1) @ W2
    z2 = _gcn_layer_tiled(a, z1, w2_p, b1_p, valid_cols=h1,
                          apply_log_softmax=False, out_dtype=jnp.bfloat16,
                          tm=tm, tk=tk)
    # Layer 2: relu(A@Z2 + b2) + masked log_softmax
    out = _gcn_layer_tiled(a, z2, None, b2_p, valid_cols=h2,
                           apply_log_softmax=True, out_dtype=jnp.float32,
                           tm=tm, tk=tk)
    return out[:n, :h2]


def glorot_uniform(key, in_dim, out_dim):
    r = jnp.sqrt(6.0 / (in_dim + out_dim))
    return jax.random.uniform(key, (in_dim, out_dim), jnp.float32, -r, r)


def ref_forward(a_norm, x_feat, w1, b1, w2, b2):
    h = jnp.maximum(a_norm @ (x_feat @ w1) + b1, 0.0)
    h = jnp.maximum(a_norm @ (h @ w2) + b2, 0.0)
    return jax.nn.log_softmax(h, axis=1)


if __name__ == "__main__":
    # Small graph-structured inputs consistent with the module.
    node_size = 640     # number of nodes / embedding table size
    embed_dim = 16      # embedding dim (identity embedding -> one-hot-ish rows)
    hidden_dim = 32
    num_edges = 1280

    key = jax.random.PRNGKey(0)
    k_e1, k_e2, k_w1, k_w2 = jax.random.split(key, 4)

    # Module inputs: node ids, edge_index, (unused) edge_attr.
    x_ids = jnp.arange(node_size, dtype=jnp.int32)                   # [N]
    src = jax.random.randint(k_e1, (num_edges,), 0, node_size)
    dst = jax.random.randint(k_e2, (num_edges,), 0, node_size)
    edge_index = jnp.stack([src, dst]).astype(jnp.int32)             # [2, E]
    edge_attr = jnp.ones((num_edges,), jnp.float32)                  # unused

    # embedding_finetune=False -> embed.weight = eye(node_size, embed_dim)
    embed_weight = jnp.eye(node_size, embed_dim, dtype=jnp.float32)

    # GCNConv params (glorot-uniform weights per _weight_init_, zero bias).
    w1 = glorot_uniform(k_w1, embed_dim, hidden_dim)
    b1 = jnp.zeros((1, hidden_dim), jnp.float32)
    w2 = glorot_uniform(k_w2, hidden_dim, hidden_dim)
    b2 = jnp.zeros((1, hidden_dim), jnp.float32)

    fwd_fused = jax.jit(functools.partial(gcn_net_forward, force_tiled=False))
    fwd_tiled = jax.jit(functools.partial(gcn_net_forward, force_tiled=True))

    out_fused = jax.block_until_ready(
        fwd_fused(x_ids, edge_index, edge_attr, embed_weight, w1, b1, w2, b2))
    out_tiled = jax.block_until_ready(
        fwd_tiled(x_ids, edge_index, edge_attr, embed_weight, w1, b1, w2, b2))

    # Pure f32 JAX reference (unpadded adjacency).
    a_ref = build_normalized_adjacency(edge_index, node_size, node_size,
                                       jnp.float32)
    x_feat = embed_weight[x_ids]
    ref = ref_forward(a_ref, x_feat, w1, b1, w2, b2)

    for out in (out_fused, out_tiled):
        assert out.shape == (node_size, hidden_dim)
        assert bool(jnp.all(jnp.isfinite(out)))
        # rows of log_softmax must sum to ~1 after exp
        assert bool(jnp.allclose(jnp.sum(jnp.exp(out), axis=1), 1.0, atol=1e-3))
        # bf16 matmul operands -> loose tolerance vs the f32 reference
        assert bool(jnp.max(jnp.abs(out - ref)) < 5e-2)

    print("KERNEL_OK")
</pallas_src>

<mosaic_0001>
module attributes {stable_mosaic.version = 11 : i64} {
  func.func @gcn_fused_kernel(%arg0: i32, %arg1: memref<640x640xbf16, #tpu.memory_space<vmem>>, %arg2: memref<640x128xbf16, #tpu.memory_space<vmem>>, %arg3: memref<128x128xbf16, #tpu.memory_space<vmem>>, %arg4: memref<1x128xf32, #tpu.memory_space<vmem>>, %arg5: memref<128x128xbf16, #tpu.memory_space<vmem>>, %arg6: memref<1x128xf32, #tpu.memory_space<vmem>>, %arg7: memref<640x128xf32, #tpu.memory_space<vmem>>) attributes {dimension_semantics = [#tpu.dimension_semantics<arbitrary>], iteration_bounds = array<i64: 1>, scalar_prefetch = 0 : i64, scratch_operands = 0 : i64, tpu.core_type = #tpu.core_type<tc>, window_params = [{pipeline_mode = #tpu.pipeline_mode<synchronous>, transform_indices = @transform_0, window_bounds = array<i64: 640, 640>}, {pipeline_mode = #tpu.pipeline_mode<synchronous>, transform_indices = @transform_1, window_bounds = array<i64: 640, 128>}, {pipeline_mode = #tpu.pipeline_mode<synchronous>, transform_indices = @transform_2, window_bounds = array<i64: 128, 128>}, {pipeline_mode = #tpu.pipeline_mode<synchronous>, transform_indices = @transform_3, window_bounds = array<i64: 1, 128>}, {pipeline_mode = #tpu.pipeline_mode<synchronous>, transform_indices = @transform_4, window_bounds = array<i64: 128, 128>}, {pipeline_mode = #tpu.pipeline_mode<synchronous>, transform_indices = @transform_5, window_bounds = array<i64: 1, 128>}, {pipeline_mode = #tpu.pipeline_mode<synchronous>, transform_indices = @transform_6, window_bounds = array<i64: 640, 128>}]} {
    %c0 = arith.constant 0 : index
    %c0_0 = arith.constant 0 : index
    %0 = vector.load %arg1[%c0, %c0_0] : memref<640x640xbf16, #tpu.memory_space<vmem>>, vector<640x640xbf16>
    %c0_1 = arith.constant 0 : index
    %c0_2 = arith.constant 0 : index
    %1 = vector.load %arg2[%c0_1, %c0_2] : memref<640x128xbf16, #tpu.memory_space<vmem>>, vector<640x128xbf16>
    %c0_3 = arith.constant 0 : index
    %c0_4 = arith.constant 0 : index
    %2 = vector.load %arg3[%c0_3, %c0_4] : memref<128x128xbf16, #tpu.memory_space<vmem>>, vector<128x128xbf16>
    %cst = arith.constant dense<0.000000e+00> : vector<640x128xf32>
    %3 = tpu.matmul %1, %2, %cst {dimension_numbers = #tpu.dot_dimension_numbers<[1], [0], [0], [1], [0, 0, 1, 1], [], []>} : vector<640x128xbf16>, vector<128x128xbf16>, vector<640x128xf32> -> vector<640x128xf32>
    %4 = arith.truncf %3 : vector<640x128xf32> to vector<640x128xbf16>
    %cst_5 = arith.constant dense<0.000000e+00> : vector<640x128xf32>
    %5 = tpu.matmul %0, %4, %cst_5 {dimension_numbers = #tpu.dot_dimension_numbers<[1], [0], [0], [1], [0, 0, 1, 1], [], []>} : vector<640x640xbf16>, vector<640x128xbf16>, vector<640x128xf32> -> vector<640x128xf32>
    %c0_6 = arith.constant 0 : index
    %c0_7 = arith.constant 0 : index
    %6 = vector.load %arg4[%c0_6, %c0_7] : memref<1x128xf32, #tpu.memory_space<vmem>>, vector<1x128xf32>
    %7 = vector.broadcast %6 : vector<1x128xf32> to vector<640x128xf32>
    %8 = arith.addf %5, %7 : vector<640x128xf32>
    %cst_8 = arith.constant 0.000000e+00 : f32
    %9 = vector.broadcast %cst_8 : f32 to vector<640x128xf32>
    %10 = arith.maximumf %8, %9 : vector<640x128xf32>
    %11 = arith.truncf %10 : vector<640x128xf32> to vector<640x128xbf16>
    %c0_9 = arith.constant 0 : index
    %c0_10 = arith.constant 0 : index
    %12 = vector.load %arg5[%c0_9, %c0_10] : memref<128x128xbf16, #tpu.memory_space<vmem>>, vector<128x128xbf16>
    %cst_11 = arith.constant dense<0.000000e+00> : vector<640x128xf32>
    %13 = tpu.matmul %11, %12, %cst_11 {dimension_numbers = #tpu.dot_dimension_numbers<[1], [0], [0], [1], [0, 0, 1, 1], [], []>} : vector<640x128xbf16>, vector<128x128xbf16>, vector<640x128xf32> -> vector<640x128xf32>
    %14 = arith.truncf %13 : vector<640x128xf32> to vector<640x128xbf16>
    %cst_12 = arith.constant dense<0.000000e+00> : vector<640x128xf32>
    %15 = tpu.matmul %0, %14, %cst_12 {dimension_numbers = #tpu.dot_dimension_numbers<[1], [0], [0], [1], [0, 0, 1, 1], [], []>} : vector<640x640xbf16>, vector<640x128xbf16>, vector<640x128xf32> -> vector<640x128xf32>
    %c0_13 = arith.constant 0 : index
    %c0_14 = arith.constant 0 : index
    %16 = vector.load %arg6[%c0_13, %c0_14] : memref<1x128xf32, #tpu.memory_space<vmem>>, vector<1x128xf32>
    %17 = vector.broadcast %16 : vector<1x128xf32> to vector<640x128xf32>
    %18 = arith.addf %15, %17 : vector<640x128xf32>
    %cst_15 = arith.constant 0.000000e+00 : f32
    %19 = vector.broadcast %cst_15 : f32 to vector<640x128xf32>
    %20 = arith.maximumf %18, %19 : vector<640x128xf32>
    %21 = tpu.iota {dimensions = array<i32: 1>} : vector<640x128xi32>
    %c32_i32 = arith.constant 32 : i32
    %22 = vector.broadcast %c32_i32 : i32 to vector<640x128xi32>
    %23 = arith.cmpi slt, %21, %22 : vector<640x128xi32>
    %cst_16 = arith.constant 0xFF800000 : f32
    %24 = vector.broadcast %cst_16 : f32 to vector<640x128xf32>
    %25 = arith.select %23, %20, %24 : vector<640x128xi1>, vector<640x128xf32>
    %cst_17 = arith.constant dense<0xFF800000> : vector<640xf32>
    %26 = vector.multi_reduction <maximumf>, %25, %cst_17 [1] : vector<640x128xf32> to vector<640xf32>
    %27 = vector.shape_cast %26 : vector<640xf32> to vector<640x1xf32>
    %28 = vector.broadcast %27 : vector<640x1xf32> to vector<640x128xf32>
    %29 = arith.subf %25, %28 : vector<640x128xf32>
    %30 = math.exp %29 : vector<640x128xf32>
    %cst_18 = arith.constant 0.000000e+00 : f32
    %31 = vector.broadcast %cst_18 : f32 to vector<640x128xf32>
    %32 = arith.select %23, %30, %31 : vector<640x128xi1>, vector<640x128xf32>
    %cst_19 = arith.constant dense<0.000000e+00> : vector<640xf32>
    %33 = vector.multi_reduction <add>, %32, %cst_19 [1] : vector<640x128xf32> to vector<640xf32>
    %34 = vector.shape_cast %33 : vector<640xf32> to vector<640x1xf32>
    %35 = math.log %34 : vector<640x1xf32>
    %36 = vector.broadcast %35 : vector<640x1xf32> to vector<640x128xf32>
    %37 = arith.subf %29, %36 : vector<640x128xf32>
    %cst_20 = arith.constant 0.000000e+00 : f32
    %38 = vector.broadcast %cst_20 : f32 to vector<640x128xf32>
    %39 = arith.select %23, %37, %38 : vector<640x128xi1>, vector<640x128xf32>
    %c0_21 = arith.constant 0 : index
    %c0_22 = arith.constant 0 : index
    %40 = vector.load %arg7[%c0_21, %c0_22] : memref<640x128xf32, #tpu.memory_space<vmem>>, vector<640x128xf32>
    tpu.vector_store %arg7[%c0_21, %c0_22], %39 {strides = array<i32>} : memref<640x128xf32, #tpu.memory_space<vmem>>, vector<640x128xf32>,
    return
  }
  func.func @transform_0(%arg0: i32) -> (i32, i32) {
    %c0_i32 = arith.constant 0 : i32
    %c0_i32_0 = arith.constant 0 : i32
    %c0_i32_1 = arith.constant 0 : i32
    return %c0_i32, %c0_i32_0 : i32, i32
  }
  func.func @transform_1(%arg0: i32) -> (i32, i32) {
    %c0_i32 = arith.constant 0 : i32
    %c0_i32_0 = arith.constant 0 : i32
    %c0_i32_1 = arith.constant 0 : i32
    return %c0_i32, %c0_i32_0 : i32, i32
  }
  func.func @transform_2(%arg0: i32) -> (i32, i32) {
    %c0_i32 = arith.constant 0 : i32
    %c0_i32_0 = arith.constant 0 : i32
    %c0_i32_1 = arith.constant 0 : i32
    return %c0_i32, %c0_i32_0 : i32, i32
  }
  func.func @transform_3(%arg0: i32) -> (i32, i32) {
    %c0_i32 = arith.constant 0 : i32
    %c0_i32_0 = arith.constant 0 : i32
    %c0_i32_1 = arith.constant 0 : i32
    return %c0_i32, %c0_i32_0 : i32, i32
  }
  func.func @transform_4(%arg0: i32) -> (i32, i32) {
    %c0_i32 = arith.constant 0 : i32
    %c0_i32_0 = arith.constant 0 : i32
    %c0_i32_1 = arith.constant 0 : i32
    return %c0_i32, %c0_i32_0 : i32, i32
  }
  func.func @transform_5(%arg0: i32) -> (i32, i32) {
    %c0_i32 = arith.constant 0 : i32
    %c0_i32_0 = arith.constant 0 : i32
    %c0_i32_1 = arith.constant 0 : i32
    return %c0_i32, %c0_i32_0 : i32, i32
  }
  func.func @transform_6(%arg0: i32) -> (i32, i32) {
    %c0_i32 = arith.constant 0 : i32
    %c0_i32_0 = arith.constant 0 : i32
    %c0_i32_1 = arith.constant 0 : i32
    return %c0_i32, %c0_i32_0 : i32, i32
  }
}

</mosaic_0001>

<llo_original>
// kernel: gcn_net_forward.1
$region0: #{gcn_net_forward.1}
  #allocation0 [shape = 'u32[]', space=smem, size = 0x4, offset = 0x4, fixed_abs, tag = 'smem constant byte address 0x4 - core index']
  #allocation1 [shape = 'u32[72,128]{1,0:T(1,128)}', space=vmem, size = 0x9000, scoped, tag = 'internal scratch']
  %s0 = inlined_call_operand.vmem [shape: bf16[640,640], index: 0, kind: input, shape index: {}]
  %s1 = inlined_call_operand.vmem [shape: bf16[640,128], index: 1, kind: input, shape index: {}]
  %s2 = inlined_call_operand.vmem [shape: bf16[128,128], index: 2, kind: input, shape index: {}]
  %s3 = inlined_call_operand.vmem [shape: f32[1,128], index: 3, kind: input, shape index: {}]
  %s4 = inlined_call_operand.vmem [shape: bf16[128,128], index: 4, kind: input, shape index: {}]
  %s5 = inlined_call_operand.vmem [shape: f32[1,128], index: 5, kind: input, shape index: {}]
  %s6 = inlined_call_operand.vmem [shape: f32[640,128], index: 6, kind: output, shape index: {}]
  %s7 = sld [smem:[#allocation0]]
  $region34: #{gcn_net_forward.1} parent=0
    _
  %s9 = ssub.s32 1, %s7
  %s10 = scalar_select 0, %s9, %s7
  // Predicated region
  $region2: #{gcn_net_forward.1} parent=0 // pred_check
    _
  $region3: #{gcn_net_forward.1} parent=0 // pred_check_branch
    %12 = sbr.rel (0) target = $region5
  $region4: #{gcn_net_forward.1} parent=0 // pred_region
    _
  $region5: #{gcn_net_forward.1} parent=0 // pred_fallthru
    _
  // Predicated region
  $region6: #{gcn_net_forward.1} parent=0 // pred_check
    _
  $region7: #{gcn_net_forward.1} parent=0 // pred_check_branch
    %14 = sbr.rel (0) target = $region9
  $region8: #{gcn_net_forward.1} parent=0 // pred_region
    _
  $region9: #{gcn_net_forward.1} parent=0 // pred_fallthru
    _
  // Predicated region
  $region10: #{gcn_net_forward.1} parent=0 // pred_check
    _
  $region11: #{gcn_net_forward.1} parent=0 // pred_check_branch
    %16 = sbr.rel (0) target = $region13
  $region12: #{gcn_net_forward.1} parent=0 // pred_region
    _
  $region13: #{gcn_net_forward.1} parent=0 // pred_fallthru
    _
  // Predicated region
  $region14: #{gcn_net_forward.1} parent=0 // pred_check
    _
  $region15: #{gcn_net_forward.1} parent=0 // pred_check_branch
    %18 = sbr.rel (0) target = $region17
  $region16: #{gcn_net_forward.1} parent=0 // pred_region
    _
  $region17: #{gcn_net_forward.1} parent=0 // pred_fallthru
    _
  // Predicated region
  $region18: #{gcn_net_forward.1} parent=0 // pred_check
    _
  $region19: #{gcn_net_forward.1} parent=0 // pred_check_branch
    %20 = sbr.rel (0) target = $region21
  $region20: #{gcn_net_forward.1} parent=0 // pred_region
    _
  $region21: #{gcn_net_forward.1} parent=0 // pred_fallthru
    _
  // Predicated region
  $region22: #{gcn_net_forward.1} parent=0 // pred_check
    _
  $region23: #{gcn_net_forward.1} parent=0 // pred_check_branch
    %22 = sbr.rel (0) target = $region25
  $region24: #{gcn_net_forward.1} parent=0 // pred_region
    _
  $region25: #{gcn_net_forward.1} parent=0 // pred_fallthru
    _
  %v23 = vld [vmem:[%s0] sm:$0xff]
  %v24 = vld [vmem:[%s0 + $0x8] sm:$0xff]
  %v25 = vld [vmem:[%s0 + $0x10] sm:$0xf]
  %v26 = vld [vmem:[%s0 + $0x14] sm:$0xff]
  %v27 = vld [vmem:[%s0 + $0x1c] sm:$0xff]
  %v28 = vld [vmem:[%s0 + $0x24] sm:$0xf]
  %v29 = vld [vmem:[%s0 + $0x28] sm:$0xff]
  %v30 = vld [vmem:[%s0 + $0x30] sm:$0xff]
  %v31 = vld [vmem:[%s0 + $0x38] sm:$0xf]
  %v32 = vld [vmem:[%s0 + $0x3c] sm:$0xff]
  %v33 = vld [vmem:[%s0 + $0x44] sm:$0xff]
  %v34 = vld [vmem:[%s0 + $0x4c] sm:$0xf]
  %v35 = vld [vmem:[%s0 + $0x50] sm:$0xff]
  %v36 = vld [vmem:[%s0 + $0x58] sm:$0xff]
  %v37 = vld [vmem:[%s0 + $0x60] sm:$0xf]
  %v38 = vld [vmem:[%s0 + $0x64] sm:$0xff]
  %v39 = vld [vmem:[%s0 + $0x6c] sm:$0xff]
  %v40 = vld [vmem:[%s0 + $0x74] sm:$0xf]
  %v41 = vld [vmem:[%s0 + $0x78] sm:$0xff]
  %v42 = vld [vmem:[%s0 + $0x80] sm:$0xff]
  %v43 = vld [vmem:[%s0 + $0x88] sm:$0xf]
  %v44 = vld [vmem:[%s0 + $0x8c] sm:$0xff]
  %v45 = vld [vmem:[%s0 + $0x94] sm:$0xff]
  %v46 = vld [vmem:[%s0 + $0x9c] sm:$0xf]
  %v47 = vld [vmem:[%s0 + $0xa0] sm:$0xff]
  %v48 = vld [vmem:[%s0 + $0xa8] sm:$0xff]
  %v49 = vld [vmem:[%s0 + $0xb0] sm:$0xf]
  %v50 = vld [vmem:[%s0 + $0xb4] sm:$0xff]
  %v51 = vld [vmem:[%s0 + $0xbc] sm:$0xff]
  %v52 = vld [vmem:[%s0 + $0xc4] sm:$0xf]
  %v53 = vld [vmem:[%s0 + $0xc8] sm:$0xff]
  %v54 = vld [vmem:[%s0 + $0xd0] sm:$0xff]
  %v55 = vld [vmem:[%s0 + $0xd8] sm:$0xf]
  %v56 = vld [vmem:[%s0 + $0xdc] sm:$0xff]
  %v57 = vld [vmem:[%s0 + $0xe4] sm:$0xff]
  %v58 = vld [vmem:[%s0 + $0xec] sm:$0xf]
  %v59 = vld [vmem:[%s0 + $0xf0] sm:$0xff]
  %v60 = vld [vmem:[%s0 + $0xf8] sm:$0xff]
  %v61 = vld [vmem:[%s0 + $0x100] sm:$0xf]
  %v62 = vld [vmem:[%s0 + $0x104] sm:$0xff]
  %v63 = vld [vmem:[%s0 + $0x10c] sm:$0xff]
  %v64 = vld [vmem:[%s0 + $0x114] sm:$0xf]
  %v65 = vld [vmem:[%s0 + $0x118] sm:$0xff]
  %v66 = vld [vmem:[%s0 + $0x120] sm:$0xff]
  %v67 = vld [vmem:[%s0 + $0x128] sm:$0xf]
  %v68 = vld [vmem:[%s0 + $0x12c] sm:$0xff]
  %v69 = vld [vmem:[%s0 + $0x134] sm:$0xff]
  %v70 = vld [vmem:[%s0 + $0x13c] sm:$0xf]
  %v71 = vld [vmem:[%s0 + $0x140] sm:$0xff]
  %v72 = vld [vmem:[%s0 + $0x148] sm:$0xff]
  %v73 = vld [vmem:[%s0 + $0x150] sm:$0xf]
  %v74 = vld [vmem:[%s0 + $0x154] sm:$0xff]
  %v75 = vld [vmem:[%s0 + $0x15c] sm:$0xff]
  %v76 = vld [vmem:[%s0 + $0x164] sm:$0xf]
  %v77 = vld [vmem:[%s0 + $0x168] sm:$0xff]
  %v78 = vld [vmem:[%s0 + $0x170] sm:$0xff]
  %v79 = vld [vmem:[%s0 + $0x178] sm:$0xf]
  %v80 = vld [vmem:[%s0 + $0x17c] sm:$0xff]
  %v81 = vld [vmem:[%s0 + $0x184] sm:$0xff]
  %v82 = vld [vmem:[%s0 + $0x18c] sm:$0xf]
  %v83 = vld [vmem:[%s0 + $0x190] sm:$0xff]
  %v84 = vld [vmem:[%s0 + $0x198] sm:$0xff]
  %v85 = vld [vmem:[%s0 + $0x1a0] sm:$0xf]
  %v86 = vld [vmem:[%s0 + $0x1a4] sm:$0xff]
  %v87 = vld [vmem:[%s0 + $0x1ac] sm:$0xff]
  %v88 = vld [vmem:[%s0 + $0x1b4] sm:$0xf]
  %v89 = vld [vmem:[%s0 + $0x1b8] sm:$0xff]
  %v90 = vld [vmem:[%s0 + $0x1c0] sm:$0xff]
  %v91 = vld [vmem:[%s0 + $0x1c8] sm:$0xf]
  %v92 = vld [vmem:[%s0 + $0x1cc] sm:$0xff]
  %v93 = vld [vmem:[%s0 + $0x1d4] sm:$0xff]
  %v94 = vld [vmem:[%s0 + $0x1dc] sm:$0xf]
  %v95 = vld [vmem:[%s0 + $0x1e0] sm:$0xff]
  %v96 = vld [vmem:[%s0 + $0x1e8] sm:$0xff]
  %v97 = vld [vmem:[%s0 + $0x1f0] sm:$0xf]
  %v98 = vld [vmem:[%s0 + $0x1f4] sm:$0xff]
  %v99 = vld [vmem:[%s0 + $0x1fc] sm:$0xff]
  %v100 = vld [vmem:[%s0 + $0x204] sm:$0xf]
  %v101 = vld [vmem:[%s0 + $0x208] sm:$0xff]
  %v102 = vld [vmem:[%s0 + $0x210] sm:$0xff]
  %v103 = vld [vmem:[%s0 + $0x218] sm:$0xf]
  %v104 = vld [vmem:[%s0 + $0x21c] sm:$0xff]
  %v105 = vld [vmem:[%s0 + $0x224] sm:$0xff]
  %v106 = vld [vmem:[%s0 + $0x22c] sm:$0xf]
  %v107 = vld [vmem:[%s0 + $0x230] sm:$0xff]
  %v108 = vld [vmem:[%s0 + $0x238] sm:$0xff]
  %v109 = vld [vmem:[%s0 + $0x240] sm:$0xf]
  %v110 = vld [vmem:[%s0 + $0x244] sm:$0xff]
  %v111 = vld [vmem:[%s0 + $0x24c] sm:$0xff]
  %v112 = vld [vmem:[%s0 + $0x254] sm:$0xf]
  %v113 = vld [vmem:[%s0 + $0x258] sm:$0xff]
  %v114 = vld [vmem:[%s0 + $0x260] sm:$0xff]
  %v115 = vld [vmem:[%s0 + $0x268] sm:$0xf]
  %v116 = vld [vmem:[%s0 + $0x26c] sm:$0xff]
  %v117 = vld [vmem:[%s0 + $0x274] sm:$0xff]
  %v118 = vld [vmem:[%s0 + $0x27c] sm:$0xf]
  %v119 = vld [vmem:[%s0 + $0x280] sm:$0xff]
  %v120 = vld [vmem:[%s0 + $0x288] sm:$0xff]
  %v121 = vld [vmem:[%s0 + $0x290] sm:$0xf]
  %v122 = vld [vmem:[%s0 + $0x294] sm:$0xff]
  %v123 = vld [vmem:[%s0 + $0x29c] sm:$0xff]
  %v124 = vld [vmem:[%s0 + $0x2a4] sm:$0xf]
  %v125 = vld [vmem:[%s0 + $0x2a8] sm:$0xff]
  %v126 = vld [vmem:[%s0 + $0x2b0] sm:$0xff]
  %v127 = vld [vmem:[%s0 + $0x2b8] sm:$0xf]
  %v128 = vld [vmem:[%s0 + $0x2bc] sm:$0xff]
  %v129 = vld [vmem:[%s0 + $0x2c4] sm:$0xff]
  %v130 = vld [vmem:[%s0 + $0x2cc] sm:$0xf]
  %v131 = vld [vmem:[%s0 + $0x2d0] sm:$0xff]
  %v132 = vld [vmem:[%s0 + $0x2d8] sm:$0xff]
  %v133 = vld [vmem:[%s0 + $0x2e0] sm:$0xf]
  %v134 = vld [vmem:[%s0 + $0x2e4] sm:$0xff]
  %v135 = vld [vmem:[%s0 + $0x2ec] sm:$0xff]
  %v136 = vld [vmem:[%s0 + $0x2f4] sm:$0xf]
  %v137 = vld [vmem:[%s0 + $0x2f8] sm:$0xff]
  %v138 = vld [vmem:[%s0 + $0x300] sm:$0xff]
  %v139 = vld [vmem:[%s0 + $0x308] sm:$0xf]
  %v140 = vld [vmem:[%s0 + $0x30c] sm:$0xff]
  %v141 = vld [vmem:[%s0 + $0x314] sm:$0xff]
  %v142 = vld [vmem:[%s0 + $0x31c] sm:$0xf]
  %v143 = vld [vmem:[%s0 + $0x320] sm:$0xff]
  %v144 = vld [vmem:[%s0 + $0x328] sm:$0xff]
  %v145 = vld [vmem:[%s0 + $0x330] sm:$0xf]
  %v146 = vld [vmem:[%s0 + $0x334] sm:$0xff]
  %v147 = vld [vmem:[%s0 + $0x33c] sm:$0xff]
  %v148 = vld [vmem:[%s0 + $0x344] sm:$0xf]
  %v149 = vld [vmem:[%s0 + $0x348] sm:$0xff]
  %v150 = vld [vmem:[%s0 + $0x350] sm:$0xff]
  %v151 = vld [vmem:[%s0 + $0x358] sm:$0xf]
  %v152 = vld [vmem:[%s0 + $0x35c] sm:$0xff]
  %v153 = vld [vmem:[%s0 + $0x364] sm:$0xff]
  %v154 = vld [vmem:[%s0 + $0x36c] sm:$0xf]
  %v155 = vld [vmem:[%s0 + $0x370] sm:$0xff]
  %v156 = vld [vmem:[%s0 + $0x378] sm:$0xff]
  %v157 = vld [vmem:[%s0 + $0x380] sm:$0xf]
  %v158 = vld [vmem:[%s0 + $0x384] sm:$0xff]
  %v159 = vld [vmem:[%s0 + $0x38c] sm:$0xff]
  %v160 = vld [vmem:[%s0 + $0x394] sm:$0xf]
  %v161 = vld [vmem:[%s0 + $0x398] sm:$0xff]
  %v162 = vld [vmem:[%s0 + $0x3a0] sm:$0xff]
  %v163 = vld [vmem:[%s0 + $0x3a8] sm:$0xf]
  %v164 = vld [vmem:[%s0 + $0x3ac] sm:$0xff]
  %v165 = vld [vmem:[%s0 + $0x3b4] sm:$0xff]
  %v166 = vld [vmem:[%s0 + $0x3bc] sm:$0xf]
  %v167 = vld [vmem:[%s0 + $0x3c0] sm:$0xff]
  %v168 = vld [vmem:[%s0 + $0x3c8] sm:$0xff]
  %v169 = vld [vmem:[%s0 + $0x3d0] sm:$0xf]
  %v170 = vld [vmem:[%s0 + $0x3d4] sm:$0xff]
  %v171 = vld [vmem:[%s0 + $0x3dc] sm:$0xff]
  %v172 = vld [vmem:[%s0 + $0x3e4] sm:$0xf]
  %v173 = vld [vmem:[%s0 + $0x3e8] sm:$0xff]
  %v174 = vld [vmem:[%s0 + $0x3f0] sm:$0xff]
  %v175 = vld [vmem:[%s0 + $0x3f8] sm:$0xf]
  %v176 = vld [vmem:[%s0 + $0x3fc] sm:$0xff]
  %v177 = vld [vmem:[%s0 + $0x404] sm:$0xff]
  %v178 = vld [vmem:[%s0 + $0x40c] sm:$0xf]
  %v179 = vld [vmem:[%s0 + $0x410] sm:$0xff]
  %v180 = vld [vmem:[%s0 + $0x418] sm:$0xff]
  %v181 = vld [vmem:[%s0 + $0x420] sm:$0xf]
  %v182 = vld [vmem:[%s0 + $0x424] sm:$0xff]
  %v183 = vld [vmem:[%s0 + $0x42c] sm:$0xff]
  %v184 = vld [vmem:[%s0 + $0x434] sm:$0xf]
  %v185 = vld [vmem:[%s0 + $0x438] sm:$0xff]
  %v186 = vld [vmem:[%s0 + $0x440] sm:$0xff]
  %v187 = vld [vmem:[%s0 + $0x448] sm:$0xf]
  %v188 = vld [vmem:[%s0 + $0x44c] sm:$0xff]
  %v189 = vld [vmem:[%s0 + $0x454] sm:$0xff]
  %v190 = vld [vmem:[%s0 + $0x45c] sm:$0xf]
  %v191 = vld [vmem:[%s0 + $0x460] sm:$0xff]
  %v192 = vld [vmem:[%s0 + $0x468] sm:$0xff]
  %v193 = vld [vmem:[%s0 + $0x470] sm:$0xf]
  %v194 = vld [vmem:[%s0 + $0x474] sm:$0xff]
  %v195 = vld [vmem:[%s0 + $0x47c] sm:$0xff]
  %v196 = vld [vmem:[%s0 + $0x484] sm:$0xf]
  %v197 = vld [vmem:[%s0 + $0x488] sm:$0xff]
  %v198 = vld [vmem:[%s0 + $0x490] sm:$0xff]
  %v199 = vld [vmem:[%s0 + $0x498] sm:$0xf]
  %v200 = vld [vmem:[%s0 + $0x49c] sm:$0xff]
  %v201 = vld [vmem:[%s0 + $0x4a4] sm:$0xff]
  %v202 = vld [vmem:[%s0 + $0x4ac] sm:$0xf]
  %v203 = vld [vmem:[%s0 + $0x4b0] sm:$0xff]
  %v204 = vld [vmem:[%s0 + $0x4b8] sm:$0xff]
  %v205 = vld [vmem:[%s0 + $0x4c0] sm:$0xf]
  %v206 = vld [vmem:[%s0 + $0x4c4] sm:$0xff]
  %v207 = vld [vmem:[%s0 + $0x4cc] sm:$0xff]
  %v208 = vld [vmem:[%s0 + $0x4d4] sm:$0xf]
  %v209 = vld [vmem:[%s0 + $0x4d8] sm:$0xff]
  %v210 = vld [vmem:[%s0 + $0x4e0] sm:$0xff]
  %v211 = vld [vmem:[%s0 + $0x4e8] sm:$0xf]
  %v212 = vld [vmem:[%s0 + $0x4ec] sm:$0xff]
  %v213 = vld [vmem:[%s0 + $0x4f4] sm:$0xff]
  %v214 = vld [vmem:[%s0 + $0x4fc] sm:$0xf]
  %v215 = vld [vmem:[%s0 + $0x500] sm:$0xff]
  %v216 = vld [vmem:[%s0 + $0x508] sm:$0xff]
  %v217 = vld [vmem:[%s0 + $0x510] sm:$0xf]
  %v218 = vld [vmem:[%s0 + $0x514] sm:$0xff]
  %v219 = vld [vmem:[%s0 + $0x51c] sm:$0xff]
  %v220 = vld [vmem:[%s0 + $0x524] sm:$0xf]
  %v221 = vld [vmem:[%s0 + $0x528] sm:$0xff]
  %v222 = vld [vmem:[%s0 + $0x530] sm:$0xff]
  %v223 = vld [vmem:[%s0 + $0x538] sm:$0xf]
  %v224 = vld [vmem:[%s0 + $0x53c] sm:$0xff]
  %v225 = vld [vmem:[%s0 + $0x544] sm:$0xff]
  %v226 = vld [vmem:[%s0 + $0x54c] sm:$0xf]
  %v227 = vld [vmem:[%s0 + $0x550] sm:$0xff]
  %v228 = vld [vmem:[%s0 + $0x558] sm:$0xff]
  %v229 = vld [vmem:[%s0 + $0x560] sm:$0xf]
  %v230 = vld [vmem:[%s0 + $0x564] sm:$0xff]
  %v231 = vld [vmem:[%s0 + $0x56c] sm:$0xff]
  %v232 = vld [vmem:[%s0 + $0x574] sm:$0xf]
  %v233 = vld [vmem:[%s0 + $0x578] sm:$0xff]
  %v234 = vld [vmem:[%s0 + $0x580] sm:$0xff]
  %v235 = vld [vmem:[%s0 + $0x588] sm:$0xf]
  %v236 = vld [vmem:[%s0 + $0x58c] sm:$0xff]
  %v237 = vld [vmem:[%s0 + $0x594] sm:$0xff]
  %v238 = vld [vmem:[%s0 + $0x59c] sm:$0xf]
  %v239 = vld [vmem:[%s0 + $0x5a0] sm:$0xff]
  %v240 = vld [vmem:[%s0 + $0x5a8] sm:$0xff]
  %v241 = vld [vmem:[%s0 + $0x5b0] sm:$0xf]
  %v242 = vld [vmem:[%s0 + $0x5b4] sm:$0xff]
  %v243 = vld [vmem:[%s0 + $0x5bc] sm:$0xff]
  %v244 = vld [vmem:[%s0 + $0x5c4] sm:$0xf]
  %v245 = vld [vmem:[%s0 + $0x5c8] sm:$0xff]
  %v246 = vld [vmem:[%s0 + $0x5d0] sm:$0xff]
  %v247 = vld [vmem:[%s0 + $0x5d8] sm:$0xf]
  %v248 = vld [vmem:[%s0 + $0x5dc] sm:$0xff]
  %v249 = vld [vmem:[%s0 + $0x5e4] sm:$0xff]
  %v250 = vld [vmem:[%s0 + $0x5ec] sm:$0xf]
  %v251 = vld [vmem:[%s0 + $0x5f0] sm:$0xff]
  %v252 = vld [vmem:[%s0 + $0x5f8] sm:$0xff]
  %v253 = vld [vmem:[%s0 + $0x600] sm:$0xf]
  %v254 = vld [vmem:[%s0 + $0x604] sm:$0xff]
  %v255 = vld [vmem:[%s0 + $0x60c] sm:$0xff]
  %v256 = vld [vmem:[%s0 + $0x614] sm:$0xf]
  %v257 = vld [vmem:[%s0 + $0x618] sm:$0xff]
  %v258 = vld [vmem:[%s0 + $0x620] sm:$0xff]
  %v259 = vld [vmem:[%s0 + $0x628] sm:$0xf]
  %v260 = vld [vmem:[%s0 + $0x62c] sm:$0xff]
  %v261 = vld [vmem:[%s0 + $0x634] sm:$0xff]
  %v262 = vld [vmem:[%s0 + $0x63c] sm:$0xf]
  %v263 = vld [vmem:[%s1] sm:$0xf]
  %v264 = vld [vmem:[%s1 + $0x4] sm:$0xf]
  %v265 = vld [vmem:[%s1 + $0x8] sm:$0xf]
  %v266 = vld [vmem:[%s1 + $0xc] sm:$0xf]
  %v267 = vld [vmem:[%s1 + $0x10] sm:$0xf]
  %v268 = vld [vmem:[%s1 + $0x14] sm:$0xf]
  %v269 = vld [vmem:[%s1 + $0x18] sm:$0xf]
  %v270 = vld [vmem:[%s1 + $0x1c] sm:$0xf]
  %v271 = vld [vmem:[%s1 + $0x20] sm:$0xf]
  %v272 = vld [vmem:[%s1 + $0x24] sm:$0xf]
  %v273 = vld [vmem:[%s1 + $0x28] sm:$0xf]
  %v274 = vld [vmem:[%s1 + $0x2c] sm:$0xf]
  %v275 = vld [vmem:[%s1 + $0x30] sm:$0xf]
  %v276 = vld [vmem:[%s1 + $0x34] sm:$0xf]
  %v277 = vld [vmem:[%s1 + $0x38] sm:$0xf]
  %v278 = vld [vmem:[%s1 + $0x3c] sm:$0xf]
  %v279 = vld [vmem:[%s1 + $0x40] sm:$0xf]
  %v280 = vld [vmem:[%s1 + $0x44] sm:$0xf]
  %v281 = vld [vmem:[%s1 + $0x48] sm:$0xf]
  %v282 = vld [vmem:[%s1 + $0x4c] sm:$0xf]
  %v283 = vld [vmem:[%s1 + $0x50] sm:$0xf]
  %v284 = vld [vmem:[%s1 + $0x54] sm:$0xf]
  %v285 = vld [vmem:[%s1 + $0x58] sm:$0xf]
  %v286 = vld [vmem:[%s1 + $0x5c] sm:$0xf]
  %v287 = vld [vmem:[%s1 + $0x60] sm:$0xf]
  %v288 = vld [vmem:[%s1 + $0x64] sm:$0xf]
  %v289 = vld [vmem:[%s1 + $0x68] sm:$0xf]
  %v290 = vld [vmem:[%s1 + $0x6c] sm:$0xf]
  %v291 = vld [vmem:[%s1 + $0x70] sm:$0xf]
  %v292 = vld [vmem:[%s1 + $0x74] sm:$0xf]
  %v293 = vld [vmem:[%s1 + $0x78] sm:$0xf]
  %v294 = vld [vmem:[%s1 + $0x7c] sm:$0xf]
  %v295 = vld [vmem:[%s1 + $0x80] sm:$0xf]
  %v296 = vld [vmem:[%s1 + $0x84] sm:$0xf]
  %v297 = vld [vmem:[%s1 + $0x88] sm:$0xf]
  %v298 = vld [vmem:[%s1 + $0x8c] sm:$0xf]
  %v299 = vld [vmem:[%s1 + $0x90] sm:$0xf]
  %v300 = vld [vmem:[%s1 + $0x94] sm:$0xf]
  %v301 = vld [vmem:[%s1 + $0x98] sm:$0xf]
  %v302 = vld [vmem:[%s1 + $0x9c] sm:$0xf]
  %v303 = vld [vmem:[%s1 + $0xa0] sm:$0xf]
  %v304 = vld [vmem:[%s1 + $0xa4] sm:$0xf]
  %v305 = vld [vmem:[%s1 + $0xa8] sm:$0xf]
  %v306 = vld [vmem:[%s1 + $0xac] sm:$0xf]
  %v307 = vld [vmem:[%s1 + $0xb0] sm:$0xf]
  %v308 = vld [vmem:[%s1 + $0xb4] sm:$0xf]
  %v309 = vld [vmem:[%s1 + $0xb8] sm:$0xf]
  %v310 = vld [vmem:[%s1 + $0xbc] sm:$0xf]
  %v311 = vld [vmem:[%s1 + $0xc0] sm:$0xf]
  %v312 = vld [vmem:[%s1 + $0xc4] sm:$0xf]
  %v313 = vld [vmem:[%s1 + $0xc8] sm:$0xf]
  %v314 = vld [vmem:[%s1 + $0xcc] sm:$0xf]
  %v315 = vld [vmem:[%s1 + $0xd0] sm:$0xf]
  %v316 = vld [vmem:[%s1 + $0xd4] sm:$0xf]
  %v317 = vld [vmem:[%s1 + $0xd8] sm:$0xf]
  %v318 = vld [vmem:[%s1 + $0xdc] sm:$0xf]
  %v319 = vld [vmem:[%s1 + $0xe0] sm:$0xf]
  %v320 = vld [vmem:[%s1 + $0xe4] sm:$0xf]
  %v321 = vld [vmem:[%s1 + $0xe8] sm:$0xf]
  %v322 = vld [vmem:[%s1 + $0xec] sm:$0xf]
  %v323 = vld [vmem:[%s1 + $0xf0] sm:$0xf]
  %v324 = vld [vmem:[%s1 + $0xf4] sm:$0xf]
  %v325 = vld [vmem:[%s1 + $0xf8] sm:$0xf]
  %v326 = vld [vmem:[%s1 + $0xfc] sm:$0xf]
  %v327 = vld [vmem:[%s1 + $0x100] sm:$0xf]
  %v328 = vld [vmem:[%s1 + $0x104] sm:$0xf]
  %v329 = vld [vmem:[%s1 + $0x108] sm:$0xf]
  %v330 = vld [vmem:[%s1 + $0x10c] sm:$0xf]
  %v331 = vld [vmem:[%s1 + $0x110] sm:$0xf]
  %v332 = vld [vmem:[%s1 + $0x114] sm:$0xf]
  %v333 = vld [vmem:[%s1 + $0x118] sm:$0xf]
  %v334 = vld [vmem:[%s1 + $0x11c] sm:$0xf]
  %v335 = vld [vmem:[%s1 + $0x120] sm:$0xf]
  %v336 = vld [vmem:[%s1 + $0x124] sm:$0xf]
  %v337 = vld [vmem:[%s1 + $0x128] sm:$0xf]
  %v338 = vld [vmem:[%s1 + $0x12c] sm:$0xf]
  %v339 = vld [vmem:[%s1 + $0x130] sm:$0xf]
  %v340 = vld [vmem:[%s1 + $0x134] sm:$0xf]
  %v341 = vld [vmem:[%s1 + $0x138] sm:$0xf]
  %v342 = vld [vmem:[%s1 + $0x13c] sm:$0xf]
  %v343 = vld [vmem:[%s2] sm:$0xf]
  %v344 = vld [vmem:[%s2 + $0x4] sm:$0xf]
  %v345 = vld [vmem:[%s2 + $0x8] sm:$0xf]
  %v346 = vld [vmem:[%s2 + $0xc] sm:$0xf]
  %v347 = vld [vmem:[%s2 + $0x10] sm:$0xf]
  %v348 = vld [vmem:[%s2 + $0x14] sm:$0xf]
  %v349 = vld [vmem:[%s2 + $0x18] sm:$0xf]
  %v350 = vld [vmem:[%s2 + $0x1c] sm:$0xf]
  %v351 = vld [vmem:[%s2 + $0x20] sm:$0xf]
  %v352 = vld [vmem:[%s2 + $0x24] sm:$0xf]
  %v353 = vld [vmem:[%s2 + $0x28] sm:$0xf]
  %v354 = vld [vmem:[%s2 + $0x2c] sm:$0xf]
  %v355 = vld [vmem:[%s2 + $0x30] sm:$0xf]
  %v356 = vld [vmem:[%s2 + $0x34] sm:$0xf]
  %v357 = vld [vmem:[%s2 + $0x38] sm:$0xf]
  %v358 = vld [vmem:[%s2 + $0x3c] sm:$0xf]
  %v439 = vunpack.c.l.b16 %v263
  %v440 = vunpack.c.l.b16 %v264
  %v441 = vunpack.c.l.b16 %v265
  %v442 = vunpack.c.l.b16 %v266
  %v443 = vunpack.c.l.b16 %v267
  %v444 = vunpack.c.l.b16 %v268
  %v445 = vunpack.c.l.b16 %v269
  %v446 = vunpack.c.l.b16 %v270
  %v447 = vunpack.c.l.b16 %v271
  %v448 = vunpack.c.l.b16 %v272
  %v449 = vunpack.c.l.b16 %v273
  %v450 = vunpack.c.l.b16 %v274
  %v451 = vunpack.c.l.b16 %v275
  %v452 = vunpack.c.l.b16 %v276
  %v453 = vunpack.c.l.b16 %v277
  %v454 = vunpack.c.l.b16 %v278
  %v455 = vunpack.c.l.b16 %v279
  %v456 = vunpack.c.l.b16 %v280
  %v457 = vunpack.c.l.b16 %v281
  %v458 = vunpack.c.l.b16 %v282
  %v459 = vunpack.c.l.b16 %v283
  %v460 = vunpack.c.l.b16 %v284
  %v461 = vunpack.c.l.b16 %v285
  %v462 = vunpack.c.l.b16 %v286
  %v463 = vunpack.c.l.b16 %v287
  %v464 = vunpack.c.l.b16 %v288
  %v465 = vunpack.c.l.b16 %v289
  %v466 = vunpack.c.l.b16 %v290
  %v467 = vunpack.c.l.b16 %v291
  %v468 = vunpack.c.l.b16 %v292
  %v469 = vunpack.c.l.b16 %v293
  %v470 = vunpack.c.l.b16 %v294
  %v471 = vunpack.c.l.b16 %v295
  %v472 = vunpack.c.l.b16 %v296
  %v473 = vunpack.c.l.b16 %v297
  %v474 = vunpack.c.l.b16 %v298
  %v475 = vunpack.c.l.b16 %v299
  %v476 = vunpack.c.l.b16 %v300
  %v477 = vunpack.c.l.b16 %v301
  %v478 = vunpack.c.l.b16 %v302
  %v479 = vunpack.c.l.b16 %v303
  %v480 = vunpack.c.l.b16 %v304
  %v481 = vunpack.c.l.b16 %v305
  %v482 = vunpack.c.l.b16 %v306
  %v483 = vunpack.c.l.b16 %v307
  %v484 = vunpack.c.l.b16 %v308
  %v485 = vunpack.c.l.b16 %v309
  %v486 = vunpack.c.l.b16 %v310
  %v487 = vunpack.c.l.b16 %v311
  %v488 = vunpack.c.l.b16 %v312
  %v489 = vunpack.c.l.b16 %v313
  %v490 = vunpack.c.l.b16 %v314
  %v491 = vunpack.c.l.b16 %v315
  %v492 = vunpack.c.l.b16 %v316
  %v493 = vunpack.c.l.b16 %v317
  %v494 = vunpack.c.l.b16 %v318
  %v495 = vunpack.c.l.b16 %v319
  %v496 = vunpack.c.l.b16 %v320
  %v497 = vunpack.c.l.b16 %v321
  %v498 = vunpack.c.l.b16 %v322
  %v499 = vunpack.c.l.b16 %v323
  %v500 = vunpack.c.l.b16 %v324
  %v501 = vunpack.c.l.b16 %v325
  %v502 = vunpack.c.l.b16 %v326
  %v503 = vunpack.c.l.b16 %v327
  %v504 = vunpack.c.l.b16 %v328
  %v505 = vunpack.c.l.b16 %v329
  %v506 = vunpack.c.l.b16 %v330
  %v507 = vunpack.c.l.b16 %v331
  %v508 = vunpack.c.l.b16 %v332
  %v509 = vunpack.c.l.b16 %v333
  %v510 = vunpack.c.l.b16 %v334
  %v511 = vunpack.c.l.b16 %v335
  %v512 = vunpack.c.l.b16 %v336
  %v513 = vunpack.c.l.b16 %v337
  %v514 = vunpack.c.l.b16 %v338
  %v515 = vunpack.c.l.b16 %v339
  %v516 = vunpack.c.l.b16 %v340
  %v517 = vunpack.c.l.b16 %v341
  %v518 = vunpack.c.l.b16 %v342
  %v519 = vpack.c.b16 %v440, %v439
  %v520 = vpack.c.b16 %v442, %v441
  %v521 = vpack.c.b16 %v444, %v443
  %v522 = vpack.c.b16 %v446, %v445
  %v523 = vpack.c.b16 %v448, %v447
  %v524 = vpack.c.b16 %v450, %v449
  %v525 = vpack.c.b16 %v452, %v451
  %v526 = vpack.c.b16 %v454, %v453
  %v527 = vpack.c.b16 %v456, %v455
  %v528 = vpack.c.b16 %v458, %v457
  %v529 = vpack.c.b16 %v460, %v459
  %v530 = vpack.c.b16 %v462, %v461
  %v531 = vpack.c.b16 %v464, %v463
  %v532 = vpack.c.b16 %v466, %v465
  %v533 = vpack.c.b16 %v468, %v467
  %v534 = vpack.c.b16 %v470, %v469
  %v535 = vpack.c.b16 %v472, %v471
  %v536 = vpack.c.b16 %v474, %v473
  %v537 = vpack.c.b16 %v476, %v475
  %v538 = vpack.c.b16 %v478, %v477
  %v539 = vpack.c.b16 %v480, %v479
  %v540 = vpack.c.b16 %v482, %v481
  %v541 = vpack.c.b16 %v484, %v483
  %v542 = vpack.c.b16 %v486, %v485
  %v543 = vpack.c.b16 %v488, %v487
  %v544 = vpack.c.b16 %v490, %v489
  %v545 = vpack.c.b16 %v492, %v491
  %v546 = vpack.c.b16 %v494, %v493
  %v547 = vpack.c.b16 %v496, %v495
  %v548 = vpack.c.b16 %v498, %v497
  %v549 = vpack.c.b16 %v500, %v499
  %v550 = vpack.c.b16 %v502, %v501
  %v551 = vpack.c.b16 %v504, %v503
  %v552 = vpack.c.b16 %v506, %v505
  %v553 = vpack.c.b16 %v508, %v507
  %v554 = vpack.c.b16 %v510, %v509
  %v555 = vpack.c.b16 %v512, %v511
  %v556 = vpack.c.b16 %v514, %v513
  %v557 = vpack.c.b16 %v516, %v515
  %v558 = vpack.c.b16 %v518, %v517
  %v615 = vunpack.c.l.b16 %v343
  %v616 = vunpack.c.l.b16 %v344
  %v617 = vunpack.c.l.b16 %v345
  %v618 = vunpack.c.l.b16 %v346
  %v619 = vunpack.c.l.b16 %v347
  %v620 = vunpack.c.l.b16 %v348
  %v621 = vunpack.c.l.b16 %v349
  %v622 = vunpack.c.l.b16 %v350
  %v623 = vunpack.c.l.b16 %v351
  %v624 = vunpack.c.l.b16 %v352
  %v625 = vunpack.c.l.b16 %v353
  %v626 = vunpack.c.l.b16 %v354
  %v627 = vunpack.c.l.b16 %v355
  %v628 = vunpack.c.l.b16 %v356
  %v629 = vunpack.c.l.b16 %v357
  %v630 = vunpack.c.l.b16 %v358
  %v631 = vpack.c.b16 %v616, %v615
  %v632 = vpack.c.b16 %v618, %v617
  %v633 = vpack.c.b16 %v620, %v619
  %v634 = vpack.c.b16 %v622, %v621
  %v635 = vpack.c.b16 %v624, %v623
  %v636 = vpack.c.b16 %v626, %v625
  %v637 = vpack.c.b16 %v628, %v627
  %v638 = vpack.c.b16 %v630, %v629
  %647 = vmatpush.bf16.msra.mxu0 %v638
  %648 = vmatpush.bf16.msra.mxu0 %v637
  %649 = vmatpush.bf16.msra.mxu0 %v636
  %650 = vmatpush.bf16.msra.mxu0 %v635
  %651 = vmatpush.bf16.msra.mxu0 %v634
  %652 = vmatpush.bf16.msra.mxu0 %v633
  %653 = vmatpush.bf16.msra.mxu0 %v632
  %654 = vmatpush.bf16.msra.mxu0 %v631
  %655 = vmatmul.bf16.gmra.mxu0 %v519
  %v656 = vpop.f32.mrf.mxu0
  %v657 = vadd.f32 0.0, %v656
  %v658 = vpop.f32.mrf.mxu0
  %v659 = vadd.f32 0.0, %v658
  %660 = vmatmul.bf16.gmra.mxu0 %v520
  %v661 = vpop.f32.mrf.mxu0
  %v662 = vadd.f32 0.0, %v661
  %v663 = vpop.f32.mrf.mxu0
  %v664 = vadd.f32 0.0, %v663
  %665 = vmatmul.bf16.gmra.mxu0 %v521
  %v666 = vpop.f32.mrf.mxu0
  %v667 = vadd.f32 0.0, %v666
  %v668 = vpop.f32.mrf.mxu0
  %v669 = vadd.f32 0.0, %v668
  %670 = vmatmul.bf16.gmra.mxu0 %v522
  %v671 = vpop.f32.mrf.mxu0
  %v672 = vadd.f32 0.0, %v671
  %v673 = vpop.f32.mrf.mxu0
  %v674 = vadd.f32 0.0, %v673
  %675 = vmatmul.bf16.gmra.mxu0 %v523
  %v676 = vpop.f32.mrf.mxu0
  %v677 = vadd.f32 0.0, %v676
  %v678 = vpop.f32.mrf.mxu0
  %v679 = vadd.f32 0.0, %v678
  %680 = vmatmul.bf16.gmra.mxu0 %v524
  %v681 = vpop.f32.mrf.mxu0
  %v682 = vadd.f32 0.0, %v681
  %v683 = vpop.f32.mrf.mxu0
  %v684 = vadd.f32 0.0, %v683
  %685 = vmatmul.bf16.gmra.mxu0 %v525
  %v686 = vpop.f32.mrf.mxu0
  %v687 = vadd.f32 0.0, %v686
  %v688 = vpop.f32.mrf.mxu0
  %v689 = vadd.f32 0.0, %v688
  %690 = vmatmul.bf16.gmra.mxu0 %v526
  %v691 = vpop.f32.mrf.mxu0
  %v692 = vadd.f32 0.0, %v691
  %v693 = vpop.f32.mrf.mxu0
  %v694 = vadd.f32 0.0, %v693
  %695 = vmatmul.bf16.gmra.mxu0 %v527
  %v696 = vpop.f32.mrf.mxu0
  %v697 = vadd.f32 0.0, %v696
  %v698 = vpop.f32.mrf.mxu0
  %v699 = vadd.f32 0.0, %v698
  %700 = vmatmul.bf16.gmra.mxu0 %v528
  %v701 = vpop.f32.mrf.mxu0
  %v702 = vadd.f32 0.0, %v701
  %v703 = vpop.f32.mrf.mxu0
  %v704 = vadd.f32 0.0, %v703
  %705 = vmatmul.bf16.gmra.mxu0 %v529
  %v706 = vpop.f32.mrf.mxu0
  %v707 = vadd.f32 0.0, %v706
  %v708 = vpop.f32.mrf.mxu0
  %v709 = vadd.f32 0.0, %v708
  %710 = vmatmul.bf16.gmra.mxu0 %v530
  %v711 = vpop.f32.mrf.mxu0
  %v712 = vadd.f32 0.0, %v711
  %v713 = vpop.f32.mrf.mxu0
  %v714 = vadd.f32 0.0, %v713
  %715 = vmatmul.bf16.gmra.mxu0 %v531
  %v716 = vpop.f32.mrf.mxu0
  %v717 = vadd.f32 0.0, %v716
  %v718 = vpop.f32.mrf.mxu0
  %v719 = vadd.f32 0.0, %v718
  %720 = vmatmul.bf16.gmra.mxu0 %v532
  %v721 = vpop.f32.mrf.mxu0
  %v722 = vadd.f32 0.0, %v721
  %v723 = vpop.f32.mrf.mxu0
  %v724 = vadd.f32 0.0, %v723
  %725 = vmatmul.bf16.gmra.mxu0 %v533
  %v726 = vpop.f32.mrf.mxu0
  %v727 = vadd.f32 0.0, %v726
  %v728 = vpop.f32.mrf.mxu0
  %v729 = vadd.f32 0.0, %v728
  %730 = vmatmul.bf16.gmra.mxu0 %v534
  %v731 = vpop.f32.mrf.mxu0
  %v732 = vadd.f32 0.0, %v731
  %v733 = vpop.f32.mrf.mxu0
  %v734 = vadd.f32 0.0, %v733
  %735 = vmatmul.bf16.gmra.mxu0 %v535
  %v736 = vpop.f32.mrf.mxu0
  %v737 = vadd.f32 0.0, %v736
  %v738 = vpop.f32.mrf.mxu0
  %v739 = vadd.f32 0.0, %v738
  %740 = vmatmul.bf16.gmra.mxu0 %v536
  %v741 = vpop.f32.mrf.mxu0
  %v742 = vadd.f32 0.0, %v741
  %v743 = vpop.f32.mrf.mxu0
  %v744 = vadd.f32 0.0, %v743
  %745 = vmatmul.bf16.gmra.mxu0 %v537
  %v746 = vpop.f32.mrf.mxu0
  %v747 = vadd.f32 0.0, %v746
  %v748 = vpop.f32.mrf.mxu0
  %v749 = vadd.f32 0.0, %v748
  %750 = vmatmul.bf16.gmra.mxu0 %v538
  %v751 = vpop.f32.mrf.mxu0
  %v752 = vadd.f32 0.0, %v751
  %v753 = vpop.f32.mrf.mxu0
  %v754 = vadd.f32 0.0, %v753
  %755 = vmatmul.bf16.gmra.mxu0 %v539
  %v756 = vpop.f32.mrf.mxu0
  %v757 = vadd.f32 0.0, %v756
  %v758 = vpop.f32.mrf.mxu0
  %v759 = vadd.f32 0.0, %v758
  %760 = vmatmul.bf16.gmra.mxu0 %v540
  %v761 = vpop.f32.mrf.mxu0
  %v762 = vadd.f32 0.0, %v761
  %v763 = vpop.f32.mrf.mxu0
  %v764 = vadd.f32 0.0, %v763
  %765 = vmatmul.bf16.gmra.mxu0 %v541
  %v766 = vpop.f32.mrf.mxu0
  %v767 = vadd.f32 0.0, %v766
  %v768 = vpop.f32.mrf.mxu0
  %v769 = vadd.f32 0.0, %v768
  %770 = vmatmul.bf16.gmra.mxu0 %v542
  %v771 = vpop.f32.mrf.mxu0
  %v772 = vadd.f32 0.0, %v771
  %v773 = vpop.f32.mrf.mxu0
  %v774 = vadd.f32 0.0, %v773
  %775 = vmatmul.bf16.gmra.mxu0 %v543
  %v776 = vpop.f32.mrf.mxu0
  %v777 = vadd.f32 0.0, %v776
  %v778 = vpop.f32.mrf.mxu0
  %v779 = vadd.f32 0.0, %v778
  %780 = vmatmul.bf16.gmra.mxu0 %v544
  %v781 = vpop.f32.mrf.mxu0
  %v782 = vadd.f32 0.0, %v781
  %v783 = vpop.f32.mrf.mxu0
  %v784 = vadd.f32 0.0, %v783
  %785 = vmatmul.bf16.gmra.mxu0 %v545
  %v786 = vpop.f32.mrf.mxu0
  %v787 = vadd.f32 0.0, %v786
  %v788 = vpop.f32.mrf.mxu0
  %v789 = vadd.f32 0.0, %v788
  %790 = vmatmul.bf16.gmra.mxu0 %v546
  %v791 = vpop.f32.mrf.mxu0
  %v792 = vadd.f32 0.0, %v791
  %v793 = vpop.f32.mrf.mxu0
  %v794 = vadd.f32 0.0, %v793
  %795 = vmatmul.bf16.gmra.mxu0 %v547
  %v796 = vpop.f32.mrf.mxu0
  %v797 = vadd.f32 0.0, %v796
  %v798 = vpop.f32.mrf.mxu0
  %v799 = vadd.f32 0.0, %v798
  %800 = vmatmul.bf16.gmra.mxu0 %v548
  %v801 = vpop.f32.mrf.mxu0
  %v802 = vadd.f32 0.0, %v801
  %v803 = vpop.f32.mrf.mxu0
  %v804 = vadd.f32 0.0, %v803
  %805 = vmatmul.bf16.gmra.mxu0 %v549
  %v806 = vpop.f32.mrf.mxu0
  %v807 = vadd.f32 0.0, %v806
  %v808 = vpop.f32.mrf.mxu0
  %v809 = vadd.f32 0.0, %v808
  %810 = vmatmul.bf16.gmra.mxu0 %v550
  %v811 = vpop.f32.mrf.mxu0
  %v812 = vadd.f32 0.0, %v811
  %v813 = vpop.f32.mrf.mxu0
  %v814 = vadd.f32 0.0, %v813
  %815 = vmatmul.bf16.gmra.mxu0 %v551
  %v816 = vpop.f32.mrf.mxu0
  %v817 = vadd.f32 0.0, %v816
  %v818 = vpop.f32.mrf.mxu0
  %v819 = vadd.f32 0.0, %v818
  %820 = vmatmul.bf16.gmra.mxu0 %v552
  %v821 = vpop.f32.mrf.mxu0
  %v822 = vadd.f32 0.0, %v821
  %v823 = vpop.f32.mrf.mxu0
  %v824 = vadd.f32 0.0, %v823
  %825 = vmatmul.bf16.gmra.mxu0 %v553
  %v826 = vpop.f32.mrf.mxu0
  %v827 = vadd.f32 0.0, %v826
  %v828 = vpop.f32.mrf.mxu0
  %v829 = vadd.f32 0.0, %v828
  %830 = vmatmul.bf16.gmra.mxu0 %v554
  %v831 = vpop.f32.mrf.mxu0
  %v832 = vadd.f32 0.0, %v831
  %v833 = vpop.f32.mrf.mxu0
  %v834 = vadd.f32 0.0, %v833
  %835 = vmatmul.bf16.gmra.mxu0 %v555
  %v836 = vpop.f32.mrf.mxu0
  %v837 = vadd.f32 0.0, %v836
  %v838 = vpop.f32.mrf.mxu0
  %v839 = vadd.f32 0.0, %v838
  %840 = vmatmul.bf16.gmra.mxu0 %v556
  %v841 = vpop.f32.mrf.mxu0
  %v842 = vadd.f32 0.0, %v841
  %v843 = vpop.f32.mrf.mxu0
  %v844 = vadd.f32 0.0, %v843
  %845 = vmatmul.bf16.gmra.mxu0 %v557
  %v846 = vpop.f32.mrf.mxu0
  %v847 = vadd.f32 0.0, %v846
  %v848 = vpop.f32.mrf.mxu0
  %v849 = vadd.f32 0.0, %v848
  %850 = vmatmul.bf16.gmra.mxu0 %v558
  %v851 = vpop.f32.mrf.mxu0
  %v852 = vadd.f32 0.0, %v851
  %v853 = vpop.f32.mrf.mxu0
  %v854 = vadd.f32 0.0, %v853
  %855 = vdwg.mxu0
  %v856 = vpack.c.bf16 %v659, %v657
  %v857 = vpack.c.bf16 %v664, %v662
  %v858 = vpack.c.bf16 %v669, %v667
  %v859 = vpack.c.bf16 %v674, %v672
  %v860 = vpack.c.bf16 %v679, %v677
  %v861 = vpack.c.bf16 %v684, %v682
  %v862 = vpack.c.bf16 %v689, %v687
  %v863 = vpack.c.bf16 %v694, %v692
  %v864 = vpack.c.bf16 %v699, %v697
  %v865 = vpack.c.bf16 %v704, %v702
  %v866 = vpack.c.bf16 %v709, %v707
  %v867 = vpack.c.bf16 %v714, %v712
  %v868 = vpack.c.bf16 %v719, %v717
  %v869 = vpack.c.bf16 %v724, %v722
  %v870 = vpack.c.bf16 %v729, %v727
  %v871 = vpack.c.bf16 %v734, %v732
  %v872 = vpack.c.bf16 %v739, %v737
  %v873 = vpack.c.bf16 %v744, %v742
  %v874 = vpack.c.bf16 %v749, %v747
  %v875 = vpack.c.bf16 %v754, %v752
  %v876 = vpack.c.bf16 %v759, %v757
  %v877 = vpack.c.bf16 %v764, %v762
  %v878 = vpack.c.bf16 %v769, %v767
  %v879 = vpack.c.bf16 %v774, %v772
  %v880 = vpack.c.bf16 %v779, %v777
  %v881 = vpack.c.bf16 %v784, %v782
  %v882 = vpack.c.bf16 %v789, %v787
  %v883 = vpack.c.bf16 %v794, %v792
  %v884 = vpack.c.bf16 %v799, %v797
  %v885 = vpack.c.bf16 %v804, %v802
  %v886 = vpack.c.bf16 %v809, %v807
  %v887 = vpack.c.bf16 %v814, %v812
  %v888 = vpack.c.bf16 %v819, %v817
  %v889 = vpack.c.bf16 %v824, %v822
  %v890 = vpack.c.bf16 %v829, %v827
  %v891 = vpack.c.bf16 %v834, %v832
  %v892 = vpack.c.bf16 %v839, %v837
  %v893 = vpack.c.bf16 %v844, %v842
  %v894 = vpack.c.bf16 %v849, %v847
  %v895 = vpack.c.bf16 %v854, %v852
  %v896 = vld [vmem:[%s3] sm:$0x1]
  %v898 = vperm.slane %v896, 0
  %v1140 = vunpack.c.l.b16 %v23
  %v1141 = vunpack.c.h.b16 %v23
  %v1142 = vunpack.c.l.b16 %v24
  %v1143 = vunpack.c.h.b16 %v24
  %v1144 = vunpack.c.l.b16 %v25
  %v1145 = vunpack.c.l.b16 %v26
  %v1146 = vunpack.c.h.b16 %v26
  %v1147 = vunpack.c.l.b16 %v27
  %v1148 = vunpack.c.h.b16 %v27
  %v1149 = vunpack.c.l.b16 %v28
  %v1150 = vunpack.c.l.b16 %v29
  %v1151 = vunpack.c.h.b16 %v29
  %v1152 = vunpack.c.l.b16 %v30
  %v1153 = vunpack.c.h.b16 %v30
  %v1154 = vunpack.c.l.b16 %v31
  %v1155 = vunpack.c.l.b16 %v32
  %v1156 = vunpack.c.h.b16 %v32
  %v1157 = vunpack.c.l.b16 %v33
  %v1158 = vunpack.c.h.b16 %v33
  %v1159 = vunpack.c.l.b16 %v34
  %v1160 = vunpack.c.l.b16 %v35
  %v1161 = vunpack.c.h.b16 %v35
  %v1162 = vunpack.c.l.b16 %v36
  %v1163 = vunpack.c.h.b16 %v36
  %v1164 = vunpack.c.l.b16 %v37
  %v1165 = vunpack.c.l.b16 %v38
  %v1166 = vunpack.c.h.b16 %v38
  %v1167 = vunpack.c.l.b16 %v39
  %v1168 = vunpack.c.h.b16 %v39
  %v1169 = vunpack.c.l.b16 %v40
  %v1170 = vunpack.c.l.b16 %v41
  %v1171 = vunpack.c.h.b16 %v41
  %v1172 = vunpack.c.l.b16 %v42
  %v1173 = vunpack.c.h.b16 %v42
  %v1174 = vunpack.c.l.b16 %v43
  %v1175 = vunpack.c.l.b16 %v44
  %v1176 = vunpack.c.h.b16 %v44
  %v1177 = vunpack.c.l.b16 %v45
  %v1178 = vunpack.c.h.b16 %v45
  %v1179 = vunpack.c.l.b16 %v46
  %v1180 = vunpack.c.l.b16 %v47
  %v1181 = vunpack.c.h.b16 %v47
  %v1182 = vunpack.c.l.b16 %v48
  %v1183 = vunpack.c.h.b16 %v48
  %v1184 = vunpack.c.l.b16 %v49
  %v1185 = vunpack.c.l.b16 %v50
  %v1186 = vunpack.c.h.b16 %v50
  %v1187 = vunpack.c.l.b16 %v51
  %v1188 = vunpack.c.h.b16 %v51
  %v1189 = vunpack.c.l.b16 %v52
  %v1190 = vunpack.c.l.b16 %v53
  %v1191 = vunpack.c.h.b16 %v53
  %v1192 = vunpack.c.l.b16 %v54
  %v1193 = vunpack.c.h.b16 %v54
  %v1194 = vunpack.c.l.b16 %v55
  %v1195 = vunpack.c.l.b16 %v56
  %v1196 = vunpack.c.h.b16 %v56
  %v1197 = vunpack.c.l.b16 %v57
  %v1198 = vunpack.c.h.b16 %v57
  %v1199 = vunpack.c.l.b16 %v58
  %v1200 = vunpack.c.l.b16 %v59
  %v1201 = vunpack.c.h.b16 %v59
  %v1202 = vunpack.c.l.b16 %v60
  %v1203 = vunpack.c.h.b16 %v60
  %v1204 = vunpack.c.l.b16 %v61
  %v1205 = vunpack.c.l.b16 %v62
  %v1206 = vunpack.c.h.b16 %v62
  %v1207 = vunpack.c.l.b16 %v63
  %v1208 = vunpack.c.h.b16 %v63
  %v1209 = vunpack.c.l.b16 %v64
  %v1210 = vunpack.c.l.b16 %v65
  %v1211 = vunpack.c.h.b16 %v65
  %v1212 = vunpack.c.l.b16 %v66
  %v1213 = vunpack.c.h.b16 %v66
  %v1214 = vunpack.c.l.b16 %v67
  %v1215 = vunpack.c.l.b16 %v68
  %v1216 = vunpack.c.h.b16 %v68
  %v1217 = vunpack.c.l.b16 %v69
  %v1218 = vunpack.c.h.b16 %v69
  %v1219 = vunpack.c.l.b16 %v70
  %v1220 = vunpack.c.l.b16 %v71
  %v1221 = vunpack.c.h.b16 %v71
  %v1222 = vunpack.c.l.b16 %v72
  %v1223 = vunpack.c.h.b16 %v72
  %v1224 = vunpack.c.l.b16 %v73
  %v1225 = vunpack.c.l.b16 %v74
  %v1226 = vunpack.c.h.b16 %v74
  %v1227 = vunpack.c.l.b16 %v75
  %v1228 = vunpack.c.h.b16 %v75
  %v1229 = vunpack.c.l.b16 %v76
  %v1230 = vunpack.c.l.b16 %v77
  %v1231 = vunpack.c.h.b16 %v77
  %v1232 = vunpack.c.l.b16 %v78
  %v1233 = vunpack.c.h.b16 %v78
  %v1234 = vunpack.c.l.b16 %v79
  %v1235 = vunpack.c.l.b16 %v80
  %v1236 = vunpack.c.h.b16 %v80
  %v1237 = vunpack.c.l.b16 %v81
  %v1238 = vunpack.c.h.b16 %v81
  %v1239 = vunpack.c.l.b16 %v82
  %v1240 = vunpack.c.l.b16 %v83
  %v1241 = vunpack.c.h.b16 %v83
  %v1242 = vunpack.c.l.b16 %v84
  %v1243 = vunpack.c.h.b16 %v84
  %v1244 = vunpack.c.l.b16 %v85
  %v1245 = vunpack.c.l.b16 %v86
  %v1246 = vunpack.c.h.b16 %v86
  %v1247 = vunpack.c.l.b16 %v87
  %v1248 = vunpack.c.h.b16 %v87
  %v1249 = vunpack.c.l.b16 %v88
  %v1250 = vunpack.c.l.b16 %v89
  %v1251 = vunpack.c.h.b16 %v89
  %v1252 = vunpack.c.l.b16 %v90
  %v1253 = vunpack.c.h.b16 %v90
  %v1254 = vunpack.c.l.b16 %v91
  %v1255 = vunpack.c.l.b16 %v92
  %v1256 = vunpack.c.h.b16 %v92
  %v1257 = vunpack.c.l.b16 %v93
  %v1258 = vunpack.c.h.b16 %v93
  %v1259 = vunpack.c.l.b16 %v94
  %v1260 = vunpack.c.l.b16 %v95
  %v1261 = vunpack.c.h.b16 %v95
  %v1262 = vunpack.c.l.b16 %v96
  %v1263 = vunpack.c.h.b16 %v96
  %v1264 = vunpack.c.l.b16 %v97
  %v1265 = vunpack.c.l.b16 %v98
  %v1266 = vunpack.c.h.b16 %v98
  %v1267 = vunpack.c.l.b16 %v99
  %v1268 = vunpack.c.h.b16 %v99
  %v1269 = vunpack.c.l.b16 %v100
  %v1270 = vunpack.c.l.b16 %v101
  %v1271 = vunpack.c.h.b16 %v101
  %v1272 = vunpack.c.l.b16 %v102
  %v1273 = vunpack.c.h.b16 %v102
  %v1274 = vunpack.c.l.b16 %v103
  %v1275 = vunpack.c.l.b16 %v104
  %v1276 = vunpack.c.h.b16 %v104
  %v1277 = vunpack.c.l.b16 %v105
  %v1278 = vunpack.c.h.b16 %v105
  %v1279 = vunpack.c.l.b16 %v106
  %v1280 = vunpack.c.l.b16 %v107
  %v1281 = vunpack.c.h.b16 %v107
  %v1282 = vunpack.c.l.b16 %v108
  %v1283 = vunpack.c.h.b16 %v108
  %v1284 = vunpack.c.l.b16 %v109
  %v1285 = vunpack.c.l.b16 %v110
  %v1286 = vunpack.c.h.b16 %v110
  %v1287 = vunpack.c.l.b16 %v111
  %v1288 = vunpack.c.h.b16 %v111
  %v1289 = vunpack.c.l.b16 %v112
  %v1290 = vunpack.c.l.b16 %v113
  %v1291 = vunpack.c.h.b16 %v113
  %v1292 = vunpack.c.l.b16 %v114
  %v1293 = vunpack.c.h.b16 %v114
  %v1294 = vunpack.c.l.b16 %v115
  %v1295 = vunpack.c.l.b16 %v116
  %v1296 = vunpack.c.h.b16 %v116
  %v1297 = vunpack.c.l.b16 %v117
  %v1298 = vunpack.c.h.b16 %v117
  %v1299 = vunpack.c.l.b16 %v118
  %v1300 = vunpack.c.l.b16 %v119
  %v1301 = vunpack.c.h.b16 %v119
  %v1302 = vunpack.c.l.b16 %v120
  %v1303 = vunpack.c.h.b16 %v120
  %v1304 = vunpack.c.l.b16 %v121
  %v1305 = vunpack.c.l.b16 %v122
  %v1306 = vunpack.c.h.b16 %v122
  %v1307 = vunpack.c.l.b16 %v123
  %v1308 = vunpack.c.h.b16 %v123
  %v1309 = vunpack.c.l.b16 %v124
  %v1310 = vunpack.c.l.b16 %v125
  %v1311 = vunpack.c.h.b16 %v125
  %v1312 = vunpack.c.l.b16 %v126
  %v1313 = vunpack.c.h.b16 %v126
  %v1314 = vunpack.c.l.b16 %v127
  %v1315 = vunpack.c.l.b16 %v128
  %v1316 = vunpack.c.h.b16 %v128
  %v1317 = vunpack.c.l.b16 %v129
  %v1318 = vunpack.c.h.b16 %v129
  %v1319 = vunpack.c.l.b16 %v130
  %v1320 = vunpack.c.l.b16 %v131
  %v1321 = vunpack.c.h.b16 %v131
  %v1322 = vunpack.c.l.b16 %v132
  %v1323 = vunpack.c.h.b16 %v132
  %v1324 = vunpack.c.l.b16 %v133
  %v1325 = vunpack.c.l.b16 %v134
  %v1326 = vunpack.c.h.b16 %v134
  %v1327 = vunpack.c.l.b16 %v135
  %v1328 = vunpack.c.h.b16 %v135
  %v1329 = vunpack.c.l.b16 %v136
  %v1330 = vunpack.c.l.b16 %v137
  %v1331 = vunpack.c.h.b16 %v137
  %v1332 = vunpack.c.l.b16 %v138
  %v1333 = vunpack.c.h.b16 %v138
  %v1334 = vunpack.c.l.b16 %v139
  %v1335 = vunpack.c.l.b16 %v140
  %v1336 = vunpack.c.h.b16 %v140
  %v1337 = vunpack.c.l.b16 %v141
  %v1338 = vunpack.c.h.b16 %v141
  %v1339 = vunpack.c.l.b16 %v142
  %v1340 = vunpack.c.l.b16 %v143
  %v1341 = vunpack.c.h.b16 %v143
  %v1342 = vunpack.c.l.b16 %v144
  %v1343 = vunpack.c.h.b16 %v144
  %v1344 = vunpack.c.l.b16 %v145
  %v1345 = vunpack.c.l.b16 %v146
  %v1346 = vunpack.c.h.b16 %v146
  %v1347 = vunpack.c.l.b16 %v147
  %v1348 = vunpack.c.h.b16 %v147
  %v1349 = vunpack.c.l.b16 %v148
  %v1350 = vunpack.c.l.b16 %v149
  %v1351 = vunpack.c.h.b16 %v149
  %v1352 = vunpack.c.l.b16 %v150
  %v1353 = vunpack.c.h.b16 %v150
  %v1354 = vunpack.c.l.b16 %v151
  %v1355 = vunpack.c.l.b16 %v152
  %v1356 = vunpack.c.h.b16 %v152
  %v1357 = vunpack.c.l.b16 %v153
  %v1358 = vunpack.c.h.b16 %v153
  %v1359 = vunpack.c.l.b16 %v154
  %v1360 = vunpack.c.l.b16 %v155
  %v1361 = vunpack.c.h.b16 %v155
  %v1362 = vunpack.c.l.b16 %v156
  %v1363 = vunpack.c.h.b16 %v156
  %v1364 = vunpack.c.l.b16 %v157
  %v1365 = vunpack.c.l.b16 %v158
  %v1366 = vunpack.c.h.b16 %v158
  %v1367 = vunpack.c.l.b16 %v159
  %v1368 = vunpack.c.h.b16 %v159
  %v1369 = vunpack.c.l.b16 %v160
  %v1370 = vunpack.c.l.b16 %v161
  %v1371 = vunpack.c.h.b16 %v161
  %v1372 = vunpack.c.l.b16 %v162
  %v1373 = vunpack.c.h.b16 %v162
  %v1374 = vunpack.c.l.b16 %v163
  %v1375 = vunpack.c.l.b16 %v164
  %v1376 = vunpack.c.h.b16 %v164
  %v1377 = vunpack.c.l.b16 %v165
  %v1378 = vunpack.c.h.b16 %v165
  %v1379 = vunpack.c.l.b16 %v166
  %v1380 = vunpack.c.l.b16 %v167
  %v1381 = vunpack.c.h.b16 %v167
  %v1382 = vunpack.c.l.b16 %v168
  %v1383 = vunpack.c.h.b16 %v168
  %v1384 = vunpack.c.l.b16 %v169
  %v1385 = vunpack.c.l.b16 %v170
  %v1386 = vunpack.c.h.b16 %v170
  %v1387 = vunpack.c.l.b16 %v171
  %v1388 = vunpack.c.h.b16 %v171
  %v1389 = vunpack.c.l.b16 %v172
  %v1390 = vunpack.c.l.b16 %v173
  %v1391 = vunpack.c.h.b16 %v173
  %v1392 = vunpack.c.l.b16 %v174
  %v1393 = vunpack.c.h.b16 %v174
  %v1394 = vunpack.c.l.b16 %v175
  %v1395 = vunpack.c.l.b16 %v176
  %v1396 = vunpack.c.h.b16 %v176
  %v1397 = vunpack.c.l.b16 %v177
  %v1398 = vunpack.c.h.b16 %v177
  %v1399 = vunpack.c.l.b16 %v178
  %v1400 = vunpack.c.l.b16 %v179
  %v1401 = vunpack.c.h.b16 %v179
  %v1402 = vunpack.c.l.b16 %v180
  %v1403 = vunpack.c.h.b16 %v180
  %v1404 = vunpack.c.l.b16 %v181
  %v1405 = vunpack.c.l.b16 %v182
  %v1406 = vunpack.c.h.b16 %v182
  %v1407 = vunpack.c.l.b16 %v183
  %v1408 = vunpack.c.h.b16 %v183
  %v1409 = vunpack.c.l.b16 %v184
  %v1410 = vunpack.c.l.b16 %v185
  %v1411 = vunpack.c.h.b16 %v185
  %v1412 = vunpack.c.l.b16 %v186
  %v1413 = vunpack.c.h.b16 %v186
  %v1414 = vunpack.c.l.b16 %v187
  %v1415 = vunpack.c.l.b16 %v188
  %v1416 = vunpack.c.h.b16 %v188
  %v1417 = vunpack.c.l.b16 %v189
  %v1418 = vunpack.c.h.b16 %v189
  %v1419 = vunpack.c.l.b16 %v190
  %v1420 = vunpack.c.l.b16 %v191
  %v1421 = vunpack.c.h.b16 %v191
  %v1422 = vunpack.c.l.b16 %v192
  %v1423 = vunpack.c.h.b16 %v192
  %v1424 = vunpack.c.l.b16 %v193
  %v1425 = vunpack.c.l.b16 %v194
  %v1426 = vunpack.c.h.b16 %v194
  %v1427 = vunpack.c.l.b16 %v195
  %v1428 = vunpack.c.h.b16 %v195
  %v1429 = vunpack.c.l.b16 %v196
  %v1430 = vunpack.c.l.b16 %v197
  %v1431 = vunpack.c.h.b16 %v197
  %v1432 = vunpack.c.l.b16 %v198
  %v1433 = vunpack.c.h.b16 %v198
  %v1434 = vunpack.c.l.b16 %v199
  %v1435 = vunpack.c.l.b16 %v200
  %v1436 = vunpack.c.h.b16 %v200
  %v1437 = vunpack.c.l.b16 %v201
  %v1438 = vunpack.c.h.b16 %v201
  %v1439 = vunpack.c.l.b16 %v202
  %v1440 = vunpack.c.l.b16 %v203
  %v1441 = vunpack.c.h.b16 %v203
  %v1442 = vunpack.c.l.b16 %v204
  %v1443 = vunpack.c.h.b16 %v204
  %v1444 = vunpack.c.l.b16 %v205
  %v1445 = vunpack.c.l.b16 %v206
  %v1446 = vunpack.c.h.b16 %v206
  %v1447 = vunpack.c.l.b16 %v207
  %v1448 = vunpack.c.h.b16 %v207
  %v1449 = vunpack.c.l.b16 %v208
  %v1450 = vunpack.c.l.b16 %v209
  %v1451 = vunpack.c.h.b16 %v209
  %v1452 = vunpack.c.l.b16 %v210
  %v1453 = vunpack.c.h.b16 %v210
  %v1454 = vunpack.c.l.b16 %v211
  %v1455 = vunpack.c.l.b16 %v212
  %v1456 = vunpack.c.h.b16 %v212
  %v1457 = vunpack.c.l.b16 %v213
  %v1458 = vunpack.c.h.b16 %v213
  %v1459 = vunpack.c.l.b16 %v214
  %v1460 = vunpack.c.l.b16 %v215
  %v1461 = vunpack.c.h.b16 %v215
  %v1462 = vunpack.c.l.b16 %v216
  %v1463 = vunpack.c.h.b16 %v216
  %v1464 = vunpack.c.l.b16 %v217
  %v1465 = vunpack.c.l.b16 %v218
  %v1466 = vunpack.c.h.b16 %v218
  %v1467 = vunpack.c.l.b16 %v219
  %v1468 = vunpack.c.h.b16 %v219
  %v1469 = vunpack.c.l.b16 %v220
  %v1470 = vunpack.c.l.b16 %v221
  %v1471 = vunpack.c.h.b16 %v221
  %v1472 = vunpack.c.l.b16 %v222
  %v1473 = vunpack.c.h.b16 %v222
  %v1474 = vunpack.c.l.b16 %v223
  %v1475 = vunpack.c.l.b16 %v224
  %v1476 = vunpack.c.h.b16 %v224
  %v1477 = vunpack.c.l.b16 %v225
  %v1478 = vunpack.c.h.b16 %v225
  %v1479 = vunpack.c.l.b16 %v226
  %v1480 = vunpack.c.l.b16 %v227
  %v1481 = vunpack.c.h.b16 %v227
  %v1482 = vunpack.c.l.b16 %v228
  %v1483 = vunpack.c.h.b16 %v228
  %v1484 = vunpack.c.l.b16 %v229
  %v1485 = vunpack.c.l.b16 %v230
  %v1486 = vunpack.c.h.b16 %v230
  %v1487 = vunpack.c.l.b16 %v231
  %v1488 = vunpack.c.h.b16 %v231
  %v1489 = vunpack.c.l.b16 %v232
  %v1490 = vunpack.c.l.b16 %v233
  %v1491 = vunpack.c.h.b16 %v233
  %v1492 = vunpack.c.l.b16 %v234
  %v1493 = vunpack.c.h.b16 %v234
  %v1494 = vunpack.c.l.b16 %v235
  %v1495 = vunpack.c.l.b16 %v236
  %v1496 = vunpack.c.h.b16 %v236
  %v1497 = vunpack.c.l.b16 %v237
  %v1498 = vunpack.c.h.b16 %v237
  %v1499 = vunpack.c.l.b16 %v238
  %v1500 = vunpack.c.l.b16 %v239
  %v1501 = vunpack.c.h.b16 %v239
  %v1502 = vunpack.c.l.b16 %v240
  %v1503 = vunpack.c.h.b16 %v240
  %v1504 = vunpack.c.l.b16 %v241
  %v1505 = vunpack.c.l.b16 %v242
  %v1506 = vunpack.c.h.b16 %v242
  %v1507 = vunpack.c.l.b16 %v243
  %v1508 = vunpack.c.h.b16 %v243
  %v1509 = vunpack.c.l.b16 %v244
  %v1510 = vunpack.c.l.b16 %v245
  %v1511 = vunpack.c.h.b16 %v245
  %v1512 = vunpack.c.l.b16 %v246
  %v1513 = vunpack.c.h.b16 %v246
  %v1514 = vunpack.c.l.b16 %v247
  %v1515 = vunpack.c.l.b16 %v248
  %v1516 = vunpack.c.h.b16 %v248
  %v1517 = vunpack.c.l.b16 %v249
  %v1518 = vunpack.c.h.b16 %v249
  %v1519 = vunpack.c.l.b16 %v250
  %v1520 = vunpack.c.l.b16 %v251
  %v1521 = vunpack.c.h.b16 %v251
  %v1522 = vunpack.c.l.b16 %v252
  %v1523 = vunpack.c.h.b16 %v252
  %v1524 = vunpack.c.l.b16 %v253
  %v1525 = vunpack.c.l.b16 %v254
  %v1526 = vunpack.c.h.b16 %v254
  %v1527 = vunpack.c.l.b16 %v255
  %v1528 = vunpack.c.h.b16 %v255
  %v1529 = vunpack.c.l.b16 %v256
  %v1530 = vunpack.c.l.b16 %v257
  %v1531 = vunpack.c.h.b16 %v257
  %v1532 = vunpack.c.l.b16 %v258
  %v1533 = vunpack.c.h.b16 %v258
  %v1534 = vunpack.c.l.b16 %v259
  %v1535 = vunpack.c.l.b16 %v260
  %v1536 = vunpack.c.h.b16 %v260
  %v1537 = vunpack.c.l.b16 %v261
  %v1538 = vunpack.c.h.b16 %v261
  %v1539 = vunpack.c.l.b16 %v262
  %v1540 = vpack.c.b16 %v1145, %v1140
  %v1541 = vpack.c.b16 %v1146, %v1141
  %v1542 = vpack.c.b16 %v1147, %v1142
  %v1543 = vpack.c.b16 %v1148, %v1143
  %v1544 = vpack.c.b16 %v1149, %v1144
  %v1545 = vpack.c.b16 %v1155, %v1150
  %v1546 = vpack.c.b16 %v1156, %v1151
  %v1547 = vpack.c.b16 %v1157, %v1152
  %v1548 = vpack.c.b16 %v1158, %v1153
  %v1549 = vpack.c.b16 %v1159, %v1154
  %v1550 = vpack.c.b16 %v1165, %v1160
  %v1551 = vpack.c.b16 %v1166, %v1161
  %v1552 = vpack.c.b16 %v1167, %v1162
  %v1553 = vpack.c.b16 %v1168, %v1163
  %v1554 = vpack.c.b16 %v1169, %v1164
  %v1555 = vpack.c.b16 %v1175, %v1170
  %v1556 = vpack.c.b16 %v1176, %v1171
  %v1557 = vpack.c.b16 %v1177, %v1172
  %v1558 = vpack.c.b16 %v1178, %v1173
  %v1559 = vpack.c.b16 %v1179, %v1174
  %v1560 = vpack.c.b16 %v1185, %v1180
  %v1561 = vpack.c.b16 %v1186, %v1181
  %v1562 = vpack.c.b16 %v1187, %v1182
  %v1563 = vpack.c.b16 %v1188, %v1183
  %v1564 = vpack.c.b16 %v1189, %v1184
  %v1565 = vpack.c.b16 %v1195, %v1190
  %v1566 = vpack.c.b16 %v1196, %v1191
  %v1567 = vpack.c.b16 %v1197, %v1192
  %v1568 = vpack.c.b16 %v1198, %v1193
  %v1569 = vpack.c.b16 %v1199, %v1194
  %v1570 = vpack.c.b16 %v1205, %v1200
  %v1571 = vpack.c.b16 %v1206, %v1201
  %v1572 = vpack.c.b16 %v1207, %v1202
  %v1573 = vpack.c.b16 %v1208, %v1203
  %v1574 = vpack.c.b16 %v1209, %v1204
  %v1575 = vpack.c.b16 %v1215, %v1210
  %v1576 = vpack.c.b16 %v1216, %v1211
  %v1577 = vpack.c.b16 %v1217, %v1212
  %v1578 = vpack.c.b16 %v1218, %v1213
  %v1579 = vpack.c.b16 %v1219, %v1214
  %v1580 = vpack.c.b16 %v1225, %v1220
  %v1581 = vpack.c.b16 %v1226, %v1221
  %v1582 = vpack.c.b16 %v1227, %v1222
  %v1583 = vpack.c.b16 %v1228, %v1223
  %v1584 = vpack.c.b16 %v1229, %v1224
  %v1585 = vpack.c.b16 %v1235, %v1230
  %v1586 = vpack.c.b16 %v1236, %v1231
  %v1587 = vpack.c.b16 %v1237, %v1232
  %v1588 = vpack.c.b16 %v1238, %v1233
  %v1589 = vpack.c.b16 %v1239, %v1234
  %v1590 = vpack.c.b16 %v1245, %v1240
  %v1591 = vpack.c.b16 %v1246, %v1241
  %v1592 = vpack.c.b16 %v1247, %v1242
  %v1593 = vpack.c.b16 %v1248, %v1243
  %v1594 = vpack.c.b16 %v1249, %v1244
  %v1595 = vpack.c.b16 %v1255, %v1250
  %v1596 = vpack.c.b16 %v1256, %v1251
  %v1597 = vpack.c.b16 %v1257, %v1252
  %v1598 = vpack.c.b16 %v1258, %v1253
  %v1599 = vpack.c.b16 %v1259, %v1254
  %v1600 = vpack.c.b16 %v1265, %v1260
  %v1601 = vpack.c.b16 %v1266, %v1261
  %v1602 = vpack.c.b16 %v1267, %v1262
  %v1603 = vpack.c.b16 %v1268, %v1263
  %v1604 = vpack.c.b16 %v1269, %v1264
  %v1605 = vpack.c.b16 %v1275, %v1270
  %v1606 = vpack.c.b16 %v1276, %v1271
  %v1607 = vpack.c.b16 %v1277, %v1272
  %v1608 = vpack.c.b16 %v1278, %v1273
  %v1609 = vpack.c.b16 %v1279, %v1274
  %v1610 = vpack.c.b16 %v1285, %v1280
  %v1611 = vpack.c.b16 %v1286, %v1281
  %v1612 = vpack.c.b16 %v1287, %v1282
  %v1613 = vpack.c.b16 %v1288, %v1283
  %v1614 = vpack.c.b16 %v1289, %v1284
  %v1615 = vpack.c.b16 %v1295, %v1290
  %v1616 = vpack.c.b16 %v1296, %v1291
  %v1617 = vpack.c.b16 %v1297, %v1292
  %v1618 = vpack.c.b16 %v1298, %v1293
  %v1619 = vpack.c.b16 %v1299, %v1294
  %v1620 = vpack.c.b16 %v1305, %v1300
  %v1621 = vpack.c.b16 %v1306, %v1301
  %v1622 = vpack.c.b16 %v1307, %v1302
  %v1623 = vpack.c.b16 %v1308, %v1303
  %v1624 = vpack.c.b16 %v1309, %v1304
  %v1625 = vpack.c.b16 %v1315, %v1310
  %v1626 = vpack.c.b16 %v1316, %v1311
  %v1627 = vpack.c.b16 %v1317, %v1312
  %v1628 = vpack.c.b16 %v1318, %v1313
  %v1629 = vpack.c.b16 %v1319, %v1314
  %v1630 = vpack.c.b16 %v1325, %v1320
  %v1631 = vpack.c.b16 %v1326, %v1321
  %v1632 = vpack.c.b16 %v1327, %v1322
  %v1633 = vpack.c.b16 %v1328, %v1323
  %v1634 = vpack.c.b16 %v1329, %v1324
  %v1635 = vpack.c.b16 %v1335, %v1330
  %v1636 = vpack.c.b16 %v1336, %v1331
  %v1637 = vpack.c.b16 %v1337, %v1332
  %v1638 = vpack.c.b16 %v1338, %v1333
  %v1639 = vpack.c.b16 %v1339, %v1334
  %v1640 = vpack.c.b16 %v1345, %v1340
  %v1641 = vpack.c.b16 %v1346, %v1341
  %v1642 = vpack.c.b16 %v1347, %v1342
  %v1643 = vpack.c.b16 %v1348, %v1343
  %v1644 = vpack.c.b16 %v1349, %v1344
  %v1645 = vpack.c.b16 %v1355, %v1350
  %v1646 = vpack.c.b16 %v1356, %v1351
  %v1647 = vpack.c.b16 %v1357, %v1352
  %v1648 = vpack.c.b16 %v1358, %v1353
  %v1649 = vpack.c.b16 %v1359, %v1354
  %v1650 = vpack.c.b16 %v1365, %v1360
  %v1651 = vpack.c.b16 %v1366, %v1361
  %v1652 = vpack.c.b16 %v1367, %v1362
  %v1653 = vpack.c.b16 %v1368, %v1363
  %v1654 = vpack.c.b16 %v1369, %v1364
  %v1655 = vpack.c.b16 %v1375, %v1370
  %v1656 = vpack.c.b16 %v1376, %v1371
  %v1657 = vpack.c.b16 %v1377, %v1372
  %v1658 = vpack.c.b16 %v1378, %v1373
  %v1659 = vpack.c.b16 %v1379, %v1374
  %v1660 = vpack.c.b16 %v1385, %v1380
  %v1661 = vpack.c.b16 %v1386, %v1381
  %v1662 = vpack.c.b16 %v1387, %v1382
  %v1663 = vpack.c.b16 %v1388, %v1383
  %v1664 = vpack.c.b16 %v1389, %v1384
  %v1665 = vpack.c.b16 %v1395, %v1390
  %v1666 = vpack.c.b16 %v1396, %v1391
  %v1667 = vpack.c.b16 %v1397, %v1392
  %v1668 = vpack.c.b16 %v1398, %v1393
  %v1669 = vpack.c.b16 %v1399, %v1394
  %v1670 = vpack.c.b16 %v1405, %v1400
  %v1671 = vpack.c.b16 %v1406, %v1401
  %v1672 = vpack.c.b16 %v1407, %v1402
  %v1673 = vpack.c.b16 %v1408, %v1403
  %v1674 = vpack.c.b16 %v1409, %v1404
  %v1675 = vpack.c.b16 %v1415, %v1410
  %v1676 = vpack.c.b16 %v1416, %v1411
  %v1677 = vpack.c.b16 %v1417, %v1412
  %v1678 = vpack.c.b16 %v1418, %v1413
  %v1679 = vpack.c.b16 %v1419, %v1414
  %v1680 = vpack.c.b16 %v1425, %v1420
  %v1681 = vpack.c.b16 %v1426, %v1421
  %v1682 = vpack.c.b16 %v1427, %v1422
  %v1683 = vpack.c.b16 %v1428, %v1423
  %v1684 = vpack.c.b16 %v1429, %v1424
  %v1685 = vpack.c.b16 %v1435, %v1430
  %v1686 = vpack.c.b16 %v1436, %v1431
  %v1687 = vpack.c.b16 %v1437, %v1432
  %v1688 = vpack.c.b16 %v1438, %v1433
  %v1689 = vpack.c.b16 %v1439, %v1434
  %v1690 = vpack.c.b16 %v1445, %v1440
  %v1691 = vpack.c.b16 %v1446, %v1441
  %v1692 = vpack.c.b16 %v1447, %v1442
  %v1693 = vpack.c.b16 %v1448, %v1443
  %v1694 = vpack.c.b16 %v1449, %v1444
  %v1695 = vpack.c.b16 %v1455, %v1450
  %v1696 = vpack.c.b16 %v1456, %v1451
  %v1697 = vpack.c.b16 %v1457, %v1452
  %v1698 = vpack.c.b16 %v1458, %v1453
  %v1699 = vpack.c.b16 %v1459, %v1454
  %v1700 = vpack.c.b16 %v1465, %v1460
  %v1701 = vpack.c.b16 %v1466, %v1461
  %v1702 = vpack.c.b16 %v1467, %v1462
  %v1703 = vpack.c.b16 %v1468, %v1463
  %v1704 = vpack.c.b16 %v1469, %v1464
  %v1705 = vpack.c.b16 %v1475, %v1470
  %v1706 = vpack.c.b16 %v1476, %v1471
  %v1707 = vpack.c.b16 %v1477, %v1472
  %v1708 = vpack.c.b16 %v1478, %v1473
  %v1709 = vpack.c.b16 %v1479, %v1474
  %v1710 = vpack.c.b16 %v1485, %v1480
  %v1711 = vpack.c.b16 %v1486, %v1481
  %v1712 = vpack.c.b16 %v1487, %v1482
  %v1713 = vpack.c.b16 %v1488, %v1483
  %v1714 = vpack.c.b16 %v1489, %v1484
  %v1715 = vpack.c.b16 %v1495, %v1490
  %v1716 = vpack.c.b16 %v1496, %v1491
  %v1717 = vpack.c.b16 %v1497, %v1492
  %v1718 = vpack.c.b16 %v1498, %v1493
  %v1719 = vpack.c.b16 %v1499, %v1494
  %v1720 = vpack.c.b16 %v1505, %v1500
  %v1721 = vpack.c.b16 %v1506, %v1501
  %v1722 = vpack.c.b16 %v1507, %v1502
  %v1723 = vpack.c.b16 %v1508, %v1503
  %v1724 = vpack.c.b16 %v1509, %v1504
  %v1725 = vpack.c.b16 %v1515, %v1510
  %v1726 = vpack.c.b16 %v1516, %v1511
  %v1727 = vpack.c.b16 %v1517, %v1512
  %v1728 = vpack.c.b16 %v1518, %v1513
  %v1729 = vpack.c.b16 %v1519, %v1514
  %v1730 = vpack.c.b16 %v1525, %v1520
  %v1731 = vpack.c.b16 %v1526, %v1521
  %v1732 = vpack.c.b16 %v1527, %v1522
  %v1733 = vpack.c.b16 %v1528, %v1523
  %v1734 = vpack.c.b16 %v1529, %v1524
  %v1735 = vpack.c.b16 %v1535, %v1530
  %v1736 = vpack.c.b16 %v1536, %v1531
  %v1737 = vpack.c.b16 %v1537, %v1532
  %v1738 = vpack.c.b16 %v1538, %v1533
  %v1739 = vpack.c.b16 %v1539, %v1534
  %1940 = vmatpush.bf16.msra.mxu0 %v863
  %1941 = vmatpush.bf16.msra.mxu0 %v862
  %1942 = vmatpush.bf16.msra.mxu0 %v861
  %1943 = vmatpush.bf16.msra.mxu0 %v860
  %1944 = vmatpush.bf16.msra.mxu0 %v859
  %1945 = vmatpush.bf16.msra.mxu0 %v858
  %1946 = vmatpush.bf16.msra.mxu0 %v857
  %1947 = vmatpush.bf16.msra.mxu0 %v856
  %1948 = vmatmul.bf16.gmra.mxu0 %v1540
  %v1949 = vpop.f32.mrf.mxu0
  %v1950 = vadd.f32 %v898, %v1949
  %v1951 = vpop.f32.mrf.mxu0
  %v1952 = vadd.f32 %v898, %v1951
  %1953 = vmatmul.bf16.gmra.mxu0 %v1545
  %v1954 = vpop.f32.mrf.mxu0
  %v1955 = vadd.f32 %v898, %v1954
  %v1956 = vpop.f32.mrf.mxu0
  %v1957 = vadd.f32 %v898, %v1956
  %1958 = vmatmul.bf16.gmra.mxu0 %v1550
  %v1959 = vpop.f32.mrf.mxu0
  %v1960 = vadd.f32 %v898, %v1959
  %v1961 = vpop.f32.mrf.mxu0
  %v1962 = vadd.f32 %v898, %v1961
  %1963 = vmatmul.bf16.gmra.mxu0 %v1555
  %v1964 = vpop.f32.mrf.mxu0
  %v1965 = vadd.f32 %v898, %v1964
  %v1966 = vpop.f32.mrf.mxu0
  %v1967 = vadd.f32 %v898, %v1966
  %1968 = vmatmul.bf16.gmra.mxu0 %v1560
  %v1969 = vpop.f32.mrf.mxu0
  %v1970 = vadd.f32 %v898, %v1969
  %v1971 = vpop.f32.mrf.mxu0
  %v1972 = vadd.f32 %v898, %v1971
  %1973 = vmatmul.bf16.gmra.mxu0 %v1565
  %v1974 = vpop.f32.mrf.mxu0
  %v1975 = vadd.f32 %v898, %v1974
  %v1976 = vpop.f32.mrf.mxu0
  %v1977 = vadd.f32 %v898, %v1976
  %1978 = vmatmul.bf16.gmra.mxu0 %v1570
  %v1979 = vpop.f32.mrf.mxu0
  %v1980 = vadd.f32 %v898, %v1979
  %v1981 = vpop.f32.mrf.mxu0
  %v1982 = vadd.f32 %v898, %v1981
  %1983 = vmatmul.bf16.gmra.mxu0 %v1575
  %v1984 = vpop.f32.mrf.mxu0
  %v1985 = vadd.f32 %v898, %v1984
  %v1986 = vpop.f32.mrf.mxu0
  %v1987 = vadd.f32 %v898, %v1986
  %1988 = vmatmul.bf16.gmra.mxu0 %v1580
  %v1989 = vpop.f32.mrf.mxu0
  %v1990 = vadd.f32 %v898, %v1989
  %v1991 = vpop.f32.mrf.mxu0
  %v1992 = vadd.f32 %v898, %v1991
  %1993 = vmatmul.bf16.gmra.mxu0 %v1585
  %v1994 = vpop.f32.mrf.mxu0
  %v1995 = vadd.f32 %v898, %v1994
  %v1996 = vpop.f32.mrf.mxu0
  %v1997 = vadd.f32 %v898, %v1996
  %1998 = vmatmul.bf16.gmra.mxu0 %v1590
  %v1999 = vpop.f32.mrf.mxu0
  %v2000 = vadd.f32 %v898, %v1999
  %v2001 = vpop.f32.mrf.mxu0
  %v2002 = vadd.f32 %v898, %v2001
  %2003 = vmatmul.bf16.gmra.mxu0 %v1595
  %v2004 = vpop.f32.mrf.mxu0
  %v2005 = vadd.f32 %v898, %v2004
  %v2006 = vpop.f32.mrf.mxu0
  %v2007 = vadd.f32 %v898, %v2006
  %2008 = vmatmul.bf16.gmra.mxu0 %v1600
  %v2009 = vpop.f32.mrf.mxu0
  %v2010 = vadd.f32 %v898, %v2009
  %v2011 = vpop.f32.mrf.mxu0
  %v2012 = vadd.f32 %v898, %v2011
  %2013 = vmatmul.bf16.gmra.mxu0 %v1605
  %v2014 = vpop.f32.mrf.mxu0
  %v2015 = vadd.f32 %v898, %v2014
  %v2016 = vpop.f32.mrf.mxu0
  %v2017 = vadd.f32 %v898, %v2016
  %2018 = vmatmul.bf16.gmra.mxu0 %v1610
  %v2019 = vpop.f32.mrf.mxu0
  %v2020 = vadd.f32 %v898, %v2019
  %v2021 = vpop.f32.mrf.mxu0
  %v2022 = vadd.f32 %v898, %v2021
  %2023 = vmatmul.bf16.gmra.mxu0 %v1615
  %v2024 = vpop.f32.mrf.mxu0
  %v2025 = vadd.f32 %v898, %v2024
  %v2026 = vpop.f32.mrf.mxu0
  %v2027 = vadd.f32 %v898, %v2026
  %2028 = vmatmul.bf16.gmra.mxu0 %v1620
  %v2029 = vpop.f32.mrf.mxu0
  %v2030 = vadd.f32 %v898, %v2029
  %v2031 = vpop.f32.mrf.mxu0
  %v2032 = vadd.f32 %v898, %v2031
  %2033 = vmatmul.bf16.gmra.mxu0 %v1625
  %v2034 = vpop.f32.mrf.mxu0
  %v2035 = vadd.f32 %v898, %v2034
  %v2036 = vpop.f32.mrf.mxu0
  %v2037 = vadd.f32 %v898, %v2036
  %2038 = vmatmul.bf16.gmra.mxu0 %v1630
  %v2039 = vpop.f32.mrf.mxu0
  %v2040 = vadd.f32 %v898, %v2039
  %v2041 = vpop.f32.mrf.mxu0
  %v2042 = vadd.f32 %v898, %v2041
  %2043 = vmatmul.bf16.gmra.mxu0 %v1635
  %v2044 = vpop.f32.mrf.mxu0
  %v2045 = vadd.f32 %v898, %v2044
  %v2046 = vpop.f32.mrf.mxu0
  %v2047 = vadd.f32 %v898, %v2046
  %2048 = vmatmul.bf16.gmra.mxu0 %v1640
  %v2049 = vpop.f32.mrf.mxu0
  %v2050 = vadd.f32 %v898, %v2049
  %v2051 = vpop.f32.mrf.mxu0
  %v2052 = vadd.f32 %v898, %v2051
  %2053 = vmatmul.bf16.gmra.mxu0 %v1645
  %v2054 = vpop.f32.mrf.mxu0
  %v2055 = vadd.f32 %v898, %v2054
  %v2056 = vpop.f32.mrf.mxu0
  %v2057 = vadd.f32 %v898, %v2056
  %2058 = vmatmul.bf16.gmra.mxu0 %v1650
  %v2059 = vpop.f32.mrf.mxu0
  %v2060 = vadd.f32 %v898, %v2059
  %v2061 = vpop.f32.mrf.mxu0
  %v2062 = vadd.f32 %v898, %v2061
  %2063 = vmatmul.bf16.gmra.mxu0 %v1655
  %v2064 = vpop.f32.mrf.mxu0
  %v2065 = vadd.f32 %v898, %v2064
  %v2066 = vpop.f32.mrf.mxu0
  %v2067 = vadd.f32 %v898, %v2066
  %2068 = vmatmul.bf16.gmra.mxu0 %v1660
  %v2069 = vpop.f32.mrf.mxu0
  %v2070 = vadd.f32 %v898, %v2069
  %v2071 = vpop.f32.mrf.mxu0
  %v2072 = vadd.f32 %v898, %v2071
  %2073 = vmatmul.bf16.gmra.mxu0 %v1665
  %v2074 = vpop.f32.mrf.mxu0
  %v2075 = vadd.f32 %v898, %v2074
  %v2076 = vpop.f32.mrf.mxu0
  %v2077 = vadd.f32 %v898, %v2076
  %2078 = vmatmul.bf16.gmra.mxu0 %v1670
  %v2079 = vpop.f32.mrf.mxu0
  %v2080 = vadd.f32 %v898, %v2079
  %v2081 = vpop.f32.mrf.mxu0
  %v2082 = vadd.f32 %v898, %v2081
  %2083 = vmatmul.bf16.gmra.mxu0 %v1675
  %v2084 = vpop.f32.mrf.mxu0
  %v2085 = vadd.f32 %v898, %v2084
  %v2086 = vpop.f32.mrf.mxu0
  %v2087 = vadd.f32 %v898, %v2086
  %2088 = vmatmul.bf16.gmra.mxu0 %v1680
  %v2089 = vpop.f32.mrf.mxu0
  %v2090 = vadd.f32 %v898, %v2089
  %v2091 = vpop.f32.mrf.mxu0
  %v2092 = vadd.f32 %v898, %v2091
  %2093 = vmatmul.bf16.gmra.mxu0 %v1685
  %v2094 = vpop.f32.mrf.mxu0
  %v2095 = vadd.f32 %v898, %v2094
  %v2096 = vpop.f32.mrf.mxu0
  %v2097 = vadd.f32 %v898, %v2096
  %2098 = vmatmul.bf16.gmra.mxu0 %v1690
  %v2099 = vpop.f32.mrf.mxu0
  %v2100 = vadd.f32 %v898, %v2099
  %v2101 = vpop.f32.mrf.mxu0
  %v2102 = vadd.f32 %v898, %v2101
  %2103 = vmatmul.bf16.gmra.mxu0 %v1695
  %v2104 = vpop.f32.mrf.mxu0
  %v2105 = vadd.f32 %v898, %v2104
  %v2106 = vpop.f32.mrf.mxu0
  %v2107 = vadd.f32 %v898, %v2106
  %2108 = vmatmul.bf16.gmra.mxu0 %v1700
  %v2109 = vpop.f32.mrf.mxu0
  %v2110 = vadd.f32 %v898, %v2109
  %v2111 = vpop.f32.mrf.mxu0
  %v2112 = vadd.f32 %v898, %v2111
  %2113 = vmatmul.bf16.gmra.mxu0 %v1705
  %v2114 = vpop.f32.mrf.mxu0
  %v2115 = vadd.f32 %v898, %v2114
  %v2116 = vpop.f32.mrf.mxu0
  %v2117 = vadd.f32 %v898, %v2116
  %2118 = vmatmul.bf16.gmra.mxu0 %v1710
  %v2119 = vpop.f32.mrf.mxu0
  %v2120 = vadd.f32 %v898, %v2119
  %v2121 = vpop.f32.mrf.mxu0
  %v2122 = vadd.f32 %v898, %v2121
  %2123 = vmatmul.bf16.gmra.mxu0 %v1715
  %v2124 = vpop.f32.mrf.mxu0
  %v2125 = vadd.f32 %v898, %v2124
  %v2126 = vpop.f32.mrf.mxu0
  %v2127 = vadd.f32 %v898, %v2126
  %2128 = vmatmul.bf16.gmra.mxu0 %v1720
  %v2129 = vpop.f32.mrf.mxu0
  %v2130 = vadd.f32 %v898, %v2129
  %v2131 = vpop.f32.mrf.mxu0
  %v2132 = vadd.f32 %v898, %v2131
  %2133 = vmatmul.bf16.gmra.mxu0 %v1725
  %v2134 = vpop.f32.mrf.mxu0
  %v2135 = vadd.f32 %v898, %v2134
  %v2136 = vpop.f32.mrf.mxu0
  %v2137 = vadd.f32 %v898, %v2136
  %2138 = vmatmul.bf16.gmra.mxu0 %v1730
  %v2139 = vpop.f32.mrf.mxu0
  %v2140 = vadd.f32 %v898, %v2139
  %v2141 = vpop.f32.mrf.mxu0
  %v2142 = vadd.f32 %v898, %v2141
  %2143 = vmatmul.bf16.gmra.mxu0 %v1735
  %v2144 = vpop.f32.mrf.mxu0
  %v2145 = vadd.f32 %v898, %v2144
  %v2146 = vpop.f32.mrf.mxu0
  %v2147 = vadd.f32 %v898, %v2146
  %2148 = vdwg.mxu0
  %2149 = vmatpush.bf16.msra.mxu0 %v871
  %2150 = vmatpush.bf16.msra.mxu0 %v870
  %2151 = vmatpush.bf16.msra.mxu0 %v869
  %2152 = vmatpush.bf16.msra.mxu0 %v868
  %2153 = vmatpush.bf16.msra.mxu0 %v867
  %2154 = vmatpush.bf16.msra.mxu0 %v866
  %2155 = vmatpush.bf16.msra.mxu0 %v865
  %2156 = vmatpush.bf16.msra.mxu0 %v864
  %2157 = vmatmul.bf16.gmra.mxu0 %v1541
  %v2158 = vpop.f32.mrf.mxu0
  %v2159 = vadd.f32 %v1950, %v2158
  %v2160 = vpop.f32.mrf.mxu0
  %v2161 = vadd.f32 %v1952, %v2160
  %2162 = vmatmul.bf16.gmra.mxu0 %v1546
  %v2163 = vpop.f32.mrf.mxu0
  %v2164 = vadd.f32 %v1955, %v2163
  %v2165 = vpop.f32.mrf.mxu0
  %v2166 = vadd.f32 %v1957, %v2165
  %2167 = vmatmul.bf16.gmra.mxu0 %v1551
  %v2168 = vpop.f32.mrf.mxu0
  %v2169 = vadd.f32 %v1960, %v2168
  %v2170 = vpop.f32.mrf.mxu0
  %v2171 = vadd.f32 %v1962, %v2170
  %2172 = vmatmul.bf16.gmra.mxu0 %v1556
  %v2173 = vpop.f32.mrf.mxu0
  %v2174 = vadd.f32 %v1965, %v2173
  %v2175 = vpop.f32.mrf.mxu0
  %v2176 = vadd.f32 %v1967, %v2175
  %2177 = vmatmul.bf16.gmra.mxu0 %v1561
  %v2178 = vpop.f32.mrf.mxu0
  %v2179 = vadd.f32 %v1970, %v2178
  %v2180 = vpop.f32.mrf.mxu0
  %v2181 = vadd.f32 %v1972, %v2180
  %2182 = vmatmul.bf16.gmra.mxu0 %v1566
  %v2183 = vpop.f32.mrf.mxu0
  %v2184 = vadd.f32 %v1975, %v2183
  %v2185 = vpop.f32.mrf.mxu0
  %v2186 = vadd.f32 %v1977, %v2185
  %2187 = vmatmul.bf16.gmra.mxu0 %v1571
  %v2188 = vpop.f32.mrf.mxu0
  %v2189 = vadd.f32 %v1980, %v2188
  %v2190 = vpop.f32.mrf.mxu0
  %v2191 = vadd.f32 %v1982, %v2190
  %2192 = vmatmul.bf16.gmra.mxu0 %v1576
  %v2193 = vpop.f32.mrf.mxu0
  %v2194 = vadd.f32 %v1985, %v2193
  %v2195 = vpop.f32.mrf.mxu0
  %v2196 = vadd.f32 %v1987, %v2195
  %2197 = vmatmul.bf16.gmra.mxu0 %v1581
  %v2198 = vpop.f32.mrf.mxu0
  %v2199 = vadd.f32 %v1990, %v2198
  %v2200 = vpop.f32.mrf.mxu0
  %v2201 = vadd.f32 %v1992, %v2200
  %2202 = vmatmul.bf16.gmra.mxu0 %v1586
  %v2203 = vpop.f32.mrf.mxu0
  %v2204 = vadd.f32 %v1995, %v2203
  %v2205 = vpop.f32.mrf.mxu0
  %v2206 = vadd.f32 %v1997, %v2205
  %2207 = vmatmul.bf16.gmra.mxu0 %v1591
  %v2208 = vpop.f32.mrf.mxu0
  %v2209 = vadd.f32 %v2000, %v2208
  %v2210 = vpop.f32.mrf.mxu0
  %v2211 = vadd.f32 %v2002, %v2210
  %2212 = vmatmul.bf16.gmra.mxu0 %v1596
  %v2213 = vpop.f32.mrf.mxu0
  %v2214 = vadd.f32 %v2005, %v2213
  %v2215 = vpop.f32.mrf.mxu0
  %v2216 = vadd.f32 %v2007, %v2215
  %2217 = vmatmul.bf16.gmra.mxu0 %v1601
  %v2218 = vpop.f32.mrf.mxu0
  %v2219 = vadd.f32 %v2010, %v2218
  %v2220 = vpop.f32.mrf.mxu0
  %v2221 = vadd.f32 %v2012, %v2220
  %2222 = vmatmul.bf16.gmra.mxu0 %v1606
  %v2223 = vpop.f32.mrf.mxu0
  %v2224 = vadd.f32 %v2015, %v2223
  %v2225 = vpop.f32.mrf.mxu0
  %v2226 = vadd.f32 %v2017, %v2225
  %2227 = vmatmul.bf16.gmra.mxu0 %v1611
  %v2228 = vpop.f32.mrf.mxu0
  %v2229 = vadd.f32 %v2020, %v2228
  %v2230 = vpop.f32.mrf.mxu0
  %v2231 = vadd.f32 %v2022, %v2230
  %2232 = vmatmul.bf16.gmra.mxu0 %v1616
  %v2233 = vpop.f32.mrf.mxu0
  %v2234 = vadd.f32 %v2025, %v2233
  %v2235 = vpop.f32.mrf.mxu0
  %v2236 = vadd.f32 %v2027, %v2235
  %2237 = vmatmul.bf16.gmra.mxu0 %v1621
  %v2238 = vpop.f32.mrf.mxu0
  %v2239 = vadd.f32 %v2030, %v2238
  %v2240 = vpop.f32.mrf.mxu0
  %v2241 = vadd.f32 %v2032, %v2240
  %2242 = vmatmul.bf16.gmra.mxu0 %v1626
  %v2243 = vpop.f32.mrf.mxu0
  %v2244 = vadd.f32 %v2035, %v2243
  %v2245 = vpop.f32.mrf.mxu0
  %v2246 = vadd.f32 %v2037, %v2245
  %2247 = vmatmul.bf16.gmra.mxu0 %v1631
  %v2248 = vpop.f32.mrf.mxu0
  %v2249 = vadd.f32 %v2040, %v2248
  %v2250 = vpop.f32.mrf.mxu0
  %v2251 = vadd.f32 %v2042, %v2250
  %2252 = vmatmul.bf16.gmra.mxu0 %v1636
  %v2253 = vpop.f32.mrf.mxu0
  %v2254 = vadd.f32 %v2045, %v2253
  %v2255 = vpop.f32.mrf.mxu0
  %v2256 = vadd.f32 %v2047, %v2255
  %2257 = vmatmul.bf16.gmra.mxu0 %v1641
  %v2258 = vpop.f32.mrf.mxu0
  %v2259 = vadd.f32 %v2050, %v2258
  %v2260 = vpop.f32.mrf.mxu0
  %v2261 = vadd.f32 %v2052, %v2260
  %2262 = vmatmul.bf16.gmra.mxu0 %v1646
  %v2263 = vpop.f32.mrf.mxu0
  %v2264 = vadd.f32 %v2055, %v2263
  %v2265 = vpop.f32.mrf.mxu0
  %v2266 = vadd.f32 %v2057, %v2265
  %2267 = vmatmul.bf16.gmra.mxu0 %v1651
  %v2268 = vpop.f32.mrf.mxu0
  %v2269 = vadd.f32 %v2060, %v2268
  %v2270 = vpop.f32.mrf.mxu0
  %v2271 = vadd.f32 %v2062, %v2270
  %2272 = vmatmul.bf16.gmra.mxu0 %v1656
  %v2273 = vpop.f32.mrf.mxu0
  %v2274 = vadd.f32 %v2065, %v2273
  %v2275 = vpop.f32.mrf.mxu0
  %v2276 = vadd.f32 %v2067, %v2275
  %2277 = vmatmul.bf16.gmra.mxu0 %v1661
  %v2278 = vpop.f32.mrf.mxu0
  %v2279 = vadd.f32 %v2070, %v2278
  %v2280 = vpop.f32.mrf.mxu0
  %v2281 = vadd.f32 %v2072, %v2280
  %2282 = vmatmul.bf16.gmra.mxu0 %v1666
  %v2283 = vpop.f32.mrf.mxu0
  %v2284 = vadd.f32 %v2075, %v2283
  %v2285 = vpop.f32.mrf.mxu0
  %v2286 = vadd.f32 %v2077, %v2285
  %2287 = vmatmul.bf16.gmra.mxu0 %v1671
  %v2288 = vpop.f32.mrf.mxu0
  %v2289 = vadd.f32 %v2080, %v2288
  %v2290 = vpop.f32.mrf.mxu0
  %v2291 = vadd.f32 %v2082, %v2290
  %2292 = vmatmul.bf16.gmra.mxu0 %v1676
  %v2293 = vpop.f32.mrf.mxu0
  %v2294 = vadd.f32 %v2085, %v2293
  %v2295 = vpop.f32.mrf.mxu0
  %v2296 = vadd.f32 %v2087, %v2295
  %2297 = vmatmul.bf16.gmra.mxu0 %v1681
  %v2298 = vpop.f32.mrf.mxu0
  %v2299 = vadd.f32 %v2090, %v2298
  %v2300 = vpop.f32.mrf.mxu0
  %v2301 = vadd.f32 %v2092, %v2300
  %2302 = vmatmul.bf16.gmra.mxu0 %v1686
  %v2303 = vpop.f32.mrf.mxu0
  %v2304 = vadd.f32 %v2095, %v2303
  %v2305 = vpop.f32.mrf.mxu0
  %v2306 = vadd.f32 %v2097, %v2305
  %2307 = vmatmul.bf16.gmra.mxu0 %v1691
  %v2308 = vpop.f32.mrf.mxu0
  %v2309 = vadd.f32 %v2100, %v2308
  %v2310 = vpop.f32.mrf.mxu0
  %v2311 = vadd.f32 %v2102, %v2310
  %2312 = vmatmul.bf16.gmra.mxu0 %v1696
  %v2313 = vpop.f32.mrf.mxu0
  %v2314 = vadd.f32 %v2105, %v2313
  %v2315 = vpop.f32.mrf.mxu0
  %v2316 = vadd.f32 %v2107, %v2315
  %2317 = vmatmul.bf16.gmra.mxu0 %v1701
  %v2318 = vpop.f32.mrf.mxu0
  %v2319 = vadd.f32 %v2110, %v2318
  %v2320 = vpop.f32.mrf.mxu0
  %v2321 = vadd.f32 %v2112, %v2320
  %2322 = vmatmul.bf16.gmra.mxu0 %v1706
  %v2323 = vpop.f32.mrf.mxu0
  %v2324 = vadd.f32 %v2115, %v2323
  %v2325 = vpop.f32.mrf.mxu0
  %v2326 = vadd.f32 %v2117, %v2325
  %2327 = vmatmul.bf16.gmra.mxu0 %v1711
  %v2328 = vpop.f32.mrf.mxu0
  %v2329 = vadd.f32 %v2120, %v2328
  %v2330 = vpop.f32.mrf.mxu0
  %v2331 = vadd.f32 %v2122, %v2330
  %2332 = vmatmul.bf16.gmra.mxu0 %v1716
  %v2333 = vpop.f32.mrf.mxu0
  %v2334 = vadd.f32 %v2125, %v2333
  %v2335 = vpop.f32.mrf.mxu0
  %v2336 = vadd.f32 %v2127, %v2335
  %2337 = vmatmul.bf16.gmra.mxu0 %v1721
  %v2338 = vpop.f32.mrf.mxu0
  %v2339 = vadd.f32 %v2130, %v2338
  %v2340 = vpop.f32.mrf.mxu0
  %v2341 = vadd.f32 %v2132, %v2340
  %2342 = vmatmul.bf16.gmra.mxu0 %v1726
  %v2343 = vpop.f32.mrf.mxu0
  %v2344 = vadd.f32 %v2135, %v2343
  %v2345 = vpop.f32.mrf.mxu0
  %v2346 = vadd.f32 %v2137, %v2345
  %2347 = vmatmul.bf16.gmra.mxu0 %v1731
  %v2348 = vpop.f32.mrf.mxu0
  %v2349 = vadd.f32 %v2140, %v2348
  %v2350 = vpop.f32.mrf.mxu0
  %v2351 = vadd.f32 %v2142, %v2350
  %2352 = vmatmul.bf16.gmra.mxu0 %v1736
  %v2353 = vpop.f32.mrf.mxu0
  %v2354 = vadd.f32 %v2145, %v2353
  %v2355 = vpop.f32.mrf.mxu0
  %v2356 = vadd.f32 %v2147, %v2355
  %2357 = vdwg.mxu0
  %2358 = vmatpush.bf16.msra.mxu0 %v879
  %2359 = vmatpush.bf16.msra.mxu0 %v878
  %2360 = vmatpush.bf16.msra.mxu0 %v877
  %2361 = vmatpush.bf16.msra.mxu0 %v876
  %2362 = vmatpush.bf16.msra.mxu0 %v875
  %2363 = vmatpush.bf16.msra.mxu0 %v874
  %2364 = vmatpush.bf16.msra.mxu0 %v873
  %2365 = vmatpush.bf16.msra.mxu0 %v872
  %2366 = vmatmul.bf16.gmra.mxu0 %v1542
  %v2367 = vpop.f32.mrf.mxu0
  %v2368 = vadd.f32 %v2159, %v2367
  %v2369 = vpop.f32.mrf.mxu0
  %v2370 = vadd.f32 %v2161, %v2369
  %2371 = vmatmul.bf16.gmra.mxu0 %v1547
  %v2372 = vpop.f32.mrf.mxu0
  %v2373 = vadd.f32 %v2164, %v2372
  %v2374 = vpop.f32.mrf.mxu0
  %v2375 = vadd.f32 %v2166, %v2374
  %2376 = vmatmul.bf16.gmra.mxu0 %v1552
  %v2377 = vpop.f32.mrf.mxu0
  %v2378 = vadd.f32 %v2169, %v2377
  %v2379 = vpop.f32.mrf.mxu0
  %v2380 = vadd.f32 %v2171, %v2379
  %2381 = vmatmul.bf16.gmra.mxu0 %v1557
  %v2382 = vpop.f32.mrf.mxu0
  %v2383 = vadd.f32 %v2174, %v2382
  %v2384 = vpop.f32.mrf.mxu0
  %v2385 = vadd.f32 %v2176, %v2384
  %2386 = vmatmul.bf16.gmra.mxu0 %v1562
  %v2387 = vpop.f32.mrf.mxu0
  %v2388 = vadd.f32 %v2179, %v2387
  %v2389 = vpop.f32.mrf.mxu0
  %v2390 = vadd.f32 %v2181, %v2389
  %2391 = vmatmul.bf16.gmra.mxu0 %v1567
  %v2392 = vpop.f32.mrf.mxu0
  %v2393 = vadd.f32 %v2184, %v2392
  %v2394 = vpop.f32.mrf.mxu0
  %v2395 = vadd.f32 %v2186, %v2394
  %2396 = vmatmul.bf16.gmra.mxu0 %v1572
  %v2397 = vpop.f32.mrf.mxu0
  %v2398 = vadd.f32 %v2189, %v2397
  %v2399 = vpop.f32.mrf.mxu0
  %v2400 = vadd.f32 %v2191, %v2399
  %2401 = vmatmul.bf16.gmra.mxu0 %v1577
  %v2402 = vpop.f32.mrf.mxu0
  %v2403 = vadd.f32 %v2194, %v2402
  %v2404 = vpop.f32.mrf.mxu0
  %v2405 = vadd.f32 %v2196, %v2404
  %2406 = vmatmul.bf16.gmra.mxu0 %v1582
  %v2407 = vpop.f32.mrf.mxu0
  %v2408 = vadd.f32 %v2199, %v2407
  %v2409 = vpop.f32.mrf.mxu0
  %v2410 = vadd.f32 %v2201, %v2409
  %2411 = vmatmul.bf16.gmra.mxu0 %v1587
  %v2412 = vpop.f32.mrf.mxu0
  %v2413 = vadd.f32 %v2204, %v2412
  %v2414 = vpop.f32.mrf.mxu0
  %v2415 = vadd.f32 %v2206, %v2414
  %2416 = vmatmul.bf16.gmra.mxu0 %v1592
  %v2417 = vpop.f32.mrf.mxu0
  %v2418 = vadd.f32 %v2209, %v2417
  %v2419 = vpop.f32.mrf.mxu0
  %v2420 = vadd.f32 %v2211, %v2419
  %2421 = vmatmul.bf16.gmra.mxu0 %v1597
  %v2422 = vpop.f32.mrf.mxu0
  %v2423 = vadd.f32 %v2214, %v2422
  %v2424 = vpop.f32.mrf.mxu0
  %v2425 = vadd.f32 %v2216, %v2424
  %2426 = vmatmul.bf16.gmra.mxu0 %v1602
  %v2427 = vpop.f32.mrf.mxu0
  %v2428 = vadd.f32 %v2219, %v2427
  %v2429 = vpop.f32.mrf.mxu0
  %v2430 = vadd.f32 %v2221, %v2429
  %2431 = vmatmul.bf16.gmra.mxu0 %v1607
  %v2432 = vpop.f32.mrf.mxu0
  %v2433 = vadd.f32 %v2224, %v2432
  %v2434 = vpop.f32.mrf.mxu0
  %v2435 = vadd.f32 %v2226, %v2434
  %2436 = vmatmul.bf16.gmra.mxu0 %v1612
  %v2437 = vpop.f32.mrf.mxu0
  %v2438 = vadd.f32 %v2229, %v2437
  %v2439 = vpop.f32.mrf.mxu0
  %v2440 = vadd.f32 %v2231, %v2439
  %2441 = vmatmul.bf16.gmra.mxu0 %v1617
  %v2442 = vpop.f32.mrf.mxu0
  %v2443 = vadd.f32 %v2234, %v2442
  %v2444 = vpop.f32.mrf.mxu0
  %v2445 = vadd.f32 %v2236, %v2444
  %2446 = vmatmul.bf16.gmra.mxu0 %v1622
  %v2447 = vpop.f32.mrf.mxu0
  %v2448 = vadd.f32 %v2239, %v2447
  %v2449 = vpop.f32.mrf.mxu0
  %v2450 = vadd.f32 %v2241, %v2449
  %2451 = vmatmul.bf16.gmra.mxu0 %v1627
  %v2452 = vpop.f32.mrf.mxu0
  %v2453 = vadd.f32 %v2244, %v2452
  %v2454 = vpop.f32.mrf.mxu0
  %v2455 = vadd.f32 %v2246, %v2454
  %2456 = vmatmul.bf16.gmra.mxu0 %v1632
  %v2457 = vpop.f32.mrf.mxu0
  %v2458 = vadd.f32 %v2249, %v2457
  %v2459 = vpop.f32.mrf.mxu0
  %v2460 = vadd.f32 %v2251, %v2459
  %2461 = vmatmul.bf16.gmra.mxu0 %v1637
  %v2462 = vpop.f32.mrf.mxu0
  %v2463 = vadd.f32 %v2254, %v2462
  %v2464 = vpop.f32.mrf.mxu0
  %v2465 = vadd.f32 %v2256, %v2464
  %2466 = vmatmul.bf16.gmra.mxu0 %v1642
  %v2467 = vpop.f32.mrf.mxu0
  %v2468 = vadd.f32 %v2259, %v2467
  %v2469 = vpop.f32.mrf.mxu0
  %v2470 = vadd.f32 %v2261, %v2469
  %2471 = vmatmul.bf16.gmra.mxu0 %v1647
  %v2472 = vpop.f32.mrf.mxu0
  %v2473 = vadd.f32 %v2264, %v2472
  %v2474 = vpop.f32.mrf.mxu0
  %v2475 = vadd.f32 %v2266, %v2474
  %2476 = vmatmul.bf16.gmra.mxu0 %v1652
  %v2477 = vpop.f32.mrf.mxu0
  %v2478 = vadd.f32 %v2269, %v2477
  %v2479 = vpop.f32.mrf.mxu0
  %v2480 = vadd.f32 %v2271, %v2479
  %2481 = vmatmul.bf16.gmra.mxu0 %v1657
  %v2482 = vpop.f32.mrf.mxu0
  %v2483 = vadd.f32 %v2274, %v2482
  %v2484 = vpop.f32.mrf.mxu0
  %v2485 = vadd.f32 %v2276, %v2484
  %2486 = vmatmul.bf16.gmra.mxu0 %v1662
  %v2487 = vpop.f32.mrf.mxu0
  %v2488 = vadd.f32 %v2279, %v2487
  %v2489 = vpop.f32.mrf.mxu0
  %v2490 = vadd.f32 %v2281, %v2489
  %2491 = vmatmul.bf16.gmra.mxu0 %v1667
  %v2492 = vpop.f32.mrf.mxu0
  %v2493 = vadd.f32 %v2284, %v2492
  %v2494 = vpop.f32.mrf.mxu0
  %v2495 = vadd.f32 %v2286, %v2494
  %2496 = vmatmul.bf16.gmra.mxu0 %v1672
  %v2497 = vpop.f32.mrf.mxu0
  %v2498 = vadd.f32 %v2289, %v2497
  %v2499 = vpop.f32.mrf.mxu0
  %v2500 = vadd.f32 %v2291, %v2499
  %2501 = vmatmul.bf16.gmra.mxu0 %v1677
  %v2502 = vpop.f32.mrf.mxu0
  %v2503 = vadd.f32 %v2294, %v2502
  %v2504 = vpop.f32.mrf.mxu0
  %v2505 = vadd.f32 %v2296, %v2504
  %2506 = vmatmul.bf16.gmra.mxu0 %v1682
  %v2507 = vpop.f32.mrf.mxu0
  %v2508 = vadd.f32 %v2299, %v2507
  %v2509 = vpop.f32.mrf.mxu0
  %v2510 = vadd.f32 %v2301, %v2509
  %2511 = vmatmul.bf16.gmra.mxu0 %v1687
  %v2512 = vpop.f32.mrf.mxu0
  %v2513 = vadd.f32 %v2304, %v2512
  %v2514 = vpop.f32.mrf.mxu0
  %v2515 = vadd.f32 %v2306, %v2514
  %2516 = vmatmul.bf16.gmra.mxu0 %v1692
  %v2517 = vpop.f32.mrf.mxu0
  %v2518 = vadd.f32 %v2309, %v2517
  %v2519 = vpop.f32.mrf.mxu0
  %v2520 = vadd.f32 %v2311, %v2519
  %2521 = vmatmul.bf16.gmra.mxu0 %v1697
  %v2522 = vpop.f32.mrf.mxu0
  %v2523 = vadd.f32 %v2314, %v2522
  %v2524 = vpop.f32.mrf.mxu0
  %v2525 = vadd.f32 %v2316, %v2524
  %2526 = vmatmul.bf16.gmra.mxu0 %v1702
  %v2527 = vpop.f32.mrf.mxu0
  %v2528 = vadd.f32 %v2319, %v2527
  %v2529 = vpop.f32.mrf.mxu0
  %v2530 = vadd.f32 %v2321, %v2529
  %2531 = vmatmul.bf16.gmra.mxu0 %v1707
  %v2532 = vpop.f32.mrf.mxu0
  %v2533 = vadd.f32 %v2324, %v2532
  %v2534 = vpop.f32.mrf.mxu0
  %v2535 = vadd.f32 %v2326, %v2534
  %2536 = vmatmul.bf16.gmra.mxu0 %v1712
  %v2537 = vpop.f32.mrf.mxu0
  %v2538 = vadd.f32 %v2329, %v2537
  %v2539 = vpop.f32.mrf.mxu0
  %v2540 = vadd.f32 %v2331, %v2539
  %2541 = vmatmul.bf16.gmra.mxu0 %v1717
  %v2542 = vpop.f32.mrf.mxu0
  %v2543 = vadd.f32 %v2334, %v2542
  %v2544 = vpop.f32.mrf.mxu0
  %v2545 = vadd.f32 %v2336, %v2544
  %2546 = vmatmul.bf16.gmra.mxu0 %v1722
  %v2547 = vpop.f32.mrf.mxu0
  %v2548 = vadd.f32 %v2339, %v2547
  %v2549 = vpop.f32.mrf.mxu0
  %v2550 = vadd.f32 %v2341, %v2549
  %2551 = vmatmul.bf16.gmra.mxu0 %v1727
  %v2552 = vpop.f32.mrf.mxu0
  %v2553 = vadd.f32 %v2344, %v2552
  %v2554 = vpop.f32.mrf.mxu0
  %v2555 = vadd.f32 %v2346, %v2554
  %2556 = vmatmul.bf16.gmra.mxu0 %v1732
  %v2557 = vpop.f32.mrf.mxu0
  %v2558 = vadd.f32 %v2349, %v2557
  %v2559 = vpop.f32.mrf.mxu0
  %v2560 = vadd.f32 %v2351, %v2559
  %2561 = vmatmul.bf16.gmra.mxu0 %v1737
  %v2562 = vpop.f32.mrf.mxu0
  %v2563 = vadd.f32 %v2354, %v2562
  %v2564 = vpop.f32.mrf.mxu0
  %v2565 = vadd.f32 %v2356, %v2564
  %2566 = vdwg.mxu0
  %2567 = vmatpush.bf16.msra.mxu0 %v887
  %2568 = vmatpush.bf16.msra.mxu0 %v886
  %2569 = vmatpush.bf16.msra.mxu0 %v885
  %2570 = vmatpush.bf16.msra.mxu0 %v884
  %2571 = vmatpush.bf16.msra.mxu0 %v883
  %2572 = vmatpush.bf16.msra.mxu0 %v882
  %2573 = vmatpush.bf16.msra.mxu0 %v881
  %2574 = vmatpush.bf16.msra.mxu0 %v880
  %2575 = vmatmul.bf16.gmra.mxu0 %v1543
  %v2576 = vpop.f32.mrf.mxu0
  %v2577 = vadd.f32 %v2368, %v2576
  %v2578 = vpop.f32.mrf.mxu0
  %v2579 = vadd.f32 %v2370, %v2578
  %2580 = vmatmul.bf16.gmra.mxu0 %v1548
  %v2581 = vpop.f32.mrf.mxu0
  %v2582 = vadd.f32 %v2373, %v2581
  %v2583 = vpop.f32.mrf.mxu0
  %v2584 = vadd.f32 %v2375, %v2583
  %2585 = vmatmul.bf16.gmra.mxu0 %v1553
  %v2586 = vpop.f32.mrf.mxu0
  %v2587 = vadd.f32 %v2378, %v2586
  %v2588 = vpop.f32.mrf.mxu0
  %v2589 = vadd.f32 %v2380, %v2588
  %2590 = vmatmul.bf16.gmra.mxu0 %v1558
  %v2591 = vpop.f32.mrf.mxu0
  %v2592 = vadd.f32 %v2383, %v2591
  %v2593 = vpop.f32.mrf.mxu0
  %v2594 = vadd.f32 %v2385, %v2593
  %2595 = vmatmul.bf16.gmra.mxu0 %v1563
  %v2596 = vpop.f32.mrf.mxu0
  %v2597 = vadd.f32 %v2388, %v2596
  %v2598 = vpop.f32.mrf.mxu0
  %v2599 = vadd.f32 %v2390, %v2598
  %2600 = vmatmul.bf16.gmra.mxu0 %v1568
  %v2601 = vpop.f32.mrf.mxu0
  %v2602 = vadd.f32 %v2393, %v2601
  %v2603 = vpop.f32.mrf.mxu0
  %v2604 = vadd.f32 %v2395, %v2603
  %2605 = vmatmul.bf16.gmra.mxu0 %v1573
  %v2606 = vpop.f32.mrf.mxu0
  %v2607 = vadd.f32 %v2398, %v2606
  %v2608 = vpop.f32.mrf.mxu0
  %v2609 = vadd.f32 %v2400, %v2608
  %2610 = vmatmul.bf16.gmra.mxu0 %v1578
  %v2611 = vpop.f32.mrf.mxu0
  %v2612 = vadd.f32 %v2403, %v2611
  %v2613 = vpop.f32.mrf.mxu0
  %v2614 = vadd.f32 %v2405, %v2613
  %2615 = vmatmul.bf16.gmra.mxu0 %v1583
  %v2616 = vpop.f32.mrf.mxu0
  %v2617 = vadd.f32 %v2408, %v2616
  %v2618 = vpop.f32.mrf.mxu0
  %v2619 = vadd.f32 %v2410, %v2618
  %2620 = vmatmul.bf16.gmra.mxu0 %v1588
  %v2621 = vpop.f32.mrf.mxu0
  %v2622 = vadd.f32 %v2413, %v2621
  %v2623 = vpop.f32.mrf.mxu0
  %v2624 = vadd.f32 %v2415, %v2623
  %2625 = vmatmul.bf16.gmra.mxu0 %v1593
  %v2626 = vpop.f32.mrf.mxu0
  %v2627 = vadd.f32 %v2418, %v2626
  %v2628 = vpop.f32.mrf.mxu0
  %v2629 = vadd.f32 %v2420, %v2628
  %2630 = vmatmul.bf16.gmra.mxu0 %v1598
  %v2631 = vpop.f32.mrf.mxu0
  %v2632 = vadd.f32 %v2423, %v2631
  %v2633 = vpop.f32.mrf.mxu0
  %v2634 = vadd.f32 %v2425, %v2633
  %2635 = vmatmul.bf16.gmra.mxu0 %v1603
  %v2636 = vpop.f32.mrf.mxu0
  %v2637 = vadd.f32 %v2428, %v2636
  %v2638 = vpop.f32.mrf.mxu0
  %v2639 = vadd.f32 %v2430, %v2638
  %2640 = vmatmul.bf16.gmra.mxu0 %v1608
  %v2641 = vpop.f32.mrf.mxu0
  %v2642 = vadd.f32 %v2433, %v2641
  %v2643 = vpop.f32.mrf.mxu0
  %v2644 = vadd.f32 %v2435, %v2643
  %2645 = vmatmul.bf16.gmra.mxu0 %v1613
  %v2646 = vpop.f32.mrf.mxu0
  %v2647 = vadd.f32 %v2438, %v2646
  %v2648 = vpop.f32.mrf.mxu0
  %v2649 = vadd.f32 %v2440, %v2648
  %2650 = vmatmul.bf16.gmra.mxu0 %v1618
  %v2651 = vpop.f32.mrf.mxu0
  %v2652 = vadd.f32 %v2443, %v2651
  %v2653 = vpop.f32.mrf.mxu0
  %v2654 = vadd.f32 %v2445, %v2653
  %2655 = vmatmul.bf16.gmra.mxu0 %v1623
  %v2656 = vpop.f32.mrf.mxu0
  %v2657 = vadd.f32 %v2448, %v2656
  %v2658 = vpop.f32.mrf.mxu0
  %v2659 = vadd.f32 %v2450, %v2658
  %2660 = vmatmul.bf16.gmra.mxu0 %v1628
  %v2661 = vpop.f32.mrf.mxu0
  %v2662 = vadd.f32 %v2453, %v2661
  %v2663 = vpop.f32.mrf.mxu0
  %v2664 = vadd.f32 %v2455, %v2663
  %2665 = vmatmul.bf16.gmra.mxu0 %v1633
  %v2666 = vpop.f32.mrf.mxu0
  %v2667 = vadd.f32 %v2458, %v2666
  %v2668 = vpop.f32.mrf.mxu0
  %v2669 = vadd.f32 %v2460, %v2668
  %2670 = vmatmul.bf16.gmra.mxu0 %v1638
  %v2671 = vpop.f32.mrf.mxu0
  %v2672 = vadd.f32 %v2463, %v2671
  %v2673 = vpop.f32.mrf.mxu0
  %v2674 = vadd.f32 %v2465, %v2673
  %2675 = vmatmul.bf16.gmra.mxu0 %v1643
  %v2676 = vpop.f32.mrf.mxu0
  %v2677 = vadd.f32 %v2468, %v2676
  %v2678 = vpop.f32.mrf.mxu0
  %v2679 = vadd.f32 %v2470, %v2678
  %2680 = vmatmul.bf16.gmra.mxu0 %v1648
  %v2681 = vpop.f32.mrf.mxu0
  %v2682 = vadd.f32 %v2473, %v2681
  %v2683 = vpop.f32.mrf.mxu0
  %v2684 = vadd.f32 %v2475, %v2683
  %2685 = vmatmul.bf16.gmra.mxu0 %v1653
  %v2686 = vpop.f32.mrf.mxu0
  %v2687 = vadd.f32 %v2478, %v2686
  %v2688 = vpop.f32.mrf.mxu0
  %v2689 = vadd.f32 %v2480, %v2688
  %2690 = vmatmul.bf16.gmra.mxu0 %v1658
  %v2691 = vpop.f32.mrf.mxu0
  %v2692 = vadd.f32 %v2483, %v2691
  %v2693 = vpop.f32.mrf.mxu0
  %v2694 = vadd.f32 %v2485, %v2693
  %2695 = vmatmul.bf16.gmra.mxu0 %v1663
  %v2696 = vpop.f32.mrf.mxu0
  %v2697 = vadd.f32 %v2488, %v2696
  %v2698 = vpop.f32.mrf.mxu0
  %v2699 = vadd.f32 %v2490, %v2698
  %2700 = vmatmul.bf16.gmra.mxu0 %v1668
  %v2701 = vpop.f32.mrf.mxu0
  %v2702 = vadd.f32 %v2493, %v2701
  %v2703 = vpop.f32.mrf.mxu0
  %v2704 = vadd.f32 %v2495, %v2703
  %2705 = vmatmul.bf16.gmra.mxu0 %v1673
  %v2706 = vpop.f32.mrf.mxu0
  %v2707 = vadd.f32 %v2498, %v2706
  %v2708 = vpop.f32.mrf.mxu0
  %v2709 = vadd.f32 %v2500, %v2708
  %2710 = vmatmul.bf16.gmra.mxu0 %v1678
  %v2711 = vpop.f32.mrf.mxu0
  %v2712 = vadd.f32 %v2503, %v2711
  %v2713 = vpop.f32.mrf.mxu0
  %v2714 = vadd.f32 %v2505, %v2713
  %2715 = vmatmul.bf16.gmra.mxu0 %v1683
  %v2716 = vpop.f32.mrf.mxu0
  %v2717 = vadd.f32 %v2508, %v2716
  %v2718 = vpop.f32.mrf.mxu0
  %v2719 = vadd.f32 %v2510, %v2718
  %2720 = vmatmul.bf16.gmra.mxu0 %v1688
  %v2721 = vpop.f32.mrf.mxu0
  %v2722 = vadd.f32 %v2513, %v2721
  %v2723 = vpop.f32.mrf.mxu0
  %v2724 = vadd.f32 %v2515, %v2723
  %2725 = vmatmul.bf16.gmra.mxu0 %v1693
  %v2726 = vpop.f32.mrf.mxu0
  %v2727 = vadd.f32 %v2518, %v2726
  %v2728 = vpop.f32.mrf.mxu0
  %v2729 = vadd.f32 %v2520, %v2728
  %2730 = vmatmul.bf16.gmra.mxu0 %v1698
  %v2731 = vpop.f32.mrf.mxu0
  %v2732 = vadd.f32 %v2523, %v2731
  %v2733 = vpop.f32.mrf.mxu0
  %v2734 = vadd.f32 %v2525, %v2733
  %2735 = vmatmul.bf16.gmra.mxu0 %v1703
  %v2736 = vpop.f32.mrf.mxu0
  %v2737 = vadd.f32 %v2528, %v2736
  %v2738 = vpop.f32.mrf.mxu0
  %v2739 = vadd.f32 %v2530, %v2738
  %2740 = vmatmul.bf16.gmra.mxu0 %v1708
  %v2741 = vpop.f32.mrf.mxu0
  %v2742 = vadd.f32 %v2533, %v2741
  %v2743 = vpop.f32.mrf.mxu0
  %v2744 = vadd.f32 %v2535, %v2743
  %2745 = vmatmul.bf16.gmra.mxu0 %v1713
  %v2746 = vpop.f32.mrf.mxu0
  %v2747 = vadd.f32 %v2538, %v2746
  %v2748 = vpop.f32.mrf.mxu0
  %v2749 = vadd.f32 %v2540, %v2748
  %2750 = vmatmul.bf16.gmra.mxu0 %v1718
  %v2751 = vpop.f32.mrf.mxu0
  %v2752 = vadd.f32 %v2543, %v2751
  %v2753 = vpop.f32.mrf.mxu0
  %v2754 = vadd.f32 %v2545, %v2753
  %2755 = vmatmul.bf16.gmra.mxu0 %v1723
  %v2756 = vpop.f32.mrf.mxu0
  %v2757 = vadd.f32 %v2548, %v2756
  %v2758 = vpop.f32.mrf.mxu0
  %v2759 = vadd.f32 %v2550, %v2758
  %2760 = vmatmul.bf16.gmra.mxu0 %v1728
  %v2761 = vpop.f32.mrf.mxu0
  %v2762 = vadd.f32 %v2553, %v2761
  %v2763 = vpop.f32.mrf.mxu0
  %v2764 = vadd.f32 %v2555, %v2763
  %2765 = vmatmul.bf16.gmra.mxu0 %v1733
  %v2766 = vpop.f32.mrf.mxu0
  %v2767 = vadd.f32 %v2558, %v2766
  %v2768 = vpop.f32.mrf.mxu0
  %v2769 = vadd.f32 %v2560, %v2768
  %2770 = vmatmul.bf16.gmra.mxu0 %v1738
  %v2771 = vpop.f32.mrf.mxu0
  %v2772 = vadd.f32 %v2563, %v2771
  %v2773 = vpop.f32.mrf.mxu0
  %v2774 = vadd.f32 %v2565, %v2773
  %2775 = vdwg.mxu0
  %2776 = vmatpush.bf16.msra.mxu0 %v895
  %2777 = vmatpush.bf16.msra.mxu0 %v894
  %2778 = vmatpush.bf16.msra.mxu0 %v893
  %2779 = vmatpush.bf16.msra.mxu0 %v892
  %2780 = vmatpush.bf16.msra.mxu0 %v891
  %2781 = vmatpush.bf16.msra.mxu0 %v890
  %2782 = vmatpush.bf16.msra.mxu0 %v889
  %2783 = vmatpush.bf16.msra.mxu0 %v888
  %2784 = vmatmul.bf16.gmra.mxu0 %v1544
  %v2785 = vpop.f32.mrf.mxu0
  %v2786 = vadd.f32 %v2577, %v2785
  %v2787 = vpop.f32.mrf.mxu0
  %v2788 = vadd.f32 %v2579, %v2787
  %2789 = vmatmul.bf16.gmra.mxu0 %v1549
  %v2790 = vpop.f32.mrf.mxu0
  %v2791 = vadd.f32 %v2582, %v2790
  %v2792 = vpop.f32.mrf.mxu0
  %v2793 = vadd.f32 %v2584, %v2792
  %2794 = vmatmul.bf16.gmra.mxu0 %v1554
  %v2795 = vpop.f32.mrf.mxu0
  %v2796 = vadd.f32 %v2587, %v2795
  %v2797 = vpop.f32.mrf.mxu0
  %v2798 = vadd.f32 %v2589, %v2797
  %2799 = vmatmul.bf16.gmra.mxu0 %v1559
  %v2800 = vpop.f32.mrf.mxu0
  %v2801 = vadd.f32 %v2592, %v2800
  %v2802 = vpop.f32.mrf.mxu0
  %v2803 = vadd.f32 %v2594, %v2802
  %2804 = vmatmul.bf16.gmra.mxu0 %v1564
  %v2805 = vpop.f32.mrf.mxu0
  %v2806 = vadd.f32 %v2597, %v2805
  %v2807 = vpop.f32.mrf.mxu0
  %v2808 = vadd.f32 %v2599, %v2807
  %2809 = vmatmul.bf16.gmra.mxu0 %v1569
  %v2810 = vpop.f32.mrf.mxu0
  %v2811 = vadd.f32 %v2602, %v2810
  %v2812 = vpop.f32.mrf.mxu0
  %v2813 = vadd.f32 %v2604, %v2812
  %2814 = vmatmul.bf16.gmra.mxu0 %v1574
  %v2815 = vpop.f32.mrf.mxu0
  %v2816 = vadd.f32 %v2607, %v2815
  %v2817 = vpop.f32.mrf.mxu0
  %v2818 = vadd.f32 %v2609, %v2817
  %2819 = vmatmul.bf16.gmra.mxu0 %v1579
  %v2820 = vpop.f32.mrf.mxu0
  %v2821 = vadd.f32 %v2612, %v2820
  %v2822 = vpop.f32.mrf.mxu0
  %v2823 = vadd.f32 %v2614, %v2822
  %2824 = vmatmul.bf16.gmra.mxu0 %v1584
  %v2825 = vpop.f32.mrf.mxu0
  %v2826 = vadd.f32 %v2617, %v2825
  %v2827 = vpop.f32.mrf.mxu0
  %v2828 = vadd.f32 %v2619, %v2827
  %2829 = vmatmul.bf16.gmra.mxu0 %v1589
  %v2830 = vpop.f32.mrf.mxu0
  %v2831 = vadd.f32 %v2622, %v2830
  %v2832 = vpop.f32.mrf.mxu0
  %v2833 = vadd.f32 %v2624, %v2832
  %2834 = vmatmul.bf16.gmra.mxu0 %v1594
  %v2835 = vpop.f32.mrf.mxu0
  %v2836 = vadd.f32 %v2627, %v2835
  %v2837 = vpop.f32.mrf.mxu0
  %v2838 = vadd.f32 %v2629, %v2837
  %2839 = vmatmul.bf16.gmra.mxu0 %v1599
  %v2840 = vpop.f32.mrf.mxu0
  %v2841 = vadd.f32 %v2632, %v2840
  %v2842 = vpop.f32.mrf.mxu0
  %v2843 = vadd.f32 %v2634, %v2842
  %2844 = vmatmul.bf16.gmra.mxu0 %v1604
  %v2845 = vpop.f32.mrf.mxu0
  %v2846 = vadd.f32 %v2637, %v2845
  %v2847 = vpop.f32.mrf.mxu0
  %v2848 = vadd.f32 %v2639, %v2847
  %2849 = vmatmul.bf16.gmra.mxu0 %v1609
  %v2850 = vpop.f32.mrf.mxu0
  %v2851 = vadd.f32 %v2642, %v2850
  %v2852 = vpop.f32.mrf.mxu0
  %v2853 = vadd.f32 %v2644, %v2852
  %2854 = vmatmul.bf16.gmra.mxu0 %v1614
  %v2855 = vpop.f32.mrf.mxu0
  %v2856 = vadd.f32 %v2647, %v2855
  %v2857 = vpop.f32.mrf.mxu0
  %v2858 = vadd.f32 %v2649, %v2857
  %2859 = vmatmul.bf16.gmra.mxu0 %v1619
  %v2860 = vpop.f32.mrf.mxu0
  %v2861 = vadd.f32 %v2652, %v2860
  %v2862 = vpop.f32.mrf.mxu0
  %v2863 = vadd.f32 %v2654, %v2862
  %2864 = vmatmul.bf16.gmra.mxu0 %v1624
  %v2865 = vpop.f32.mrf.mxu0
  %v2866 = vadd.f32 %v2657, %v2865
  %v2867 = vpop.f32.mrf.mxu0
  %v2868 = vadd.f32 %v2659, %v2867
  %2869 = vmatmul.bf16.gmra.mxu0 %v1629
  %v2870 = vpop.f32.mrf.mxu0
  %v2871 = vadd.f32 %v2662, %v2870
  %v2872 = vpop.f32.mrf.mxu0
  %v2873 = vadd.f32 %v2664, %v2872
  %2874 = vmatmul.bf16.gmra.mxu0 %v1634
  %v2875 = vpop.f32.mrf.mxu0
  %v2876 = vadd.f32 %v2667, %v2875
  %v2877 = vpop.f32.mrf.mxu0
  %v2878 = vadd.f32 %v2669, %v2877
  %2879 = vmatmul.bf16.gmra.mxu0 %v1639
  %v2880 = vpop.f32.mrf.mxu0
  %v2881 = vadd.f32 %v2672, %v2880
  %v2882 = vpop.f32.mrf.mxu0
  %v2883 = vadd.f32 %v2674, %v2882
  %2884 = vmatmul.bf16.gmra.mxu0 %v1644
  %v2885 = vpop.f32.mrf.mxu0
  %v2886 = vadd.f32 %v2677, %v2885
  %v2887 = vpop.f32.mrf.mxu0
  %v2888 = vadd.f32 %v2679, %v2887
  %2889 = vmatmul.bf16.gmra.mxu0 %v1649
  %v2890 = vpop.f32.mrf.mxu0
  %v2891 = vadd.f32 %v2682, %v2890
  %v2892 = vpop.f32.mrf.mxu0
  %v2893 = vadd.f32 %v2684, %v2892
  %2894 = vmatmul.bf16.gmra.mxu0 %v1654
  %v2895 = vpop.f32.mrf.mxu0
  %v2896 = vadd.f32 %v2687, %v2895
  %v2897 = vpop.f32.mrf.mxu0
  %v2898 = vadd.f32 %v2689, %v2897
  %2899 = vmatmul.bf16.gmra.mxu0 %v1659
  %v2900 = vpop.f32.mrf.mxu0
  %v2901 = vadd.f32 %v2692, %v2900
  %v2902 = vpop.f32.mrf.mxu0
  %v2903 = vadd.f32 %v2694, %v2902
  %2904 = vmatmul.bf16.gmra.mxu0 %v1664
  %v2905 = vpop.f32.mrf.mxu0
  %v2906 = vadd.f32 %v2697, %v2905
  %v2907 = vpop.f32.mrf.mxu0
  %v2908 = vadd.f32 %v2699, %v2907
  %2909 = vmatmul.bf16.gmra.mxu0 %v1669
  %v2910 = vpop.f32.mrf.mxu0
  %v2911 = vadd.f32 %v2702, %v2910
  %v2912 = vpop.f32.mrf.mxu0
  %v2913 = vadd.f32 %v2704, %v2912
  %2914 = vmatmul.bf16.gmra.mxu0 %v1674
  %v2915 = vpop.f32.mrf.mxu0
  %v2916 = vadd.f32 %v2707, %v2915
  %v2917 = vpop.f32.mrf.mxu0
  %v2918 = vadd.f32 %v2709, %v2917
  %2919 = vmatmul.bf16.gmra.mxu0 %v1679
  %v2920 = vpop.f32.mrf.mxu0
  %v2921 = vadd.f32 %v2712, %v2920
  %v2922 = vpop.f32.mrf.mxu0
  %v2923 = vadd.f32 %v2714, %v2922
  %2924 = vmatmul.bf16.gmra.mxu0 %v1684
  %v2925 = vpop.f32.mrf.mxu0
  %v2926 = vadd.f32 %v2717, %v2925
  %v2927 = vpop.f32.mrf.mxu0
  %v2928 = vadd.f32 %v2719, %v2927
  %2929 = vmatmul.bf16.gmra.mxu0 %v1689
  %v2930 = vpop.f32.mrf.mxu0
  %v2931 = vadd.f32 %v2722, %v2930
  %v2932 = vpop.f32.mrf.mxu0
  %v2933 = vadd.f32 %v2724, %v2932
  %2934 = vmatmul.bf16.gmra.mxu0 %v1694
  %v2935 = vpop.f32.mrf.mxu0
  %v2936 = vadd.f32 %v2727, %v2935
  %v2937 = vpop.f32.mrf.mxu0
  %v2938 = vadd.f32 %v2729, %v2937
  %2939 = vmatmul.bf16.gmra.mxu0 %v1699
  %v2940 = vpop.f32.mrf.mxu0
  %v2941 = vadd.f32 %v2732, %v2940
  %v2942 = vpop.f32.mrf.mxu0
  %v2943 = vadd.f32 %v2734, %v2942
  %2944 = vmatmul.bf16.gmra.mxu0 %v1704
  %v2945 = vpop.f32.mrf.mxu0
  %v2946 = vadd.f32 %v2737, %v2945
  %v2947 = vpop.f32.mrf.mxu0
  %v2948 = vadd.f32 %v2739, %v2947
  %2949 = vmatmul.bf16.gmra.mxu0 %v1709
  %v2950 = vpop.f32.mrf.mxu0
  %v2951 = vadd.f32 %v2742, %v2950
  %v2952 = vpop.f32.mrf.mxu0
  %v2953 = vadd.f32 %v2744, %v2952
  %2954 = vmatmul.bf16.gmra.mxu0 %v1714
  %v2955 = vpop.f32.mrf.mxu0
  %v2956 = vadd.f32 %v2747, %v2955
  %v2957 = vpop.f32.mrf.mxu0
  %v2958 = vadd.f32 %v2749, %v2957
  %2959 = vmatmul.bf16.gmra.mxu0 %v1719
  %v2960 = vpop.f32.mrf.mxu0
  %v2961 = vadd.f32 %v2752, %v2960
  %v2962 = vpop.f32.mrf.mxu0
  %v2963 = vadd.f32 %v2754, %v2962
  %2964 = vmatmul.bf16.gmra.mxu0 %v1724
  %v2965 = vpop.f32.mrf.mxu0
  %v2966 = vadd.f32 %v2757, %v2965
  %v2967 = vpop.f32.mrf.mxu0
  %v2968 = vadd.f32 %v2759, %v2967
  %2969 = vmatmul.bf16.gmra.mxu0 %v1729
  %v2970 = vpop.f32.mrf.mxu0
  %v2971 = vadd.f32 %v2762, %v2970
  %v2972 = vpop.f32.mrf.mxu0
  %v2973 = vadd.f32 %v2764, %v2972
  %2974 = vmatmul.bf16.gmra.mxu0 %v1734
  %v2975 = vpop.f32.mrf.mxu0
  %v2976 = vadd.f32 %v2767, %v2975
  %v2977 = vpop.f32.mrf.mxu0
  %v2978 = vadd.f32 %v2769, %v2977
  %2979 = vmatmul.bf16.gmra.mxu0 %v1739
  %v2980 = vpop.f32.mrf.mxu0
  %v2981 = vadd.f32 %v2772, %v2980
  %v2982 = vpop.f32.mrf.mxu0
  %v2983 = vadd.f32 %v2774, %v2982
  %2984 = vdwg.mxu0
  %v2985 = vmax.f32 %v2786, 0.0
  %v2986 = vmax.f32 %v2788, 0.0
  %v2987 = vmax.f32 %v2791, 0.0
  %v2988 = vmax.f32 %v2793, 0.0
  %v2989 = vmax.f32 %v2796, 0.0
  %v2990 = vmax.f32 %v2798, 0.0
  %v2991 = vmax.f32 %v2801, 0.0
  %v2992 = vmax.f32 %v2803, 0.0
  %v2993 = vmax.f32 %v2806, 0.0
  %v2994 = vmax.f32 %v2808, 0.0
  %v2995 = vmax.f32 %v2811, 0.0
  %v2996 = vmax.f32 %v2813, 0.0
  %v2997 = vmax.f32 %v2816, 0.0
  %v2998 = vmax.f32 %v2818, 0.0
  %v2999 = vmax.f32 %v2821, 0.0
  %v3000 = vmax.f32 %v2823, 0.0
  %v3001 = vmax.f32 %v2826, 0.0
  %v3002 = vmax.f32 %v2828, 0.0
  %v3003 = vmax.f32 %v2831, 0.0
  %v3004 = vmax.f32 %v2833, 0.0
  %v3005 = vmax.f32 %v2836, 0.0
  %v3006 = vmax.f32 %v2838, 0.0
  %v3007 = vmax.f32 %v2841, 0.0
  %v3008 = vmax.f32 %v2843, 0.0
  %v3009 = vmax.f32 %v2846, 0.0
  %v3010 = vmax.f32 %v2848, 0.0
  %v3011 = vmax.f32 %v2851, 0.0
  %v3012 = vmax.f32 %v2853, 0.0
  %v3013 = vmax.f32 %v2856, 0.0
  %v3014 = vmax.f32 %v2858, 0.0
  %v3015 = vmax.f32 %v2861, 0.0
  %v3016 = vmax.f32 %v2863, 0.0
  %v3017 = vmax.f32 %v2866, 0.0
  %v3018 = vmax.f32 %v2868, 0.0
  %v3019 = vmax.f32 %v2871, 0.0
  %v3020 = vmax.f32 %v2873, 0.0
  %v3021 = vmax.f32 %v2876, 0.0
  %v3022 = vmax.f32 %v2878, 0.0
  %v3023 = vmax.f32 %v2881, 0.0
  %v3024 = vmax.f32 %v2883, 0.0
  %v3025 = vmax.f32 %v2886, 0.0
  %v3026 = vmax.f32 %v2888, 0.0
  %v3027 = vmax.f32 %v2891, 0.0
  %v3028 = vmax.f32 %v2893, 0.0
  %v3029 = vmax.f32 %v2896, 0.0
  %v3030 = vmax.f32 %v2898, 0.0
  %v3031 = vmax.f32 %v2901, 0.0
  %v3032 = vmax.f32 %v2903, 0.0
  %v3033 = vmax.f32 %v2906, 0.0
  %v3034 = vmax.f32 %v2908, 0.0
  %v3035 = vmax.f32 %v2911, 0.0
  %v3036 = vmax.f32 %v2913, 0.0
  %v3037 = vmax.f32 %v2916, 0.0
  %v3038 = vmax.f32 %v2918, 0.0
  %v3039 = vmax.f32 %v2921, 0.0
  %v3040 = vmax.f32 %v2923, 0.0
  %v3041 = vmax.f32 %v2926, 0.0
  %v3042 = vmax.f32 %v2928, 0.0
  %v3043 = vmax.f32 %v2931, 0.0
  %v3044 = vmax.f32 %v2933, 0.0
  %v3045 = vmax.f32 %v2936, 0.0
  %v3046 = vmax.f32 %v2938, 0.0
  %v3047 = vmax.f32 %v2941, 0.0
  %v3048 = vmax.f32 %v2943, 0.0
  %v3049 = vmax.f32 %v2946, 0.0
  %v3050 = vmax.f32 %v2948, 0.0
  %v3051 = vmax.f32 %v2951, 0.0
  %v3052 = vmax.f32 %v2953, 0.0
  %v3053 = vmax.f32 %v2956, 0.0
  %v3054 = vmax.f32 %v2958, 0.0
  %v3055 = vmax.f32 %v2961, 0.0
  %v3056 = vmax.f32 %v2963, 0.0
  %v3057 = vmax.f32 %v2966, 0.0
  %v3058 = vmax.f32 %v2968, 0.0
  %v3059 = vmax.f32 %v2971, 0.0
  %v3060 = vmax.f32 %v2973, 0.0
  %v3061 = vmax.f32 %v2976, 0.0
  %v3062 = vmax.f32 %v2978, 0.0
  %v3063 = vmax.f32 %v2981, 0.0
  %v3064 = vmax.f32 %v2983, 0.0
  %v3065 = vpack.c.bf16 %v2986, %v2985
  %v3066 = vpack.c.bf16 %v2988, %v2987
  %v3067 = vpack.c.bf16 %v2990, %v2989
  %v3068 = vpack.c.bf16 %v2992, %v2991
  %v3069 = vpack.c.bf16 %v2994, %v2993
  %v3070 = vpack.c.bf16 %v2996, %v2995
  %v3071 = vpack.c.bf16 %v2998, %v2997
  %v3072 = vpack.c.bf16 %v3000, %v2999
  %v3073 = vpack.c.bf16 %v3002, %v3001
  %v3074 = vpack.c.bf16 %v3004, %v3003
  %v3075 = vpack.c.bf16 %v3006, %v3005
  %v3076 = vpack.c.bf16 %v3008, %v3007
  %v3077 = vpack.c.bf16 %v3010, %v3009
  %v3078 = vpack.c.bf16 %v3012, %v3011
  %v3079 = vpack.c.bf16 %v3014, %v3013
  %v3080 = vpack.c.bf16 %v3016, %v3015
  %v3081 = vpack.c.bf16 %v3018, %v3017
  %v3082 = vpack.c.bf16 %v3020, %v3019
  %v3083 = vpack.c.bf16 %v3022, %v3021
  %v3084 = vpack.c.bf16 %v3024, %v3023
  %v3085 = vpack.c.bf16 %v3026, %v3025
  %v3086 = vpack.c.bf16 %v3028, %v3027
  %v3087 = vpack.c.bf16 %v3030, %v3029
  %v3088 = vpack.c.bf16 %v3032, %v3031
  %v3089 = vpack.c.bf16 %v3034, %v3033
  %v3090 = vpack.c.bf16 %v3036, %v3035
  %v3091 = vpack.c.bf16 %v3038, %v3037
  %v3092 = vpack.c.bf16 %v3040, %v3039
  %v3093 = vpack.c.bf16 %v3042, %v3041
  %v3094 = vpack.c.bf16 %v3044, %v3043
  %v3095 = vpack.c.bf16 %v3046, %v3045
  %v3096 = vpack.c.bf16 %v3048, %v3047
  %v3097 = vpack.c.bf16 %v3050, %v3049
  %v3098 = vpack.c.bf16 %v3052, %v3051
  %v3099 = vpack.c.bf16 %v3054, %v3053
  %v3100 = vpack.c.bf16 %v3056, %v3055
  %v3101 = vpack.c.bf16 %v3058, %v3057
  %v3102 = vpack.c.bf16 %v3060, %v3059
  %v3103 = vpack.c.bf16 %v3062, %v3061
  %v3104 = vpack.c.bf16 %v3064, %v3063
  %v3105 = vld [vmem:[%s4] sm:$0xf]
  %v3106 = vld [vmem:[%s4 + $0x4] sm:$0xf]
  %v3107 = vld [vmem:[%s4 + $0x8] sm:$0xf]
  %v3108 = vld [vmem:[%s4 + $0xc] sm:$0xf]
  %v3109 = vld [vmem:[%s4 + $0x10] sm:$0xf]
  %v3110 = vld [vmem:[%s4 + $0x14] sm:$0xf]
  %v3111 = vld [vmem:[%s4 + $0x18] sm:$0xf]
  %v3112 = vld [vmem:[%s4 + $0x1c] sm:$0xf]
  %v3113 = vld [vmem:[%s4 + $0x20] sm:$0xf]
  %v3114 = vld [vmem:[%s4 + $0x24] sm:$0xf]
  %v3115 = vld [vmem:[%s4 + $0x28] sm:$0xf]
  %v3116 = vld [vmem:[%s4 + $0x2c] sm:$0xf]
  %v3117 = vld [vmem:[%s4 + $0x30] sm:$0xf]
  %v3118 = vld [vmem:[%s4 + $0x34] sm:$0xf]
  %v3119 = vld [vmem:[%s4 + $0x38] sm:$0xf]
  %v3120 = vld [vmem:[%s4 + $0x3c] sm:$0xf]
  %v3137 = vunpack.c.l.b16 %v3105
  %v3138 = vunpack.c.l.b16 %v3106
  %v3139 = vunpack.c.l.b16 %v3107
  %v3140 = vunpack.c.l.b16 %v3108
  %v3141 = vunpack.c.l.b16 %v3109
  %v3142 = vunpack.c.l.b16 %v3110
  %v3143 = vunpack.c.l.b16 %v3111
  %v3144 = vunpack.c.l.b16 %v3112
  %v3145 = vunpack.c.l.b16 %v3113
  %v3146 = vunpack.c.l.b16 %v3114
  %v3147 = vunpack.c.l.b16 %v3115
  %v3148 = vunpack.c.l.b16 %v3116
  %v3149 = vunpack.c.l.b16 %v3117
  %v3150 = vunpack.c.l.b16 %v3118
  %v3151 = vunpack.c.l.b16 %v3119
  %v3152 = vunpack.c.l.b16 %v3120
  %v3153 = vpack.c.b16 %v3138, %v3137
  %v3154 = vpack.c.b16 %v3140, %v3139
  %v3155 = vpack.c.b16 %v3142, %v3141
  %v3156 = vpack.c.b16 %v3144, %v3143
  %v3157 = vpack.c.b16 %v3146, %v3145
  %v3158 = vpack.c.b16 %v3148, %v3147
  %v3159 = vpack.c.b16 %v3150, %v3149
  %v3160 = vpack.c.b16 %v3152, %v3151
  %3169 = vmatpush.bf16.msra.mxu0 %v3160
  %3170 = vmatpush.bf16.msra.mxu0 %v3159
  %3171 = vmatpush.bf16.msra.mxu0 %v3158
  %3172 = vmatpush.bf16.msra.mxu0 %v3157
  %3173 = vmatpush.bf16.msra.mxu0 %v3156
  %3174 = vmatpush.bf16.msra.mxu0 %v3155
  %3175 = vmatpush.bf16.msra.mxu0 %v3154
  %3176 = vmatpush.bf16.msra.mxu0 %v3153
  %3177 = vmatmul.bf16.gmra.mxu0 %v3065
  %v3178 = vpop.f32.mrf.mxu0
  %v3179 = vadd.f32 0.0, %v3178
  %v3180 = vpop.f32.mrf.mxu0
  %v3181 = vadd.f32 0.0, %v3180
  %3182 = vmatmul.bf16.gmra.mxu0 %v3066
  %v3183 = vpop.f32.mrf.mxu0
  %v3184 = vadd.f32 0.0, %v3183
  %v3185 = vpop.f32.mrf.mxu0
  %v3186 = vadd.f32 0.0, %v3185
  %3187 = vmatmul.bf16.gmra.mxu0 %v3067
  %v3188 = vpop.f32.mrf.mxu0
  %v3189 = vadd.f32 0.0, %v3188
  %v3190 = vpop.f32.mrf.mxu0
  %v3191 = vadd.f32 0.0, %v3190
  %3192 = vmatmul.bf16.gmra.mxu0 %v3068
  %v3193 = vpop.f32.mrf.mxu0
  %v3194 = vadd.f32 0.0, %v3193
  %v3195 = vpop.f32.mrf.mxu0
  %v3196 = vadd.f32 0.0, %v3195
  %3197 = vmatmul.bf16.gmra.mxu0 %v3069
  %v3198 = vpop.f32.mrf.mxu0
  %v3199 = vadd.f32 0.0, %v3198
  %v3200 = vpop.f32.mrf.mxu0
  %v3201 = vadd.f32 0.0, %v3200
  %3202 = vmatmul.bf16.gmra.mxu0 %v3070
  %v3203 = vpop.f32.mrf.mxu0
  %v3204 = vadd.f32 0.0, %v3203
  %v3205 = vpop.f32.mrf.mxu0
  %v3206 = vadd.f32 0.0, %v3205
  %3207 = vmatmul.bf16.gmra.mxu0 %v3071
  %v3208 = vpop.f32.mrf.mxu0
  %v3209 = vadd.f32 0.0, %v3208
  %v3210 = vpop.f32.mrf.mxu0
  %v3211 = vadd.f32 0.0, %v3210
  %3212 = vmatmul.bf16.gmra.mxu0 %v3072
  %v3213 = vpop.f32.mrf.mxu0
  %v3214 = vadd.f32 0.0, %v3213
  %v3215 = vpop.f32.mrf.mxu0
  %v3216 = vadd.f32 0.0, %v3215
  %3217 = vmatmul.bf16.gmra.mxu0 %v3073
  %v3218 = vpop.f32.mrf.mxu0
  %v3219 = vadd.f32 0.0, %v3218
  %v3220 = vpop.f32.mrf.mxu0
  %v3221 = vadd.f32 0.0, %v3220
  %3222 = vmatmul.bf16.gmra.mxu0 %v3074
  %v3223 = vpop.f32.mrf.mxu0
  %v3224 = vadd.f32 0.0, %v3223
  %v3225 = vpop.f32.mrf.mxu0
  %v3226 = vadd.f32 0.0, %v3225
  %3227 = vmatmul.bf16.gmra.mxu0 %v3075
  %v3228 = vpop.f32.mrf.mxu0
  %v3229 = vadd.f32 0.0, %v3228
  %v3230 = vpop.f32.mrf.mxu0
  %v3231 = vadd.f32 0.0, %v3230
  %3232 = vmatmul.bf16.gmra.mxu0 %v3076
  %v3233 = vpop.f32.mrf.mxu0
  %v3234 = vadd.f32 0.0, %v3233
  %v3235 = vpop.f32.mrf.mxu0
  %v3236 = vadd.f32 0.0, %v3235
  %3237 = vmatmul.bf16.gmra.mxu0 %v3077
  %v3238 = vpop.f32.mrf.mxu0
  %v3239 = vadd.f32 0.0, %v3238
  %v3240 = vpop.f32.mrf.mxu0
  %v3241 = vadd.f32 0.0, %v3240
  %3242 = vmatmul.bf16.gmra.mxu0 %v3078
  %v3243 = vpop.f32.mrf.mxu0
  %v3244 = vadd.f32 0.0, %v3243
  %v3245 = vpop.f32.mrf.mxu0
  %v3246 = vadd.f32 0.0, %v3245
  %3247 = vmatmul.bf16.gmra.mxu0 %v3079
  %v3248 = vpop.f32.mrf.mxu0
  %v3249 = vadd.f32 0.0, %v3248
  %v3250 = vpop.f32.mrf.mxu0
  %v3251 = vadd.f32 0.0, %v3250
  %3252 = vmatmul.bf16.gmra.mxu0 %v3080
  %v3253 = vpop.f32.mrf.mxu0
  %v3254 = vadd.f32 0.0, %v3253
  %v3255 = vpop.f32.mrf.mxu0
  %v3256 = vadd.f32 0.0, %v3255
  %3257 = vmatmul.bf16.gmra.mxu0 %v3081
  %v3258 = vpop.f32.mrf.mxu0
  %v3259 = vadd.f32 0.0, %v3258
  %v3260 = vpop.f32.mrf.mxu0
  %v3261 = vadd.f32 0.0, %v3260
  %3262 = vmatmul.bf16.gmra.mxu0 %v3082
  %v3263 = vpop.f32.mrf.mxu0
  %v3264 = vadd.f32 0.0, %v3263
  %v3265 = vpop.f32.mrf.mxu0
  %v3266 = vadd.f32 0.0, %v3265
  %3267 = vmatmul.bf16.gmra.mxu0 %v3083
  %v3268 = vpop.f32.mrf.mxu0
  %v3269 = vadd.f32 0.0, %v3268
  %v3270 = vpop.f32.mrf.mxu0
  %v3271 = vadd.f32 0.0, %v3270
  %3272 = vmatmul.bf16.gmra.mxu0 %v3084
  %v3273 = vpop.f32.mrf.mxu0
  %v3274 = vadd.f32 0.0, %v3273
  %v3275 = vpop.f32.mrf.mxu0
  %v3276 = vadd.f32 0.0, %v3275
  %3277 = vmatmul.bf16.gmra.mxu0 %v3085
  %v3278 = vpop.f32.mrf.mxu0
  %v3279 = vadd.f32 0.0, %v3278
  %v3280 = vpop.f32.mrf.mxu0
  %v3281 = vadd.f32 0.0, %v3280
  %3282 = vmatmul.bf16.gmra.mxu0 %v3086
  %v3283 = vpop.f32.mrf.mxu0
  %v3284 = vadd.f32 0.0, %v3283
  %v3285 = vpop.f32.mrf.mxu0
  %v3286 = vadd.f32 0.0, %v3285
  %3287 = vmatmul.bf16.gmra.mxu0 %v3087
  %v3288 = vpop.f32.mrf.mxu0
  %v3289 = vadd.f32 0.0, %v3288
  %v3290 = vpop.f32.mrf.mxu0
  %v3291 = vadd.f32 0.0, %v3290
  %3292 = vmatmul.bf16.gmra.mxu0 %v3088
  %v3293 = vpop.f32.mrf.mxu0
  %v3294 = vadd.f32 0.0, %v3293
  %v3295 = vpop.f32.mrf.mxu0
  %v3296 = vadd.f32 0.0, %v3295
  %3297 = vmatmul.bf16.gmra.mxu0 %v3089
  %v3298 = vpop.f32.mrf.mxu0
  %v3299 = vadd.f32 0.0, %v3298
  %v3300 = vpop.f32.mrf.mxu0
  %v3301 = vadd.f32 0.0, %v3300
  %3302 = vmatmul.bf16.gmra.mxu0 %v3090
  %v3303 = vpop.f32.mrf.mxu0
  %v3304 = vadd.f32 0.0, %v3303
  %v3305 = vpop.f32.mrf.mxu0
  %v3306 = vadd.f32 0.0, %v3305
  %3307 = vmatmul.bf16.gmra.mxu0 %v3091
  %v3308 = vpop.f32.mrf.mxu0
  %v3309 = vadd.f32 0.0, %v3308
  %v3310 = vpop.f32.mrf.mxu0
  %v3311 = vadd.f32 0.0, %v3310
  %3312 = vmatmul.bf16.gmra.mxu0 %v3092
  %v3313 = vpop.f32.mrf.mxu0
  %v3314 = vadd.f32 0.0, %v3313
  %v3315 = vpop.f32.mrf.mxu0
  %v3316 = vadd.f32 0.0, %v3315
  %3317 = vmatmul.bf16.gmra.mxu0 %v3093
  %v3318 = vpop.f32.mrf.mxu0
  %v3319 = vadd.f32 0.0, %v3318
  %v3320 = vpop.f32.mrf.mxu0
  %v3321 = vadd.f32 0.0, %v3320
  %3322 = vmatmul.bf16.gmra.mxu0 %v3094
  %v3323 = vpop.f32.mrf.mxu0
  %v3324 = vadd.f32 0.0, %v3323
  %v3325 = vpop.f32.mrf.mxu0
  %v3326 = vadd.f32 0.0, %v3325
  %3327 = vmatmul.bf16.gmra.mxu0 %v3095
  %v3328 = vpop.f32.mrf.mxu0
  %v3329 = vadd.f32 0.0, %v3328
  %v3330 = vpop.f32.mrf.mxu0
  %v3331 = vadd.f32 0.0, %v3330
  %3332 = vmatmul.bf16.gmra.mxu0 %v3096
  %v3333 = vpop.f32.mrf.mxu0
  %v3334 = vadd.f32 0.0, %v3333
  %v3335 = vpop.f32.mrf.mxu0
  %v3336 = vadd.f32 0.0, %v3335
  %3337 = vmatmul.bf16.gmra.mxu0 %v3097
  %v3338 = vpop.f32.mrf.mxu0
  %v3339 = vadd.f32 0.0, %v3338
  %v3340 = vpop.f32.mrf.mxu0
  %v3341 = vadd.f32 0.0, %v3340
  %3342 = vmatmul.bf16.gmra.mxu0 %v3098
  %v3343 = vpop.f32.mrf.mxu0
  %v3344 = vadd.f32 0.0, %v3343
  %v3345 = vpop.f32.mrf.mxu0
  %v3346 = vadd.f32 0.0, %v3345
  %3347 = vmatmul.bf16.gmra.mxu0 %v3099
  %v3348 = vpop.f32.mrf.mxu0
  %v3349 = vadd.f32 0.0, %v3348
  %v3350 = vpop.f32.mrf.mxu0
  %v3351 = vadd.f32 0.0, %v3350
  %3352 = vmatmul.bf16.gmra.mxu0 %v3100
  %v3353 = vpop.f32.mrf.mxu0
  %v3354 = vadd.f32 0.0, %v3353
  %v3355 = vpop.f32.mrf.mxu0
  %v3356 = vadd.f32 0.0, %v3355
  %3357 = vmatmul.bf16.gmra.mxu0 %v3101
  %v3358 = vpop.f32.mrf.mxu0
  %v3359 = vadd.f32 0.0, %v3358
  %v3360 = vpop.f32.mrf.mxu0
  %v3361 = vadd.f32 0.0, %v3360
  %3362 = vmatmul.bf16.gmra.mxu0 %v3102
  %v3363 = vpop.f32.mrf.mxu0
  %v3364 = vadd.f32 0.0, %v3363
  %v3365 = vpop.f32.mrf.mxu0
  %v3366 = vadd.f32 0.0, %v3365
  %3367 = vmatmul.bf16.gmra.mxu0 %v3103
  %v3368 = vpop.f32.mrf.mxu0
  %v3369 = vadd.f32 0.0, %v3368
  %v3370 = vpop.f32.mrf.mxu0
  %v3371 = vadd.f32 0.0, %v3370
  %3372 = vmatmul.bf16.gmra.mxu0 %v3104
  %v3373 = vpop.f32.mrf.mxu0
  %v3374 = vadd.f32 0.0, %v3373
  %v3375 = vpop.f32.mrf.mxu0
  %v3376 = vadd.f32 0.0, %v3375
  %3377 = vdwg.mxu0
  %v3378 = vpack.c.bf16 %v3181, %v3179
  %v3379 = vpack.c.bf16 %v3186, %v3184
  %v3380 = vpack.c.bf16 %v3191, %v3189
  %v3381 = vpack.c.bf16 %v3196, %v3194
  %v3382 = vpack.c.bf16 %v3201, %v3199
  %v3383 = vpack.c.bf16 %v3206, %v3204
  %v3384 = vpack.c.bf16 %v3211, %v3209
  %v3385 = vpack.c.bf16 %v3216, %v3214
  %v3386 = vpack.c.bf16 %v3221, %v3219
  %v3387 = vpack.c.bf16 %v3226, %v3224
  %v3388 = vpack.c.bf16 %v3231, %v3229
  %v3389 = vpack.c.bf16 %v3236, %v3234
  %v3390 = vpack.c.bf16 %v3241, %v3239
  %v3391 = vpack.c.bf16 %v3246, %v3244
  %v3392 = vpack.c.bf16 %v3251, %v3249
  %v3393 = vpack.c.bf16 %v3256, %v3254
  %v3394 = vpack.c.bf16 %v3261, %v3259
  %v3395 = vpack.c.bf16 %v3266, %v3264
  %v3396 = vpack.c.bf16 %v3271, %v3269
  %v3397 = vpack.c.bf16 %v3276, %v3274
  %v3398 = vpack.c.bf16 %v3281, %v3279
  %v3399 = vpack.c.bf16 %v3286, %v3284
  %v3400 = vpack.c.bf16 %v3291, %v3289
  %v3401 = vpack.c.bf16 %v3296, %v3294
  %v3402 = vpack.c.bf16 %v3301, %v3299
  %v3403 = vpack.c.bf16 %v3306, %v3304
  %v3404 = vpack.c.bf16 %v3311, %v3309
  %v3405 = vpack.c.bf16 %v3316, %v3314
  %v3406 = vpack.c.bf16 %v3321, %v3319
  %v3407 = vpack.c.bf16 %v3326, %v3324
  %v3408 = vpack.c.bf16 %v3331, %v3329
  %v3409 = vpack.c.bf16 %v3336, %v3334
  %v3410 = vpack.c.bf16 %v3341, %v3339
  %v3411 = vpack.c.bf16 %v3346, %v3344
  %v3412 = vpack.c.bf16 %v3351, %v3349
  %v3413 = vpack.c.bf16 %v3356, %v3354
  %v3414 = vpack.c.bf16 %v3361, %v3359
  %v3415 = vpack.c.bf16 %v3366, %v3364
  %v3416 = vpack.c.bf16 %v3371, %v3369
  %v3417 = vpack.c.bf16 %v3376, %v3374
  %v3418 = vld [vmem:[%s5] sm:$0x1]
  %v3420 = vperm.slane %v3418, 0
  %3422 = vmatpush.bf16.msra.mxu0 %v3385
  %3423 = vmatpush.bf16.msra.mxu0 %v3384
  %3424 = vmatpush.bf16.msra.mxu0 %v3383
  %3425 = vmatpush.bf16.msra.mxu0 %v3382
  %3426 = vmatpush.bf16.msra.mxu0 %v3381
  %3427 = vmatpush.bf16.msra.mxu0 %v3380
  %3428 = vmatpush.bf16.msra.mxu0 %v3379
  %3429 = vmatpush.bf16.msra.mxu0 %v3378
  %3430 = vmatmul.bf16.gmra.mxu0 %v1540
  %v3431 = vpop.f32.mrf.mxu0
  %v3432 = vadd.f32 %v3420, %v3431
  %v3433 = vpop.f32.mrf.mxu0
  %v3434 = vadd.f32 %v3420, %v3433
  %3435 = vmatmul.bf16.gmra.mxu0 %v1545
  %v3436 = vpop.f32.mrf.mxu0
  %v3437 = vadd.f32 %v3420, %v3436
  %v3438 = vpop.f32.mrf.mxu0
  %v3439 = vadd.f32 %v3420, %v3438
  %3440 = vmatmul.bf16.gmra.mxu0 %v1550
  %v3441 = vpop.f32.mrf.mxu0
  %v3442 = vadd.f32 %v3420, %v3441
  %v3443 = vpop.f32.mrf.mxu0
  %v3444 = vadd.f32 %v3420, %v3443
  %3445 = vmatmul.bf16.gmra.mxu0 %v1555
  %v3446 = vpop.f32.mrf.mxu0
  %v3447 = vadd.f32 %v3420, %v3446
  %v3448 = vpop.f32.mrf.mxu0
  %v3449 = vadd.f32 %v3420, %v3448
  %3450 = vmatmul.bf16.gmra.mxu0 %v1560
  %v3451 = vpop.f32.mrf.mxu0
  %v3452 = vadd.f32 %v3420, %v3451
  %v3453 = vpop.f32.mrf.mxu0
  %v3454 = vadd.f32 %v3420, %v3453
  %3455 = vmatmul.bf16.gmra.mxu0 %v1565
  %v3456 = vpop.f32.mrf.mxu0
  %v3457 = vadd.f32 %v3420, %v3456
  %v3458 = vpop.f32.mrf.mxu0
  %v3459 = vadd.f32 %v3420, %v3458
  %3460 = vmatmul.bf16.gmra.mxu0 %v1570
  %v3461 = vpop.f32.mrf.mxu0
  %v3462 = vadd.f32 %v3420, %v3461
  %v3463 = vpop.f32.mrf.mxu0
  %v3464 = vadd.f32 %v3420, %v3463
  %3465 = vmatmul.bf16.gmra.mxu0 %v1575
  %v3466 = vpop.f32.mrf.mxu0
  %v3467 = vadd.f32 %v3420, %v3466
  %v3468 = vpop.f32.mrf.mxu0
  %v3469 = vadd.f32 %v3420, %v3468
  %3470 = vmatmul.bf16.gmra.mxu0 %v1580
  %v3471 = vpop.f32.mrf.mxu0
  %v3472 = vadd.f32 %v3420, %v3471
  %v3473 = vpop.f32.mrf.mxu0
  %v3474 = vadd.f32 %v3420, %v3473
  %3475 = vmatmul.bf16.gmra.mxu0 %v1585
  %v3476 = vpop.f32.mrf.mxu0
  %v3477 = vadd.f32 %v3420, %v3476
  %v3478 = vpop.f32.mrf.mxu0
  %v3479 = vadd.f32 %v3420, %v3478
  %3480 = vmatmul.bf16.gmra.mxu0 %v1590
  %v3481 = vpop.f32.mrf.mxu0
  %v3482 = vadd.f32 %v3420, %v3481
  %v3483 = vpop.f32.mrf.mxu0
  %v3484 = vadd.f32 %v3420, %v3483
  %3485 = vmatmul.bf16.gmra.mxu0 %v1595
  %v3486 = vpop.f32.mrf.mxu0
  %v3487 = vadd.f32 %v3420, %v3486
  %v3488 = vpop.f32.mrf.mxu0
  %v3489 = vadd.f32 %v3420, %v3488
  %3490 = vmatmul.bf16.gmra.mxu0 %v1600
  %v3491 = vpop.f32.mrf.mxu0
  %v3492 = vadd.f32 %v3420, %v3491
  %v3493 = vpop.f32.mrf.mxu0
  %v3494 = vadd.f32 %v3420, %v3493
  %3495 = vmatmul.bf16.gmra.mxu0 %v1605
  %v3496 = vpop.f32.mrf.mxu0
  %v3497 = vadd.f32 %v3420, %v3496
  %v3498 = vpop.f32.mrf.mxu0
  %v3499 = vadd.f32 %v3420, %v3498
  %3500 = vmatmul.bf16.gmra.mxu0 %v1610
  %v3501 = vpop.f32.mrf.mxu0
  %v3502 = vadd.f32 %v3420, %v3501
  %v3503 = vpop.f32.mrf.mxu0
  %v3504 = vadd.f32 %v3420, %v3503
  %3505 = vmatmul.bf16.gmra.mxu0 %v1615
  %v3506 = vpop.f32.mrf.mxu0
  %v3507 = vadd.f32 %v3420, %v3506
  %v3508 = vpop.f32.mrf.mxu0
  %v3509 = vadd.f32 %v3420, %v3508
  %3510 = vmatmul.bf16.gmra.mxu0 %v1620
  %v3511 = vpop.f32.mrf.mxu0
  %v3512 = vadd.f32 %v3420, %v3511
  %v3513 = vpop.f32.mrf.mxu0
  %v3514 = vadd.f32 %v3420, %v3513
  %3515 = vmatmul.bf16.gmra.mxu0 %v1625
  %v3516 = vpop.f32.mrf.mxu0
  %v3517 = vadd.f32 %v3420, %v3516
  %v3518 = vpop.f32.mrf.mxu0
  %v3519 = vadd.f32 %v3420, %v3518
  %3520 = vmatmul.bf16.gmra.mxu0 %v1630
  %v3521 = vpop.f32.mrf.mxu0
  %v3522 = vadd.f32 %v3420, %v3521
  %v3523 = vpop.f32.mrf.mxu0
  %v3524 = vadd.f32 %v3420, %v3523
  %3525 = vmatmul.bf16.gmra.mxu0 %v1635
  %v3526 = vpop.f32.mrf.mxu0
  %v3527 = vadd.f32 %v3420, %v3526
  %v3528 = vpop.f32.mrf.mxu0
  %v3529 = vadd.f32 %v3420, %v3528
  %3530 = vmatmul.bf16.gmra.mxu0 %v1640
  %v3531 = vpop.f32.mrf.mxu0
  %v3532 = vadd.f32 %v3420, %v3531
  %v3533 = vpop.f32.mrf.mxu0
  %v3534 = vadd.f32 %v3420, %v3533
  %3535 = vmatmul.bf16.gmra.mxu0 %v1645
  %v3536 = vpop.f32.mrf.mxu0
  %v3537 = vadd.f32 %v3420, %v3536
  %v3538 = vpop.f32.mrf.mxu0
  %v3539 = vadd.f32 %v3420, %v3538
  %3540 = vmatmul.bf16.gmra.mxu0 %v1650
  %v3541 = vpop.f32.mrf.mxu0
  %v3542 = vadd.f32 %v3420, %v3541
  %v3543 = vpop.f32.mrf.mxu0
  %v3544 = vadd.f32 %v3420, %v3543
  %3545 = vmatmul.bf16.gmra.mxu0 %v1655
  %v3546 = vpop.f32.mrf.mxu0
  %v3547 = vadd.f32 %v3420, %v3546
  %v3548 = vpop.f32.mrf.mxu0
  %v3549 = vadd.f32 %v3420, %v3548
  %3550 = vmatmul.bf16.gmra.mxu0 %v1660
  %v3551 = vpop.f32.mrf.mxu0
  %v3552 = vadd.f32 %v3420, %v3551
  %v3553 = vpop.f32.mrf.mxu0
  %v3554 = vadd.f32 %v3420, %v3553
  %3555 = vmatmul.bf16.gmra.mxu0 %v1665
  %v3556 = vpop.f32.mrf.mxu0
  %v3557 = vadd.f32 %v3420, %v3556
  %v3558 = vpop.f32.mrf.mxu0
  %v3559 = vadd.f32 %v3420, %v3558
  %3560 = vmatmul.bf16.gmra.mxu0 %v1670
  %v3561 = vpop.f32.mrf.mxu0
  %v3562 = vadd.f32 %v3420, %v3561
  %v3563 = vpop.f32.mrf.mxu0
  %v3564 = vadd.f32 %v3420, %v3563
  %3565 = vmatmul.bf16.gmra.mxu0 %v1675
  %v3566 = vpop.f32.mrf.mxu0
  %v3567 = vadd.f32 %v3420, %v3566
  %v3568 = vpop.f32.mrf.mxu0
  %v3569 = vadd.f32 %v3420, %v3568
  %3570 = vmatmul.bf16.gmra.mxu0 %v1680
  %v3571 = vpop.f32.mrf.mxu0
  %v3572 = vadd.f32 %v3420, %v3571
  %v3573 = vpop.f32.mrf.mxu0
  %v3574 = vadd.f32 %v3420, %v3573
  %3575 = vmatmul.bf16.gmra.mxu0 %v1685
  %v3576 = vpop.f32.mrf.mxu0
  %v3577 = vadd.f32 %v3420, %v3576
  %v3578 = vpop.f32.mrf.mxu0
  %v3579 = vadd.f32 %v3420, %v3578
  %3580 = vmatmul.bf16.gmra.mxu0 %v1690
  %v3581 = vpop.f32.mrf.mxu0
  %v3582 = vadd.f32 %v3420, %v3581
  %v3583 = vpop.f32.mrf.mxu0
  %v3584 = vadd.f32 %v3420, %v3583
  %3585 = vmatmul.bf16.gmra.mxu0 %v1695
  %v3586 = vpop.f32.mrf.mxu0
  %v3587 = vadd.f32 %v3420, %v3586
  %v3588 = vpop.f32.mrf.mxu0
  %v3589 = vadd.f32 %v3420, %v3588
  %3590 = vmatmul.bf16.gmra.mxu0 %v1700
  %v3591 = vpop.f32.mrf.mxu0
  %v3592 = vadd.f32 %v3420, %v3591
  %v3593 = vpop.f32.mrf.mxu0
  %v3594 = vadd.f32 %v3420, %v3593
  %3595 = vmatmul.bf16.gmra.mxu0 %v1705
  %v3596 = vpop.f32.mrf.mxu0
  %v3597 = vadd.f32 %v3420, %v3596
  %v3598 = vpop.f32.mrf.mxu0
  %v3599 = vadd.f32 %v3420, %v3598
  %3600 = vmatmul.bf16.gmra.mxu0 %v1710
  %v3601 = vpop.f32.mrf.mxu0
  %v3602 = vadd.f32 %v3420, %v3601
  %v3603 = vpop.f32.mrf.mxu0
  %v3604 = vadd.f32 %v3420, %v3603
  %3605 = vmatmul.bf16.gmra.mxu0 %v1715
  %v3606 = vpop.f32.mrf.mxu0
  %v3607 = vadd.f32 %v3420, %v3606
  %v3608 = vpop.f32.mrf.mxu0
  %v3609 = vadd.f32 %v3420, %v3608
  %3610 = vmatmul.bf16.gmra.mxu0 %v1720
  %v3611 = vpop.f32.mrf.mxu0
  %v3612 = vadd.f32 %v3420, %v3611
  %v3613 = vpop.f32.mrf.mxu0
  %v3614 = vadd.f32 %v3420, %v3613
  %3615 = vmatmul.bf16.gmra.mxu0 %v1725
  %v3616 = vpop.f32.mrf.mxu0
  %v3617 = vadd.f32 %v3420, %v3616
  %v3618 = vpop.f32.mrf.mxu0
  %v3619 = vadd.f32 %v3420, %v3618
  %3620 = vmatmul.bf16.gmra.mxu0 %v1730
  %v3621 = vpop.f32.mrf.mxu0
  %v3622 = vadd.f32 %v3420, %v3621
  %v3623 = vpop.f32.mrf.mxu0
  %v3624 = vadd.f32 %v3420, %v3623
  %3625 = vmatmul.bf16.gmra.mxu0 %v1735
  %v3626 = vpop.f32.mrf.mxu0
  %v3627 = vadd.f32 %v3420, %v3626
  %v3628 = vpop.f32.mrf.mxu0
  %v3629 = vadd.f32 %v3420, %v3628
  %3630 = vdwg.mxu0
  %3631 = vmatpush.bf16.msra.mxu0 %v3393
  %3632 = vmatpush.bf16.msra.mxu0 %v3392
  %3633 = vmatpush.bf16.msra.mxu0 %v3391
  %3634 = vmatpush.bf16.msra.mxu0 %v3390
  %3635 = vmatpush.bf16.msra.mxu0 %v3389
  %3636 = vmatpush.bf16.msra.mxu0 %v3388
  %3637 = vmatpush.bf16.msra.mxu0 %v3387
  %3638 = vmatpush.bf16.msra.mxu0 %v3386
  %3639 = vmatmul.bf16.gmra.mxu0 %v1541
  %v3640 = vpop.f32.mrf.mxu0
  %v3641 = vadd.f32 %v3432, %v3640
  %v3642 = vpop.f32.mrf.mxu0
  %v3643 = vadd.f32 %v3434, %v3642
  %3644 = vmatmul.bf16.gmra.mxu0 %v1546
  %v3645 = vpop.f32.mrf.mxu0
  %v3646 = vadd.f32 %v3437, %v3645
  %v3647 = vpop.f32.mrf.mxu0
  %v3648 = vadd.f32 %v3439, %v3647
  %3649 = vmatmul.bf16.gmra.mxu0 %v1551
  %v3650 = vpop.f32.mrf.mxu0
  %v3651 = vadd.f32 %v3442, %v3650
  %v3652 = vpop.f32.mrf.mxu0
  %v3653 = vadd.f32 %v3444, %v3652
  %3654 = vmatmul.bf16.gmra.mxu0 %v1556
  %v3655 = vpop.f32.mrf.mxu0
  %v3656 = vadd.f32 %v3447, %v3655
  %v3657 = vpop.f32.mrf.mxu0
  %v3658 = vadd.f32 %v3449, %v3657
  %3659 = vmatmul.bf16.gmra.mxu0 %v1561
  %v3660 = vpop.f32.mrf.mxu0
  %v3661 = vadd.f32 %v3452, %v3660
  %v3662 = vpop.f32.mrf.mxu0
  %v3663 = vadd.f32 %v3454, %v3662
  %3664 = vmatmul.bf16.gmra.mxu0 %v1566
  %v3665 = vpop.f32.mrf.mxu0
  %v3666 = vadd.f32 %v3457, %v3665
  %v3667 = vpop.f32.mrf.mxu0
  %v3668 = vadd.f32 %v3459, %v3667
  %3669 = vmatmul.bf16.gmra.mxu0 %v1571
  %v3670 = vpop.f32.mrf.mxu0
  %v3671 = vadd.f32 %v3462, %v3670
  %v3672 = vpop.f32.mrf.mxu0
  %v3673 = vadd.f32 %v3464, %v3672
  %3674 = vmatmul.bf16.gmra.mxu0 %v1576
  %v3675 = vpop.f32.mrf.mxu0
  %v3676 = vadd.f32 %v3467, %v3675
  %v3677 = vpop.f32.mrf.mxu0
  %v3678 = vadd.f32 %v3469, %v3677
  %3679 = vmatmul.bf16.gmra.mxu0 %v1581
  %v3680 = vpop.f32.mrf.mxu0
  %v3681 = vadd.f32 %v3472, %v3680
  %v3682 = vpop.f32.mrf.mxu0
  %v3683 = vadd.f32 %v3474, %v3682
  %3684 = vmatmul.bf16.gmra.mxu0 %v1586
  %v3685 = vpop.f32.mrf.mxu0
  %v3686 = vadd.f32 %v3477, %v3685
  %v3687 = vpop.f32.mrf.mxu0
  %v3688 = vadd.f32 %v3479, %v3687
  %3689 = vmatmul.bf16.gmra.mxu0 %v1591
  %v3690 = vpop.f32.mrf.mxu0
  %v3691 = vadd.f32 %v3482, %v3690
  %v3692 = vpop.f32.mrf.mxu0
  %v3693 = vadd.f32 %v3484, %v3692
  %3694 = vmatmul.bf16.gmra.mxu0 %v1596
  %v3695 = vpop.f32.mrf.mxu0
  %v3696 = vadd.f32 %v3487, %v3695
  %v3697 = vpop.f32.mrf.mxu0
  %v3698 = vadd.f32 %v3489, %v3697
  %3699 = vmatmul.bf16.gmra.mxu0 %v1601
  %v3700 = vpop.f32.mrf.mxu0
  %v3701 = vadd.f32 %v3492, %v3700
  %v3702 = vpop.f32.mrf.mxu0
  %v3703 = vadd.f32 %v3494, %v3702
  %3704 = vmatmul.bf16.gmra.mxu0 %v1606
  %v3705 = vpop.f32.mrf.mxu0
  %v3706 = vadd.f32 %v3497, %v3705
  %v3707 = vpop.f32.mrf.mxu0
  %v3708 = vadd.f32 %v3499, %v3707
  %3709 = vmatmul.bf16.gmra.mxu0 %v1611
  %v3710 = vpop.f32.mrf.mxu0
  %v3711 = vadd.f32 %v3502, %v3710
  %v3712 = vpop.f32.mrf.mxu0
  %v3713 = vadd.f32 %v3504, %v3712
  %3714 = vmatmul.bf16.gmra.mxu0 %v1616
  %v3715 = vpop.f32.mrf.mxu0
  %v3716 = vadd.f32 %v3507, %v3715
  %v3717 = vpop.f32.mrf.mxu0
  %v3718 = vadd.f32 %v3509, %v3717
  %3719 = vmatmul.bf16.gmra.mxu0 %v1621
  %v3720 = vpop.f32.mrf.mxu0
  %v3721 = vadd.f32 %v3512, %v3720
  %v3722 = vpop.f32.mrf.mxu0
  %v3723 = vadd.f32 %v3514, %v3722
  %3724 = vmatmul.bf16.gmra.mxu0 %v1626
  %v3725 = vpop.f32.mrf.mxu0
  %v3726 = vadd.f32 %v3517, %v3725
  %v3727 = vpop.f32.mrf.mxu0
  %v3728 = vadd.f32 %v3519, %v3727
  %3729 = vmatmul.bf16.gmra.mxu0 %v1631
  %v3730 = vpop.f32.mrf.mxu0
  %v3731 = vadd.f32 %v3522, %v3730
  %v3732 = vpop.f32.mrf.mxu0
  %v3733 = vadd.f32 %v3524, %v3732
  %3734 = vmatmul.bf16.gmra.mxu0 %v1636
  %v3735 = vpop.f32.mrf.mxu0
  %v3736 = vadd.f32 %v3527, %v3735
  %v3737 = vpop.f32.mrf.mxu0
  %v3738 = vadd.f32 %v3529, %v3737
  %3739 = vmatmul.bf16.gmra.mxu0 %v1641
  %v3740 = vpop.f32.mrf.mxu0
  %v3741 = vadd.f32 %v3532, %v3740
  %v3742 = vpop.f32.mrf.mxu0
  %v3743 = vadd.f32 %v3534, %v3742
  %3744 = vmatmul.bf16.gmra.mxu0 %v1646
  %v3745 = vpop.f32.mrf.mxu0
  %v3746 = vadd.f32 %v3537, %v3745
  %v3747 = vpop.f32.mrf.mxu0
  %v3748 = vadd.f32 %v3539, %v3747
  %3749 = vmatmul.bf16.gmra.mxu0 %v1651
  %v3750 = vpop.f32.mrf.mxu0
  %v3751 = vadd.f32 %v3542, %v3750
  %v3752 = vpop.f32.mrf.mxu0
  %v3753 = vadd.f32 %v3544, %v3752
  %3754 = vmatmul.bf16.gmra.mxu0 %v1656
  %v3755 = vpop.f32.mrf.mxu0
  %v3756 = vadd.f32 %v3547, %v3755
  %v3757 = vpop.f32.mrf.mxu0
  %v3758 = vadd.f32 %v3549, %v3757
  %3759 = vmatmul.bf16.gmra.mxu0 %v1661
  %v3760 = vpop.f32.mrf.mxu0
  %v3761 = vadd.f32 %v3552, %v3760
  %v3762 = vpop.f32.mrf.mxu0
  %v3763 = vadd.f32 %v3554, %v3762
  %3764 = vmatmul.bf16.gmra.mxu0 %v1666
  %v3765 = vpop.f32.mrf.mxu0
  %v3766 = vadd.f32 %v3557, %v3765
  %v3767 = vpop.f32.mrf.mxu0
  %v3768 = vadd.f32 %v3559, %v3767
  %3769 = vmatmul.bf16.gmra.mxu0 %v1671
  %v3770 = vpop.f32.mrf.mxu0
  %v3771 = vadd.f32 %v3562, %v3770
  %v3772 = vpop.f32.mrf.mxu0
  %v3773 = vadd.f32 %v3564, %v3772
  %3774 = vmatmul.bf16.gmra.mxu0 %v1676
  %v3775 = vpop.f32.mrf.mxu0
  %v3776 = vadd.f32 %v3567, %v3775
  %v3777 = vpop.f32.mrf.mxu0
  %v3778 = vadd.f32 %v3569, %v3777
  %3779 = vmatmul.bf16.gmra.mxu0 %v1681
  %v3780 = vpop.f32.mrf.mxu0
  %v3781 = vadd.f32 %v3572, %v3780
  %v3782 = vpop.f32.mrf.mxu0
  %v3783 = vadd.f32 %v3574, %v3782
  %3784 = vmatmul.bf16.gmra.mxu0 %v1686
  %v3785 = vpop.f32.mrf.mxu0
  %v3786 = vadd.f32 %v3577, %v3785
  %v3787 = vpop.f32.mrf.mxu0
  %v3788 = vadd.f32 %v3579, %v3787
  %3789 = vmatmul.bf16.gmra.mxu0 %v1691
  %v3790 = vpop.f32.mrf.mxu0
  %v3791 = vadd.f32 %v3582, %v3790
  %v3792 = vpop.f32.mrf.mxu0
  %v3793 = vadd.f32 %v3584, %v3792
  %3794 = vmatmul.bf16.gmra.mxu0 %v1696
  %v3795 = vpop.f32.mrf.mxu0
  %v3796 = vadd.f32 %v3587, %v3795
  %v3797 = vpop.f32.mrf.mxu0
  %v3798 = vadd.f32 %v3589, %v3797
  %3799 = vmatmul.bf16.gmra.mxu0 %v1701
  %v3800 = vpop.f32.mrf.mxu0
  %v3801 = vadd.f32 %v3592, %v3800
  %v3802 = vpop.f32.mrf.mxu0
  %v3803 = vadd.f32 %v3594, %v3802
  %3804 = vmatmul.bf16.gmra.mxu0 %v1706
  %v3805 = vpop.f32.mrf.mxu0
  %v3806 = vadd.f32 %v3597, %v3805
  %v3807 = vpop.f32.mrf.mxu0
  %v3808 = vadd.f32 %v3599, %v3807
  %3809 = vmatmul.bf16.gmra.mxu0 %v1711
  %v3810 = vpop.f32.mrf.mxu0
  %v3811 = vadd.f32 %v3602, %v3810
  %v3812 = vpop.f32.mrf.mxu0
  %v3813 = vadd.f32 %v3604, %v3812
  %3814 = vmatmul.bf16.gmra.mxu0 %v1716
  %v3815 = vpop.f32.mrf.mxu0
  %v3816 = vadd.f32 %v3607, %v3815
  %v3817 = vpop.f32.mrf.mxu0
  %v3818 = vadd.f32 %v3609, %v3817
  %3819 = vmatmul.bf16.gmra.mxu0 %v1721
  %v3820 = vpop.f32.mrf.mxu0
  %v3821 = vadd.f32 %v3612, %v3820
  %v3822 = vpop.f32.mrf.mxu0
  %v3823 = vadd.f32 %v3614, %v3822
  %3824 = vmatmul.bf16.gmra.mxu0 %v1726
  %v3825 = vpop.f32.mrf.mxu0
  %v3826 = vadd.f32 %v3617, %v3825
  %v3827 = vpop.f32.mrf.mxu0
  %v3828 = vadd.f32 %v3619, %v3827
  %3829 = vmatmul.bf16.gmra.mxu0 %v1731
  %v3830 = vpop.f32.mrf.mxu0
  %v3831 = vadd.f32 %v3622, %v3830
  %v3832 = vpop.f32.mrf.mxu0
  %v3833 = vadd.f32 %v3624, %v3832
  %3834 = vmatmul.bf16.gmra.mxu0 %v1736
  %v3835 = vpop.f32.mrf.mxu0
  %v3836 = vadd.f32 %v3627, %v3835
  %v3837 = vpop.f32.mrf.mxu0
  %v3838 = vadd.f32 %v3629, %v3837
  %3839 = vdwg.mxu0
  %3840 = vmatpush.bf16.msra.mxu0 %v3401
  %3841 = vmatpush.bf16.msra.mxu0 %v3400
  %3842 = vmatpush.bf16.msra.mxu0 %v3399
  %3843 = vmatpush.bf16.msra.mxu0 %v3398
  %3844 = vmatpush.bf16.msra.mxu0 %v3397
  %3845 = vmatpush.bf16.msra.mxu0 %v3396
  %3846 = vmatpush.bf16.msra.mxu0 %v3395
  %3847 = vmatpush.bf16.msra.mxu0 %v3394
  %3848 = vmatmul.bf16.gmra.mxu0 %v1542
  %v3849 = vpop.f32.mrf.mxu0
  %v3850 = vadd.f32 %v3641, %v3849
  %v3851 = vpop.f32.mrf.mxu0
  %v3852 = vadd.f32 %v3643, %v3851
  %3853 = vmatmul.bf16.gmra.mxu0 %v1547
  %v3854 = vpop.f32.mrf.mxu0
  %v3855 = vadd.f32 %v3646, %v3854
  %v3856 = vpop.f32.mrf.mxu0
  %v3857 = vadd.f32 %v3648, %v3856
  %3858 = vmatmul.bf16.gmra.mxu0 %v1552
  %v3859 = vpop.f32.mrf.mxu0
  %v3860 = vadd.f32 %v3651, %v3859
  %v3861 = vpop.f32.mrf.mxu0
  %v3862 = vadd.f32 %v3653, %v3861
  %3863 = vmatmul.bf16.gmra.mxu0 %v1557
  %v3864 = vpop.f32.mrf.mxu0
  %v3865 = vadd.f32 %v3656, %v3864
  %v3866 = vpop.f32.mrf.mxu0
  %v3867 = vadd.f32 %v3658, %v3866
  %3868 = vmatmul.bf16.gmra.mxu0 %v1562
  %v3869 = vpop.f32.mrf.mxu0
  %v3870 = vadd.f32 %v3661, %v3869
  %v3871 = vpop.f32.mrf.mxu0
  %v3872 = vadd.f32 %v3663, %v3871
  %3873 = vmatmul.bf16.gmra.mxu0 %v1567
  %v3874 = vpop.f32.mrf.mxu0
  %v3875 = vadd.f32 %v3666, %v3874
  %v3876 = vpop.f32.mrf.mxu0
  %v3877 = vadd.f32 %v3668, %v3876
  %3878 = vmatmul.bf16.gmra.mxu0 %v1572
  %v3879 = vpop.f32.mrf.mxu0
  %v3880 = vadd.f32 %v3671, %v3879
  %v3881 = vpop.f32.mrf.mxu0
  %v3882 = vadd.f32 %v3673, %v3881
  %3883 = vmatmul.bf16.gmra.mxu0 %v1577
  %v3884 = vpop.f32.mrf.mxu0
  %v3885 = vadd.f32 %v3676, %v3884
  %v3886 = vpop.f32.mrf.mxu0
  %v3887 = vadd.f32 %v3678, %v3886
  %3888 = vmatmul.bf16.gmra.mxu0 %v1582
  %v3889 = vpop.f32.mrf.mxu0
  %v3890 = vadd.f32 %v3681, %v3889
  %v3891 = vpop.f32.mrf.mxu0
  %v3892 = vadd.f32 %v3683, %v3891
  %3893 = vmatmul.bf16.gmra.mxu0 %v1587
  %v3894 = vpop.f32.mrf.mxu0
  %v3895 = vadd.f32 %v3686, %v3894
  %v3896 = vpop.f32.mrf.mxu0
  %v3897 = vadd.f32 %v3688, %v3896
  %3898 = vmatmul.bf16.gmra.mxu0 %v1592
  %v3899 = vpop.f32.mrf.mxu0
  %v3900 = vadd.f32 %v3691, %v3899
  %v3901 = vpop.f32.mrf.mxu0
  %v3902 = vadd.f32 %v3693, %v3901
  %3903 = vmatmul.bf16.gmra.mxu0 %v1597
  %v3904 = vpop.f32.mrf.mxu0
  %v3905 = vadd.f32 %v3696, %v3904
  %v3906 = vpop.f32.mrf.mxu0
  %v3907 = vadd.f32 %v3698, %v3906
  %3908 = vmatmul.bf16.gmra.mxu0 %v1602
  %v3909 = vpop.f32.mrf.mxu0
  %v3910 = vadd.f32 %v3701, %v3909
  %v3911 = vpop.f32.mrf.mxu0
  %v3912 = vadd.f32 %v3703, %v3911
  %3913 = vmatmul.bf16.gmra.mxu0 %v1607
  %v3914 = vpop.f32.mrf.mxu0
  %v3915 = vadd.f32 %v3706, %v3914
  %v3916 = vpop.f32.mrf.mxu0
  %v3917 = vadd.f32 %v3708, %v3916
  %3918 = vmatmul.bf16.gmra.mxu0 %v1612
  %v3919 = vpop.f32.mrf.mxu0
  %v3920 = vadd.f32 %v3711, %v3919
  %v3921 = vpop.f32.mrf.mxu0
  %v3922 = vadd.f32 %v3713, %v3921
  %3923 = vmatmul.bf16.gmra.mxu0 %v1617
  %v3924 = vpop.f32.mrf.mxu0
  %v3925 = vadd.f32 %v3716, %v3924
  %v3926 = vpop.f32.mrf.mxu0
  %v3927 = vadd.f32 %v3718, %v3926
  %3928 = vmatmul.bf16.gmra.mxu0 %v1622
  %v3929 = vpop.f32.mrf.mxu0
  %v3930 = vadd.f32 %v3721, %v3929
  %v3931 = vpop.f32.mrf.mxu0
  %v3932 = vadd.f32 %v3723, %v3931
  %3933 = vmatmul.bf16.gmra.mxu0 %v1627
  %v3934 = vpop.f32.mrf.mxu0
  %v3935 = vadd.f32 %v3726, %v3934
  %v3936 = vpop.f32.mrf.mxu0
  %v3937 = vadd.f32 %v3728, %v3936
  %3938 = vmatmul.bf16.gmra.mxu0 %v1632
  %v3939 = vpop.f32.mrf.mxu0
  %v3940 = vadd.f32 %v3731, %v3939
  %v3941 = vpop.f32.mrf.mxu0
  %v3942 = vadd.f32 %v3733, %v3941
  %3943 = vmatmul.bf16.gmra.mxu0 %v1637
  %v3944 = vpop.f32.mrf.mxu0
  %v3945 = vadd.f32 %v3736, %v3944
  %v3946 = vpop.f32.mrf.mxu0
  %v3947 = vadd.f32 %v3738, %v3946
  %3948 = vmatmul.bf16.gmra.mxu0 %v1642
  %v3949 = vpop.f32.mrf.mxu0
  %v3950 = vadd.f32 %v3741, %v3949
  %v3951 = vpop.f32.mrf.mxu0
  %v3952 = vadd.f32 %v3743, %v3951
  %3953 = vmatmul.bf16.gmra.mxu0 %v1647
  %v3954 = vpop.f32.mrf.mxu0
  %v3955 = vadd.f32 %v3746, %v3954
  %v3956 = vpop.f32.mrf.mxu0
  %v3957 = vadd.f32 %v3748, %v3956
  %3958 = vmatmul.bf16.gmra.mxu0 %v1652
  %v3959 = vpop.f32.mrf.mxu0
  %v3960 = vadd.f32 %v3751, %v3959
  %v3961 = vpop.f32.mrf.mxu0
  %v3962 = vadd.f32 %v3753, %v3961
  %3963 = vmatmul.bf16.gmra.mxu0 %v1657
  %v3964 = vpop.f32.mrf.mxu0
  %v3965 = vadd.f32 %v3756, %v3964
  %v3966 = vpop.f32.mrf.mxu0
  %v3967 = vadd.f32 %v3758, %v3966
  %3968 = vmatmul.bf16.gmra.mxu0 %v1662
  %v3969 = vpop.f32.mrf.mxu0
  %v3970 = vadd.f32 %v3761, %v3969
  %v3971 = vpop.f32.mrf.mxu0
  %v3972 = vadd.f32 %v3763, %v3971
  %3973 = vmatmul.bf16.gmra.mxu0 %v1667
  %v3974 = vpop.f32.mrf.mxu0
  %v3975 = vadd.f32 %v3766, %v3974
  %v3976 = vpop.f32.mrf.mxu0
  %v3977 = vadd.f32 %v3768, %v3976
  %3978 = vmatmul.bf16.gmra.mxu0 %v1672
  %v3979 = vpop.f32.mrf.mxu0
  %v3980 = vadd.f32 %v3771, %v3979
  %v3981 = vpop.f32.mrf.mxu0
  %v3982 = vadd.f32 %v3773, %v3981
  %3983 = vmatmul.bf16.gmra.mxu0 %v1677
  %v3984 = vpop.f32.mrf.mxu0
  %v3985 = vadd.f32 %v3776, %v3984
  %v3986 = vpop.f32.mrf.mxu0
  %v3987 = vadd.f32 %v3778, %v3986
  %3988 = vmatmul.bf16.gmra.mxu0 %v1682
  %v3989 = vpop.f32.mrf.mxu0
  %v3990 = vadd.f32 %v3781, %v3989
  %v3991 = vpop.f32.mrf.mxu0
  %v3992 = vadd.f32 %v3783, %v3991
  %3993 = vmatmul.bf16.gmra.mxu0 %v1687
  %v3994 = vpop.f32.mrf.mxu0
  %v3995 = vadd.f32 %v3786, %v3994
  %v3996 = vpop.f32.mrf.mxu0
  %v3997 = vadd.f32 %v3788, %v3996
  %3998 = vmatmul.bf16.gmra.mxu0 %v1692
  %v3999 = vpop.f32.mrf.mxu0
  %v4000 = vadd.f32 %v3791, %v3999
  %v4001 = vpop.f32.mrf.mxu0
  %v4002 = vadd.f32 %v3793, %v4001
  %4003 = vmatmul.bf16.gmra.mxu0 %v1697
  %v4004 = vpop.f32.mrf.mxu0
  %v4005 = vadd.f32 %v3796, %v4004
  %v4006 = vpop.f32.mrf.mxu0
  %v4007 = vadd.f32 %v3798, %v4006
  %4008 = vmatmul.bf16.gmra.mxu0 %v1702
  %v4009 = vpop.f32.mrf.mxu0
  %v4010 = vadd.f32 %v3801, %v4009
  %v4011 = vpop.f32.mrf.mxu0
  %v4012 = vadd.f32 %v3803, %v4011
  %4013 = vmatmul.bf16.gmra.mxu0 %v1707
  %v4014 = vpop.f32.mrf.mxu0
  %v4015 = vadd.f32 %v3806, %v4014
  %v4016 = vpop.f32.mrf.mxu0
  %v4017 = vadd.f32 %v3808, %v4016
  %4018 = vmatmul.bf16.gmra.mxu0 %v1712
  %v4019 = vpop.f32.mrf.mxu0
  %v4020 = vadd.f32 %v3811, %v4019
  %v4021 = vpop.f32.mrf.mxu0
  %v4022 = vadd.f32 %v3813, %v4021
  %4023 = vmatmul.bf16.gmra.mxu0 %v1717
  %v4024 = vpop.f32.mrf.mxu0
  %v4025 = vadd.f32 %v3816, %v4024
  %v4026 = vpop.f32.mrf.mxu0
  %v4027 = vadd.f32 %v3818, %v4026
  %4028 = vmatmul.bf16.gmra.mxu0 %v1722
  %v4029 = vpop.f32.mrf.mxu0
  %v4030 = vadd.f32 %v3821, %v4029
  %v4031 = vpop.f32.mrf.mxu0
  %v4032 = vadd.f32 %v3823, %v4031
  %4033 = vmatmul.bf16.gmra.mxu0 %v1727
  %v4034 = vpop.f32.mrf.mxu0
  %v4035 = vadd.f32 %v3826, %v4034
  %v4036 = vpop.f32.mrf.mxu0
  %v4037 = vadd.f32 %v3828, %v4036
  %4038 = vmatmul.bf16.gmra.mxu0 %v1732
  %v4039 = vpop.f32.mrf.mxu0
  %v4040 = vadd.f32 %v3831, %v4039
  %v4041 = vpop.f32.mrf.mxu0
  %v4042 = vadd.f32 %v3833, %v4041
  %4043 = vmatmul.bf16.gmra.mxu0 %v1737
  %v4044 = vpop.f32.mrf.mxu0
  %v4045 = vadd.f32 %v3836, %v4044
  %v4046 = vpop.f32.mrf.mxu0
  %v4047 = vadd.f32 %v3838, %v4046
  %4048 = vdwg.mxu0
  %4049 = vmatpush.bf16.msra.mxu0 %v3409
  %4050 = vmatpush.bf16.msra.mxu0 %v3408
  %4051 = vmatpush.bf16.msra.mxu0 %v3407
  %4052 = vmatpush.bf16.msra.mxu0 %v3406
  %4053 = vmatpush.bf16.msra.mxu0 %v3405
  %4054 = vmatpush.bf16.msra.mxu0 %v3404
  %4055 = vmatpush.bf16.msra.mxu0 %v3403
  %4056 = vmatpush.bf16.msra.mxu0 %v3402
  %4057 = vmatmul.bf16.gmra.mxu0 %v1543
  %v4058 = vpop.f32.mrf.mxu0
  %v4059 = vadd.f32 %v3850, %v4058
  %v4060 = vpop.f32.mrf.mxu0
  %v4061 = vadd.f32 %v3852, %v4060
  %4062 = vmatmul.bf16.gmra.mxu0 %v1548
  %v4063 = vpop.f32.mrf.mxu0
  %v4064 = vadd.f32 %v3855, %v4063
  %v4065 = vpop.f32.mrf.mxu0
  %v4066 = vadd.f32 %v3857, %v4065
  %4067 = vmatmul.bf16.gmra.mxu0 %v1553
  %v4068 = vpop.f32.mrf.mxu0
  %v4069 = vadd.f32 %v3860, %v4068
  %v4070 = vpop.f32.mrf.mxu0
  %v4071 = vadd.f32 %v3862, %v4070
  %4072 = vmatmul.bf16.gmra.mxu0 %v1558
  %v4073 = vpop.f32.mrf.mxu0
  %v4074 = vadd.f32 %v3865, %v4073
  %v4075 = vpop.f32.mrf.mxu0
  %v4076 = vadd.f32 %v3867, %v4075
  %4077 = vmatmul.bf16.gmra.mxu0 %v1563
  %v4078 = vpop.f32.mrf.mxu0
  %v4079 = vadd.f32 %v3870, %v4078
  %v4080 = vpop.f32.mrf.mxu0
  %v4081 = vadd.f32 %v3872, %v4080
  %4082 = vmatmul.bf16.gmra.mxu0 %v1568
  %v4083 = vpop.f32.mrf.mxu0
  %v4084 = vadd.f32 %v3875, %v4083
  %v4085 = vpop.f32.mrf.mxu0
  %v4086 = vadd.f32 %v3877, %v4085
  %4087 = vmatmul.bf16.gmra.mxu0 %v1573
  %v4088 = vpop.f32.mrf.mxu0
  %v4089 = vadd.f32 %v3880, %v4088
  %v4090 = vpop.f32.mrf.mxu0
  %v4091 = vadd.f32 %v3882, %v4090
  %4092 = vmatmul.bf16.gmra.mxu0 %v1578
  %v4093 = vpop.f32.mrf.mxu0
  %v4094 = vadd.f32 %v3885, %v4093
  %v4095 = vpop.f32.mrf.mxu0
  %v4096 = vadd.f32 %v3887, %v4095
  %4097 = vmatmul.bf16.gmra.mxu0 %v1583
  %v4098 = vpop.f32.mrf.mxu0
  %v4099 = vadd.f32 %v3890, %v4098
  %v4100 = vpop.f32.mrf.mxu0
  %v4101 = vadd.f32 %v3892, %v4100
  %4102 = vmatmul.bf16.gmra.mxu0 %v1588
  %v4103 = vpop.f32.mrf.mxu0
  %v4104 = vadd.f32 %v3895, %v4103
  %v4105 = vpop.f32.mrf.mxu0
  %v4106 = vadd.f32 %v3897, %v4105
  %4107 = vmatmul.bf16.gmra.mxu0 %v1593
  %v4108 = vpop.f32.mrf.mxu0
  %v4109 = vadd.f32 %v3900, %v4108
  %v4110 = vpop.f32.mrf.mxu0
  %v4111 = vadd.f32 %v3902, %v4110
  %4112 = vmatmul.bf16.gmra.mxu0 %v1598
  %v4113 = vpop.f32.mrf.mxu0
  %v4114 = vadd.f32 %v3905, %v4113
  %v4115 = vpop.f32.mrf.mxu0
  %v4116 = vadd.f32 %v3907, %v4115
  %4117 = vmatmul.bf16.gmra.mxu0 %v1603
  %v4118 = vpop.f32.mrf.mxu0
  %v4119 = vadd.f32 %v3910, %v4118
  %v4120 = vpop.f32.mrf.mxu0
  %v4121 = vadd.f32 %v3912, %v4120
  %4122 = vmatmul.bf16.gmra.mxu0 %v1608
  %v4123 = vpop.f32.mrf.mxu0
  %v4124 = vadd.f32 %v3915, %v4123
  %v4125 = vpop.f32.mrf.mxu0
  %v4126 = vadd.f32 %v3917, %v4125
  %4127 = vmatmul.bf16.gmra.mxu0 %v1613
  %v4128 = vpop.f32.mrf.mxu0
  %v4129 = vadd.f32 %v3920, %v4128
  %v4130 = vpop.f32.mrf.mxu0
  %v4131 = vadd.f32 %v3922, %v4130
  %4132 = vmatmul.bf16.gmra.mxu0 %v1618
  %v4133 = vpop.f32.mrf.mxu0
  %v4134 = vadd.f32 %v3925, %v4133
  %v4135 = vpop.f32.mrf.mxu0
  %v4136 = vadd.f32 %v3927, %v4135
  %4137 = vmatmul.bf16.gmra.mxu0 %v1623
  %v4138 = vpop.f32.mrf.mxu0
  %v4139 = vadd.f32 %v3930, %v4138
  %v4140 = vpop.f32.mrf.mxu0
  %v4141 = vadd.f32 %v3932, %v4140
  %4142 = vmatmul.bf16.gmra.mxu0 %v1628
  %v4143 = vpop.f32.mrf.mxu0
  %v4144 = vadd.f32 %v3935, %v4143
  %v4145 = vpop.f32.mrf.mxu0
  %v4146 = vadd.f32 %v3937, %v4145
  %4147 = vmatmul.bf16.gmra.mxu0 %v1633
  %v4148 = vpop.f32.mrf.mxu0
  %v4149 = vadd.f32 %v3940, %v4148
  %v4150 = vpop.f32.mrf.mxu0
  %v4151 = vadd.f32 %v3942, %v4150
  %4152 = vmatmul.bf16.gmra.mxu0 %v1638
  %v4153 = vpop.f32.mrf.mxu0
  %v4154 = vadd.f32 %v3945, %v4153
  %v4155 = vpop.f32.mrf.mxu0
  %v4156 = vadd.f32 %v3947, %v4155
  %4157 = vmatmul.bf16.gmra.mxu0 %v1643
  %v4158 = vpop.f32.mrf.mxu0
  %v4159 = vadd.f32 %v3950, %v4158
  %v4160 = vpop.f32.mrf.mxu0
  %v4161 = vadd.f32 %v3952, %v4160
  %4162 = vmatmul.bf16.gmra.mxu0 %v1648
  %v4163 = vpop.f32.mrf.mxu0
  %v4164 = vadd.f32 %v3955, %v4163
  %v4165 = vpop.f32.mrf.mxu0
  %v4166 = vadd.f32 %v3957, %v4165
  %4167 = vmatmul.bf16.gmra.mxu0 %v1653
  %v4168 = vpop.f32.mrf.mxu0
  %v4169 = vadd.f32 %v3960, %v4168
  %v4170 = vpop.f32.mrf.mxu0
  %v4171 = vadd.f32 %v3962, %v4170
  %4172 = vmatmul.bf16.gmra.mxu0 %v1658
  %v4173 = vpop.f32.mrf.mxu0
  %v4174 = vadd.f32 %v3965, %v4173
  %v4175 = vpop.f32.mrf.mxu0
  %v4176 = vadd.f32 %v3967, %v4175
  %4177 = vmatmul.bf16.gmra.mxu0 %v1663
  %v4178 = vpop.f32.mrf.mxu0
  %v4179 = vadd.f32 %v3970, %v4178
  %v4180 = vpop.f32.mrf.mxu0
  %v4181 = vadd.f32 %v3972, %v4180
  %4182 = vmatmul.bf16.gmra.mxu0 %v1668
  %v4183 = vpop.f32.mrf.mxu0
  %v4184 = vadd.f32 %v3975, %v4183
  %v4185 = vpop.f32.mrf.mxu0
  %v4186 = vadd.f32 %v3977, %v4185
  %4187 = vmatmul.bf16.gmra.mxu0 %v1673
  %v4188 = vpop.f32.mrf.mxu0
  %v4189 = vadd.f32 %v3980, %v4188
  %v4190 = vpop.f32.mrf.mxu0
  %v4191 = vadd.f32 %v3982, %v4190
  %4192 = vmatmul.bf16.gmra.mxu0 %v1678
  %v4193 = vpop.f32.mrf.mxu0
  %v4194 = vadd.f32 %v3985, %v4193
  %v4195 = vpop.f32.mrf.mxu0
  %v4196 = vadd.f32 %v3987, %v4195
  %4197 = vmatmul.bf16.gmra.mxu0 %v1683
  %v4198 = vpop.f32.mrf.mxu0
  %v4199 = vadd.f32 %v3990, %v4198
  %v4200 = vpop.f32.mrf.mxu0
  %v4201 = vadd.f32 %v3992, %v4200
  %4202 = vmatmul.bf16.gmra.mxu0 %v1688
  %v4203 = vpop.f32.mrf.mxu0
  %v4204 = vadd.f32 %v3995, %v4203
  %v4205 = vpop.f32.mrf.mxu0
  %v4206 = vadd.f32 %v3997, %v4205
  %4207 = vmatmul.bf16.gmra.mxu0 %v1693
  %v4208 = vpop.f32.mrf.mxu0
  %v4209 = vadd.f32 %v4000, %v4208
  %v4210 = vpop.f32.mrf.mxu0
  %v4211 = vadd.f32 %v4002, %v4210
  %4212 = vmatmul.bf16.gmra.mxu0 %v1698
  %v4213 = vpop.f32.mrf.mxu0
  %v4214 = vadd.f32 %v4005, %v4213
  %v4215 = vpop.f32.mrf.mxu0
  %v4216 = vadd.f32 %v4007, %v4215
  %4217 = vmatmul.bf16.gmra.mxu0 %v1703
  %v4218 = vpop.f32.mrf.mxu0
  %v4219 = vadd.f32 %v4010, %v4218
  %v4220 = vpop.f32.mrf.mxu0
  %v4221 = vadd.f32 %v4012, %v4220
  %4222 = vmatmul.bf16.gmra.mxu0 %v1708
  %v4223 = vpop.f32.mrf.mxu0
  %v4224 = vadd.f32 %v4015, %v4223
  %v4225 = vpop.f32.mrf.mxu0
  %v4226 = vadd.f32 %v4017, %v4225
  %4227 = vmatmul.bf16.gmra.mxu0 %v1713
  %v4228 = vpop.f32.mrf.mxu0
  %v4229 = vadd.f32 %v4020, %v4228
  %v4230 = vpop.f32.mrf.mxu0
  %v4231 = vadd.f32 %v4022, %v4230
  %4232 = vmatmul.bf16.gmra.mxu0 %v1718
  %v4233 = vpop.f32.mrf.mxu0
  %v4234 = vadd.f32 %v4025, %v4233
  %v4235 = vpop.f32.mrf.mxu0
  %v4236 = vadd.f32 %v4027, %v4235
  %4237 = vmatmul.bf16.gmra.mxu0 %v1723
  %v4238 = vpop.f32.mrf.mxu0
  %v4239 = vadd.f32 %v4030, %v4238
  %v4240 = vpop.f32.mrf.mxu0
  %v4241 = vadd.f32 %v4032, %v4240
  %4242 = vmatmul.bf16.gmra.mxu0 %v1728
  %v4243 = vpop.f32.mrf.mxu0
  %v4244 = vadd.f32 %v4035, %v4243
  %v4245 = vpop.f32.mrf.mxu0
  %v4246 = vadd.f32 %v4037, %v4245
  %4247 = vmatmul.bf16.gmra.mxu0 %v1733
  %v4248 = vpop.f32.mrf.mxu0
  %v4249 = vadd.f32 %v4040, %v4248
  %v4250 = vpop.f32.mrf.mxu0
  %v4251 = vadd.f32 %v4042, %v4250
  %4252 = vmatmul.bf16.gmra.mxu0 %v1738
  %v4253 = vpop.f32.mrf.mxu0
  %v4254 = vadd.f32 %v4045, %v4253
  %v4255 = vpop.f32.mrf.mxu0
  %v4256 = vadd.f32 %v4047, %v4255
  %4257 = vdwg.mxu0
  %4258 = vmatpush.bf16.msra.mxu0 %v3417
  %4259 = vmatpush.bf16.msra.mxu0 %v3416
  %4260 = vmatpush.bf16.msra.mxu0 %v3415
  %4261 = vmatpush.bf16.msra.mxu0 %v3414
  %4262 = vmatpush.bf16.msra.mxu0 %v3413
  %4263 = vmatpush.bf16.msra.mxu0 %v3412
  %4264 = vmatpush.bf16.msra.mxu0 %v3411
  %4265 = vmatpush.bf16.msra.mxu0 %v3410
  %4266 = vmatmul.bf16.gmra.mxu0 %v1544
  %v4267 = vpop.f32.mrf.mxu0
  %v4268 = vadd.f32 %v4059, %v4267
  %v4269 = vpop.f32.mrf.mxu0
  %v4270 = vadd.f32 %v4061, %v4269
  %4271 = vmatmul.bf16.gmra.mxu0 %v1549
  %v4272 = vpop.f32.mrf.mxu0
  %v4273 = vadd.f32 %v4064, %v4272
  %v4274 = vpop.f32.mrf.mxu0
  %v4275 = vadd.f32 %v4066, %v4274
  %4276 = vmatmul.bf16.gmra.mxu0 %v1554
  %v4277 = vpop.f32.mrf.mxu0
  %v4278 = vadd.f32 %v4069, %v4277
  %v4279 = vpop.f32.mrf.mxu0
  %v4280 = vadd.f32 %v4071, %v4279
  %4281 = vmatmul.bf16.gmra.mxu0 %v1559
  %v4282 = vpop.f32.mrf.mxu0
  %v4283 = vadd.f32 %v4074, %v4282
  %v4284 = vpop.f32.mrf.mxu0
  %v4285 = vadd.f32 %v4076, %v4284
  %4286 = vmatmul.bf16.gmra.mxu0 %v1564
  %v4287 = vpop.f32.mrf.mxu0
  %v4288 = vadd.f32 %v4079, %v4287
  %v4289 = vpop.f32.mrf.mxu0
  %v4290 = vadd.f32 %v4081, %v4289
  %4291 = vmatmul.bf16.gmra.mxu0 %v1569
  %v4292 = vpop.f32.mrf.mxu0
  %v4293 = vadd.f32 %v4084, %v4292
  %v4294 = vpop.f32.mrf.mxu0
  %v4295 = vadd.f32 %v4086, %v4294
  %4296 = vmatmul.bf16.gmra.mxu0 %v1574
  %v4297 = vpop.f32.mrf.mxu0
  %v4298 = vadd.f32 %v4089, %v4297
  %v4299 = vpop.f32.mrf.mxu0
  %v4300 = vadd.f32 %v4091, %v4299
  %4301 = vmatmul.bf16.gmra.mxu0 %v1579
  %v4302 = vpop.f32.mrf.mxu0
  %v4303 = vadd.f32 %v4094, %v4302
  %v4304 = vpop.f32.mrf.mxu0
  %v4305 = vadd.f32 %v4096, %v4304
  %4306 = vmatmul.bf16.gmra.mxu0 %v1584
  %v4307 = vpop.f32.mrf.mxu0
  %v4308 = vadd.f32 %v4099, %v4307
  %v4309 = vpop.f32.mrf.mxu0
  %v4310 = vadd.f32 %v4101, %v4309
  %4311 = vmatmul.bf16.gmra.mxu0 %v1589
  %v4312 = vpop.f32.mrf.mxu0
  %v4313 = vadd.f32 %v4104, %v4312
  %v4314 = vpop.f32.mrf.mxu0
  %v4315 = vadd.f32 %v4106, %v4314
  %4316 = vmatmul.bf16.gmra.mxu0 %v1594
  %v4317 = vpop.f32.mrf.mxu0
  %v4318 = vadd.f32 %v4109, %v4317
  %v4319 = vpop.f32.mrf.mxu0
  %v4320 = vadd.f32 %v4111, %v4319
  %4321 = vmatmul.bf16.gmra.mxu0 %v1599
  %v4322 = vpop.f32.mrf.mxu0
  %v4323 = vadd.f32 %v4114, %v4322
  %v4324 = vpop.f32.mrf.mxu0
  %v4325 = vadd.f32 %v4116, %v4324
  %4326 = vmatmul.bf16.gmra.mxu0 %v1604
  %v4327 = vpop.f32.mrf.mxu0
  %v4328 = vadd.f32 %v4119, %v4327
  %v4329 = vpop.f32.mrf.mxu0
  %v4330 = vadd.f32 %v4121, %v4329
  %4331 = vmatmul.bf16.gmra.mxu0 %v1609
  %v4332 = vpop.f32.mrf.mxu0
  %v4333 = vadd.f32 %v4124, %v4332
  %v4334 = vpop.f32.mrf.mxu0
  %v4335 = vadd.f32 %v4126, %v4334
  %4336 = vmatmul.bf16.gmra.mxu0 %v1614
  %v4337 = vpop.f32.mrf.mxu0
  %v4338 = vadd.f32 %v4129, %v4337
  %v4339 = vpop.f32.mrf.mxu0
  %v4340 = vadd.f32 %v4131, %v4339
  %4341 = vmatmul.bf16.gmra.mxu0 %v1619
  %v4342 = vpop.f32.mrf.mxu0
  %v4343 = vadd.f32 %v4134, %v4342
  %v4344 = vpop.f32.mrf.mxu0
  %v4345 = vadd.f32 %v4136, %v4344
  %4346 = vmatmul.bf16.gmra.mxu0 %v1624
  %v4347 = vpop.f32.mrf.mxu0
  %v4348 = vadd.f32 %v4139, %v4347
  %v4349 = vpop.f32.mrf.mxu0
  %v4350 = vadd.f32 %v4141, %v4349
  %4351 = vmatmul.bf16.gmra.mxu0 %v1629
  %v4352 = vpop.f32.mrf.mxu0
  %v4353 = vadd.f32 %v4144, %v4352
  %v4354 = vpop.f32.mrf.mxu0
  %v4355 = vadd.f32 %v4146, %v4354
  %4356 = vmatmul.bf16.gmra.mxu0 %v1634
  %v4357 = vpop.f32.mrf.mxu0
  %v4358 = vadd.f32 %v4149, %v4357
  %v4359 = vpop.f32.mrf.mxu0
  %v4360 = vadd.f32 %v4151, %v4359
  %4361 = vmatmul.bf16.gmra.mxu0 %v1639
  %v4362 = vpop.f32.mrf.mxu0
  %v4363 = vadd.f32 %v4154, %v4362
  %v4364 = vpop.f32.mrf.mxu0
  %v4365 = vadd.f32 %v4156, %v4364
  %4366 = vmatmul.bf16.gmra.mxu0 %v1644
  %v4367 = vpop.f32.mrf.mxu0
  %v4368 = vadd.f32 %v4159, %v4367
  %v4369 = vpop.f32.mrf.mxu0
  %v4370 = vadd.f32 %v4161, %v4369
  %4371 = vmatmul.bf16.gmra.mxu0 %v1649
  %v4372 = vpop.f32.mrf.mxu0
  %v4373 = vadd.f32 %v4164, %v4372
  %v4374 = vpop.f32.mrf.mxu0
  %v4375 = vadd.f32 %v4166, %v4374
  %4376 = vmatmul.bf16.gmra.mxu0 %v1654
  %v4377 = vpop.f32.mrf.mxu0
  %v4378 = vadd.f32 %v4169, %v4377
  %v4379 = vpop.f32.mrf.mxu0
  %v4380 = vadd.f32 %v4171, %v4379
  %4381 = vmatmul.bf16.gmra.mxu0 %v1659
  %v4382 = vpop.f32.mrf.mxu0
  %v4383 = vadd.f32 %v4174, %v4382
  %v4384 = vpop.f32.mrf.mxu0
  %v4385 = vadd.f32 %v4176, %v4384
  %4386 = vmatmul.bf16.gmra.mxu0 %v1664
  %v4387 = vpop.f32.mrf.mxu0
  %v4388 = vadd.f32 %v4179, %v4387
  %v4389 = vpop.f32.mrf.mxu0
  %v4390 = vadd.f32 %v4181, %v4389
  %4391 = vmatmul.bf16.gmra.mxu0 %v1669
  %v4392 = vpop.f32.mrf.mxu0
  %v4393 = vadd.f32 %v4184, %v4392
  %v4394 = vpop.f32.mrf.mxu0
  %v4395 = vadd.f32 %v4186, %v4394
  %4396 = vmatmul.bf16.gmra.mxu0 %v1674
  %v4397 = vpop.f32.mrf.mxu0
  %v4398 = vadd.f32 %v4189, %v4397
  %v4399 = vpop.f32.mrf.mxu0
  %v4400 = vadd.f32 %v4191, %v4399
  %4401 = vmatmul.bf16.gmra.mxu0 %v1679
  %v4402 = vpop.f32.mrf.mxu0
  %v4403 = vadd.f32 %v4194, %v4402
  %v4404 = vpop.f32.mrf.mxu0
  %v4405 = vadd.f32 %v4196, %v4404
  %4406 = vmatmul.bf16.gmra.mxu0 %v1684
  %v4407 = vpop.f32.mrf.mxu0
  %v4408 = vadd.f32 %v4199, %v4407
  %v4409 = vpop.f32.mrf.mxu0
  %v4410 = vadd.f32 %v4201, %v4409
  %4411 = vmatmul.bf16.gmra.mxu0 %v1689
  %v4412 = vpop.f32.mrf.mxu0
  %v4413 = vadd.f32 %v4204, %v4412
  %v4414 = vpop.f32.mrf.mxu0
  %v4415 = vadd.f32 %v4206, %v4414
  %4416 = vmatmul.bf16.gmra.mxu0 %v1694
  %v4417 = vpop.f32.mrf.mxu0
  %v4418 = vadd.f32 %v4209, %v4417
  %v4419 = vpop.f32.mrf.mxu0
  %v4420 = vadd.f32 %v4211, %v4419
  %4421 = vmatmul.bf16.gmra.mxu0 %v1699
  %v4422 = vpop.f32.mrf.mxu0
  %v4423 = vadd.f32 %v4214, %v4422
  %v4424 = vpop.f32.mrf.mxu0
  %v4425 = vadd.f32 %v4216, %v4424
  %4426 = vmatmul.bf16.gmra.mxu0 %v1704
  %v4427 = vpop.f32.mrf.mxu0
  %v4428 = vadd.f32 %v4219, %v4427
  %v4429 = vpop.f32.mrf.mxu0
  %v4430 = vadd.f32 %v4221, %v4429
  %4431 = vmatmul.bf16.gmra.mxu0 %v1709
  %v4432 = vpop.f32.mrf.mxu0
  %v4433 = vadd.f32 %v4224, %v4432
  %v4434 = vpop.f32.mrf.mxu0
  %v4435 = vadd.f32 %v4226, %v4434
  %4436 = vmatmul.bf16.gmra.mxu0 %v1714
  %v4437 = vpop.f32.mrf.mxu0
  %v4438 = vadd.f32 %v4229, %v4437
  %v4439 = vpop.f32.mrf.mxu0
  %v4440 = vadd.f32 %v4231, %v4439
  %4441 = vmatmul.bf16.gmra.mxu0 %v1719
  %v4442 = vpop.f32.mrf.mxu0
  %v4443 = vadd.f32 %v4234, %v4442
  %v4444 = vpop.f32.mrf.mxu0
  %v4445 = vadd.f32 %v4236, %v4444
  %4446 = vmatmul.bf16.gmra.mxu0 %v1724
  %v4447 = vpop.f32.mrf.mxu0
  %v4448 = vadd.f32 %v4239, %v4447
  %v4449 = vpop.f32.mrf.mxu0
  %v4450 = vadd.f32 %v4241, %v4449
  %4451 = vmatmul.bf16.gmra.mxu0 %v1729
  %v4452 = vpop.f32.mrf.mxu0
  %v4453 = vadd.f32 %v4244, %v4452
  %v4454 = vpop.f32.mrf.mxu0
  %v4455 = vadd.f32 %v4246, %v4454
  %4456 = vmatmul.bf16.gmra.mxu0 %v1734
  %v4457 = vpop.f32.mrf.mxu0
  %v4458 = vadd.f32 %v4249, %v4457
  %v4459 = vpop.f32.mrf.mxu0
  %v4460 = vadd.f32 %v4251, %v4459
  %4461 = vmatmul.bf16.gmra.mxu0 %v1739
  %v4462 = vpop.f32.mrf.mxu0
  %v4463 = vadd.f32 %v4254, %v4462
  %v4464 = vpop.f32.mrf.mxu0
  %v4465 = vadd.f32 %v4256, %v4464
  %4466 = vdwg.mxu0
  %v4467 = vmax.f32 %v4268, 0.0
  %v4468 = vmax.f32 %v4270, 0.0
  %v4469 = vmax.f32 %v4273, 0.0
  %v4470 = vmax.f32 %v4275, 0.0
  %v4471 = vmax.f32 %v4278, 0.0
  %v4472 = vmax.f32 %v4280, 0.0
  %v4473 = vmax.f32 %v4283, 0.0
  %v4474 = vmax.f32 %v4285, 0.0
  %v4475 = vmax.f32 %v4288, 0.0
  %v4476 = vmax.f32 %v4290, 0.0
  %v4477 = vmax.f32 %v4293, 0.0
  %v4478 = vmax.f32 %v4295, 0.0
  %v4479 = vmax.f32 %v4298, 0.0
  %v4480 = vmax.f32 %v4300, 0.0
  %v4481 = vmax.f32 %v4303, 0.0
  %v4482 = vmax.f32 %v4305, 0.0
  %v4483 = vmax.f32 %v4308, 0.0
  %v4484 = vmax.f32 %v4310, 0.0
  %v4485 = vmax.f32 %v4313, 0.0
  %v4486 = vmax.f32 %v4315, 0.0
  %v4487 = vmax.f32 %v4318, 0.0
  %v4488 = vmax.f32 %v4320, 0.0
  %v4489 = vmax.f32 %v4323, 0.0
  %v4490 = vmax.f32 %v4325, 0.0
  %v4491 = vmax.f32 %v4328, 0.0
  %v4492 = vmax.f32 %v4330, 0.0
  %v4493 = vmax.f32 %v4333, 0.0
  %v4494 = vmax.f32 %v4335, 0.0
  %v4495 = vmax.f32 %v4338, 0.0
  %v4496 = vmax.f32 %v4340, 0.0
  %v4497 = vmax.f32 %v4343, 0.0
  %v4498 = vmax.f32 %v4345, 0.0
  %v4499 = vmax.f32 %v4348, 0.0
  %v4500 = vmax.f32 %v4350, 0.0
  %v4501 = vmax.f32 %v4353, 0.0
  %v4502 = vmax.f32 %v4355, 0.0
  %v4503 = vmax.f32 %v4358, 0.0
  %v4504 = vmax.f32 %v4360, 0.0
  %v4505 = vmax.f32 %v4363, 0.0
  %v4506 = vmax.f32 %v4365, 0.0
  %v4507 = vmax.f32 %v4368, 0.0
  %v4508 = vmax.f32 %v4370, 0.0
  %v4509 = vmax.f32 %v4373, 0.0
  %v4510 = vmax.f32 %v4375, 0.0
  %v4511 = vmax.f32 %v4378, 0.0
  %v4512 = vmax.f32 %v4380, 0.0
  %v4513 = vmax.f32 %v4383, 0.0
  %v4514 = vmax.f32 %v4385, 0.0
  %v4515 = vmax.f32 %v4388, 0.0
  %v4516 = vmax.f32 %v4390, 0.0
  %v4517 = vmax.f32 %v4393, 0.0
  %v4518 = vmax.f32 %v4395, 0.0
  %v4519 = vmax.f32 %v4398, 0.0
  %v4520 = vmax.f32 %v4400, 0.0
  %v4521 = vmax.f32 %v4403, 0.0
  %v4522 = vmax.f32 %v4405, 0.0
  %v4523 = vmax.f32 %v4408, 0.0
  %v4524 = vmax.f32 %v4410, 0.0
  %v4525 = vmax.f32 %v4413, 0.0
  %v4526 = vmax.f32 %v4415, 0.0
  %v4527 = vmax.f32 %v4418, 0.0
  %v4528 = vmax.f32 %v4420, 0.0
  %v4529 = vmax.f32 %v4423, 0.0
  %v4530 = vmax.f32 %v4425, 0.0
  %v4531 = vmax.f32 %v4428, 0.0
  %v4532 = vmax.f32 %v4430, 0.0
  %v4533 = vmax.f32 %v4433, 0.0
  %v4534 = vmax.f32 %v4435, 0.0
  %v4535 = vmax.f32 %v4438, 0.0
  %v4536 = vmax.f32 %v4440, 0.0
  %v4537 = vmax.f32 %v4443, 0.0
  %v4538 = vmax.f32 %v4445, 0.0
  %v4539 = vmax.f32 %v4448, 0.0
  %v4540 = vmax.f32 %v4450, 0.0
  %v4541 = vmax.f32 %v4453, 0.0
  %v4542 = vmax.f32 %v4455, 0.0
  %v4543 = vmax.f32 %v4458, 0.0
  %v4544 = vmax.f32 %v4460, 0.0
  %v4545 = vmax.f32 %v4463, 0.0
  %v4546 = vmax.f32 %v4465, 0.0
  %v4547 = vlaneseq
  %v4548 = vand.u32 %v4547, 127
  %vm4549 = vcmp.lt.s32.totalorder %v4548, 32
  %v4550 = vsel %vm4549, %v4467, -inf
  %v4551 = vsel %vm4549, %v4468, -inf
  %v4552 = vsel %vm4549, %v4469, -inf
  %v4553 = vsel %vm4549, %v4470, -inf
  %v4554 = vsel %vm4549, %v4471, -inf
  %v4555 = vsel %vm4549, %v4472, -inf
  %v4556 = vsel %vm4549, %v4473, -inf
  %v4557 = vsel %vm4549, %v4474, -inf
  %v4558 = vsel %vm4549, %v4475, -inf
  %v4559 = vsel %vm4549, %v4476, -inf
  %v4560 = vsel %vm4549, %v4477, -inf
  %v4561 = vsel %vm4549, %v4478, -inf
  %v4562 = vsel %vm4549, %v4479, -inf
  %v4563 = vsel %vm4549, %v4480, -inf
  %v4564 = vsel %vm4549, %v4481, -inf
  %v4565 = vsel %vm4549, %v4482, -inf
  %v4566 = vsel %vm4549, %v4483, -inf
  %v4567 = vsel %vm4549, %v4484, -inf
  %v4568 = vsel %vm4549, %v4485, -inf
  %v4569 = vsel %vm4549, %v4486, -inf
  %v4570 = vsel %vm4549, %v4487, -inf
  %v4571 = vsel %vm4549, %v4488, -inf
  %v4572 = vsel %vm4549, %v4489, -inf
  %v4573 = vsel %vm4549, %v4490, -inf
  %v4574 = vsel %vm4549, %v4491, -inf
  %v4575 = vsel %vm4549, %v4492, -inf
  %v4576 = vsel %vm4549, %v4493, -inf
  %v4577 = vsel %vm4549, %v4494, -inf
  %v4578 = vsel %vm4549, %v4495, -inf
  %v4579 = vsel %vm4549, %v4496, -inf
  %v4580 = vsel %vm4549, %v4497, -inf
  %v4581 = vsel %vm4549, %v4498, -inf
  %v4582 = vsel %vm4549, %v4499, -inf
  %v4583 = vsel %vm4549, %v4500, -inf
  %v4584 = vsel %vm4549, %v4501, -inf
  %v4585 = vsel %vm4549, %v4502, -inf
  %v4586 = vsel %vm4549, %v4503, -inf
  %v4587 = vsel %vm4549, %v4504, -inf
  %v4588 = vsel %vm4549, %v4505, -inf
  %v4589 = vsel %vm4549, %v4506, -inf
  %v4590 = vsel %vm4549, %v4507, -inf
  %v4591 = vsel %vm4549, %v4508, -inf
  %v4592 = vsel %vm4549, %v4509, -inf
  %v4593 = vsel %vm4549, %v4510, -inf
  %v4594 = vsel %vm4549, %v4511, -inf
  %v4595 = vsel %vm4549, %v4512, -inf
  %v4596 = vsel %vm4549, %v4513, -inf
  %v4597 = vsel %vm4549, %v4514, -inf
  %v4598 = vsel %vm4549, %v4515, -inf
  %v4599 = vsel %vm4549, %v4516, -inf
  %v4600 = vsel %vm4549, %v4517, -inf
  %v4601 = vsel %vm4549, %v4518, -inf
  %v4602 = vsel %vm4549, %v4519, -inf
  %v4603 = vsel %vm4549, %v4520, -inf
  %v4604 = vsel %vm4549, %v4521, -inf
  %v4605 = vsel %vm4549, %v4522, -inf
  %v4606 = vsel %vm4549, %v4523, -inf
  %v4607 = vsel %vm4549, %v4524, -inf
  %v4608 = vsel %vm4549, %v4525, -inf
  %v4609 = vsel %vm4549, %v4526, -inf
  %v4610 = vsel %vm4549, %v4527, -inf
  %v4611 = vsel %vm4549, %v4528, -inf
  %v4612 = vsel %vm4549, %v4529, -inf
  %v4613 = vsel %vm4549, %v4530, -inf
  %v4614 = vsel %vm4549, %v4531, -inf
  %v4615 = vsel %vm4549, %v4532, -inf
  %v4616 = vsel %vm4549, %v4533, -inf
  %v4617 = vsel %vm4549, %v4534, -inf
  %v4618 = vsel %vm4549, %v4535, -inf
  %v4619 = vsel %vm4549, %v4536, -inf
  %v4620 = vsel %vm4549, %v4537, -inf
  %v4621 = vsel %vm4549, %v4538, -inf
  %v4622 = vsel %vm4549, %v4539, -inf
  %v4623 = vsel %vm4549, %v4540, -inf
  %v4624 = vsel %vm4549, %v4541, -inf
  %v4625 = vsel %vm4549, %v4542, -inf
  %v4626 = vsel %vm4549, %v4543, -inf
  %v4627 = vsel %vm4549, %v4544, -inf
  %v4628 = vsel %vm4549, %v4545, -inf
  %v4629 = vsel %vm4549, %v4546, -inf
  %4630 = vmax.xlane.f32.xlu0 %v4550
  %v4631 = vpop.xlane.xlu0 %4630
  %4632 = vmax.xlane.f32.xlu0 %v4551
  %v4633 = vpop.xlane.xlu0 %4632
  %4634 = vmax.xlane.f32.xlu0 %v4552
  %v4635 = vpop.xlane.xlu0 %4634
  %4636 = vmax.xlane.f32.xlu0 %v4553
  %v4637 = vpop.xlane.xlu0 %4636
  %4638 = vmax.xlane.f32.xlu0 %v4554
  %v4639 = vpop.xlane.xlu0 %4638
  %4640 = vmax.xlane.f32.xlu0 %v4555
  %v4641 = vpop.xlane.xlu0 %4640
  %4642 = vmax.xlane.f32.xlu0 %v4556
  %v4643 = vpop.xlane.xlu0 %4642
  %4644 = vmax.xlane.f32.xlu0 %v4557
  %v4645 = vpop.xlane.xlu0 %4644
  %4646 = vmax.xlane.f32.xlu0 %v4558
  %v4647 = vpop.xlane.xlu0 %4646
  %4648 = vmax.xlane.f32.xlu0 %v4559
  %v4649 = vpop.xlane.xlu0 %4648
  %4650 = vmax.xlane.f32.xlu0 %v4560
  %v4651 = vpop.xlane.xlu0 %4650
  %4652 = vmax.xlane.f32.xlu0 %v4561
  %v4653 = vpop.xlane.xlu0 %4652
  %4654 = vmax.xlane.f32.xlu0 %v4562
  %v4655 = vpop.xlane.xlu0 %4654
  %4656 = vmax.xlane.f32.xlu0 %v4563
  %v4657 = vpop.xlane.xlu0 %4656
  %4658 = vmax.xlane.f32.xlu0 %v4564
  %v4659 = vpop.xlane.xlu0 %4658
  %4660 = vmax.xlane.f32.xlu0 %v4565
  %v4661 = vpop.xlane.xlu0 %4660
  %4662 = vmax.xlane.f32.xlu0 %v4566
  %v4663 = vpop.xlane.xlu0 %4662
  %4664 = vmax.xlane.f32.xlu0 %v4567
  %v4665 = vpop.xlane.xlu0 %4664
  %4666 = vmax.xlane.f32.xlu0 %v4568
  %v4667 = vpop.xlane.xlu0 %4666
  %4668 = vmax.xlane.f32.xlu0 %v4569
  %v4669 = vpop.xlane.xlu0 %4668
  %4670 = vmax.xlane.f32.xlu0 %v4570
  %v4671 = vpop.xlane.xlu0 %4670
  %4672 = vmax.xlane.f32.xlu0 %v4571
  %v4673 = vpop.xlane.xlu0 %4672
  %4674 = vmax.xlane.f32.xlu0 %v4572
  %v4675 = vpop.xlane.xlu0 %4674
  %4676 = vmax.xlane.f32.xlu0 %v4573
  %v4677 = vpop.xlane.xlu0 %4676
  %4678 = vmax.xlane.f32.xlu0 %v4574
  %v4679 = vpop.xlane.xlu0 %4678
  %4680 = vmax.xlane.f32.xlu0 %v4575
  %v4681 = vpop.xlane.xlu0 %4680
  %4682 = vmax.xlane.f32.xlu0 %v4576
  %v4683 = vpop.xlane.xlu0 %4682
  %4684 = vmax.xlane.f32.xlu0 %v4577
  %v4685 = vpop.xlane.xlu0 %4684
  %4686 = vmax.xlane.f32.xlu0 %v4578
  %v4687 = vpop.xlane.xlu0 %4686
  %4688 = vmax.xlane.f32.xlu0 %v4579
  %v4689 = vpop.xlane.xlu0 %4688
  %4690 = vmax.xlane.f32.xlu0 %v4580
  %v4691 = vpop.xlane.xlu0 %4690
  %4692 = vmax.xlane.f32.xlu0 %v4581
  %v4693 = vpop.xlane.xlu0 %4692
  %4694 = vmax.xlane.f32.xlu0 %v4582
  %v4695 = vpop.xlane.xlu0 %4694
  %4696 = vmax.xlane.f32.xlu0 %v4583
  %v4697 = vpop.xlane.xlu0 %4696
  %4698 = vmax.xlane.f32.xlu0 %v4584
  %v4699 = vpop.xlane.xlu0 %4698
  %4700 = vmax.xlane.f32.xlu0 %v4585
  %v4701 = vpop.xlane.xlu0 %4700
  %4702 = vmax.xlane.f32.xlu0 %v4586
  %v4703 = vpop.xlane.xlu0 %4702
  %4704 = vmax.xlane.f32.xlu0 %v4587
  %v4705 = vpop.xlane.xlu0 %4704
  %4706 = vmax.xlane.f32.xlu0 %v4588
  %v4707 = vpop.xlane.xlu0 %4706
  %4708 = vmax.xlane.f32.xlu0 %v4589
  %v4709 = vpop.xlane.xlu0 %4708
  %4710 = vmax.xlane.f32.xlu0 %v4590
  %v4711 = vpop.xlane.xlu0 %4710
  %4712 = vmax.xlane.f32.xlu0 %v4591
  %v4713 = vpop.xlane.xlu0 %4712
  %4714 = vmax.xlane.f32.xlu0 %v4592
  %v4715 = vpop.xlane.xlu0 %4714
  %4716 = vmax.xlane.f32.xlu0 %v4593
  %v4717 = vpop.xlane.xlu0 %4716
  %4718 = vmax.xlane.f32.xlu0 %v4594
  %v4719 = vpop.xlane.xlu0 %4718
  %4720 = vmax.xlane.f32.xlu0 %v4595
  %v4721 = vpop.xlane.xlu0 %4720
  %4722 = vmax.xlane.f32.xlu0 %v4596
  %v4723 = vpop.xlane.xlu0 %4722
  %4724 = vmax.xlane.f32.xlu0 %v4597
  %v4725 = vpop.xlane.xlu0 %4724
  %4726 = vmax.xlane.f32.xlu0 %v4598
  %v4727 = vpop.xlane.xlu0 %4726
  %4728 = vmax.xlane.f32.xlu0 %v4599
  %v4729 = vpop.xlane.xlu0 %4728
  %4730 = vmax.xlane.f32.xlu0 %v4600
  %v4731 = vpop.xlane.xlu0 %4730
  %4732 = vmax.xlane.f32.xlu0 %v4601
  %v4733 = vpop.xlane.xlu0 %4732
  %4734 = vmax.xlane.f32.xlu0 %v4602
  %v4735 = vpop.xlane.xlu0 %4734
  %4736 = vmax.xlane.f32.xlu0 %v4603
  %v4737 = vpop.xlane.xlu0 %4736
  %4738 = vmax.xlane.f32.xlu0 %v4604
  %v4739 = vpop.xlane.xlu0 %4738
  %4740 = vmax.xlane.f32.xlu0 %v4605
  %v4741 = vpop.xlane.xlu0 %4740
  %4742 = vmax.xlane.f32.xlu0 %v4606
  %v4743 = vpop.xlane.xlu0 %4742
  %4744 = vmax.xlane.f32.xlu0 %v4607
  %v4745 = vpop.xlane.xlu0 %4744
  %4746 = vmax.xlane.f32.xlu0 %v4608
  %v4747 = vpop.xlane.xlu0 %4746
  %4748 = vmax.xlane.f32.xlu0 %v4609
  %v4749 = vpop.xlane.xlu0 %4748
  %4750 = vmax.xlane.f32.xlu0 %v4610
  %v4751 = vpop.xlane.xlu0 %4750
  %4752 = vmax.xlane.f32.xlu0 %v4611
  %v4753 = vpop.xlane.xlu0 %4752
  %4754 = vmax.xlane.f32.xlu0 %v4612
  %v4755 = vpop.xlane.xlu0 %4754
  %4756 = vmax.xlane.f32.xlu0 %v4613
  %v4757 = vpop.xlane.xlu0 %4756
  %4758 = vmax.xlane.f32.xlu0 %v4614
  %v4759 = vpop.xlane.xlu0 %4758
  %4760 = vmax.xlane.f32.xlu0 %v4615
  %v4761 = vpop.xlane.xlu0 %4760
  %4762 = vmax.xlane.f32.xlu0 %v4616
  %v4763 = vpop.xlane.xlu0 %4762
  %4764 = vmax.xlane.f32.xlu0 %v4617
  %v4765 = vpop.xlane.xlu0 %4764
  %4766 = vmax.xlane.f32.xlu0 %v4618
  %v4767 = vpop.xlane.xlu0 %4766
  %4768 = vmax.xlane.f32.xlu0 %v4619
  %v4769 = vpop.xlane.xlu0 %4768
  %4770 = vmax.xlane.f32.xlu0 %v4620
  %v4771 = vpop.xlane.xlu0 %4770
  %4772 = vmax.xlane.f32.xlu0 %v4621
  %v4773 = vpop.xlane.xlu0 %4772
  %4774 = vmax.xlane.f32.xlu0 %v4622
  %v4775 = vpop.xlane.xlu0 %4774
  %4776 = vmax.xlane.f32.xlu0 %v4623
  %v4777 = vpop.xlane.xlu0 %4776
  %4778 = vmax.xlane.f32.xlu0 %v4624
  %v4779 = vpop.xlane.xlu0 %4778
  %4780 = vmax.xlane.f32.xlu0 %v4625
  %v4781 = vpop.xlane.xlu0 %4780
  %4782 = vmax.xlane.f32.xlu0 %v4626
  %v4783 = vpop.xlane.xlu0 %4782
  %4784 = vmax.xlane.f32.xlu0 %v4627
  %v4785 = vpop.xlane.xlu0 %4784
  %4786 = vmax.xlane.f32.xlu0 %v4628
  %v4787 = vpop.xlane.xlu0 %4786
  %4788 = vmax.xlane.f32.xlu0 %v4629
  %v4789 = vpop.xlane.xlu0 %4788
  %v4790 = vsub.f32 %v4550, %v4631
  %v4791 = vsub.f32 %v4551, %v4633
  %v4792 = vsub.f32 %v4552, %v4635
  %v4793 = vsub.f32 %v4553, %v4637
  %v4794 = vsub.f32 %v4554, %v4639
  %v4795 = vsub.f32 %v4555, %v4641
  %v4796 = vsub.f32 %v4556, %v4643
  %v4797 = vsub.f32 %v4557, %v4645
  %v4798 = vsub.f32 %v4558, %v4647
  %v4799 = vsub.f32 %v4559, %v4649
  %v4800 = vsub.f32 %v4560, %v4651
  %v4801 = vsub.f32 %v4561, %v4653
  %v4802 = vsub.f32 %v4562, %v4655
  %v4803 = vsub.f32 %v4563, %v4657
  %v4804 = vsub.f32 %v4564, %v4659
  %v4805 = vsub.f32 %v4565, %v4661
  %v4806 = vsub.f32 %v4566, %v4663
  %v4807 = vsub.f32 %v4567, %v4665
  %v4808 = vsub.f32 %v4568, %v4667
  %v4809 = vsub.f32 %v4569, %v4669
  %v4810 = vsub.f32 %v4570, %v4671
  %v4811 = vsub.f32 %v4571, %v4673
  %v4812 = vsub.f32 %v4572, %v4675
  %v4813 = vsub.f32 %v4573, %v4677
  %v4814 = vsub.f32 %v4574, %v4679
  %v4815 = vsub.f32 %v4575, %v4681
  %v4816 = vsub.f32 %v4576, %v4683
  %v4817 = vsub.f32 %v4577, %v4685
  %v4818 = vsub.f32 %v4578, %v4687
  %v4819 = vsub.f32 %v4579, %v4689
  %v4820 = vsub.f32 %v4580, %v4691
  %v4821 = vsub.f32 %v4581, %v4693
  %v4822 = vsub.f32 %v4582, %v4695
  %v4823 = vsub.f32 %v4583, %v4697
  %v4824 = vsub.f32 %v4584, %v4699
  %v4825 = vsub.f32 %v4585, %v4701
  %v4826 = vsub.f32 %v4586, %v4703
  %v4827 = vsub.f32 %v4587, %v4705
  %v4828 = vsub.f32 %v4588, %v4707
  %v4829 = vsub.f32 %v4589, %v4709
  %v4830 = vsub.f32 %v4590, %v4711
  %v4831 = vsub.f32 %v4591, %v4713
  %v4832 = vsub.f32 %v4592, %v4715
  %v4833 = vsub.f32 %v4593, %v4717
  %v4834 = vsub.f32 %v4594, %v4719
  %v4835 = vsub.f32 %v4595, %v4721
  %v4836 = vsub.f32 %v4596, %v4723
  %v4837 = vsub.f32 %v4597, %v4725
  %v4838 = vsub.f32 %v4598, %v4727
  %v4839 = vsub.f32 %v4599, %v4729
  %v4840 = vsub.f32 %v4600, %v4731
  %v4841 = vsub.f32 %v4601, %v4733
  %v4842 = vsub.f32 %v4602, %v4735
  %v4843 = vsub.f32 %v4603, %v4737
  %v4844 = vsub.f32 %v4604, %v4739
  %v4845 = vsub.f32 %v4605, %v4741
  %v4846 = vsub.f32 %v4606, %v4743
  %v4847 = vsub.f32 %v4607, %v4745
  %v4848 = vsub.f32 %v4608, %v4747
  %v4849 = vsub.f32 %v4609, %v4749
  %v4850 = vsub.f32 %v4610, %v4751
  %v4851 = vsub.f32 %v4611, %v4753
  %v4852 = vsub.f32 %v4612, %v4755
  %v4853 = vsub.f32 %v4613, %v4757
  %v4854 = vsub.f32 %v4614, %v4759
  %v4855 = vsub.f32 %v4615, %v4761
  %v4856 = vsub.f32 %v4616, %v4763
  %v4857 = vsub.f32 %v4617, %v4765
  %v4858 = vsub.f32 %v4618, %v4767
  %v4859 = vsub.f32 %v4619, %v4769
  %v4860 = vsub.f32 %v4620, %v4771
  %v4861 = vsub.f32 %v4621, %v4773
  %v4862 = vsub.f32 %v4622, %v4775
  %v4863 = vsub.f32 %v4623, %v4777
  %v4864 = vsub.f32 %v4624, %v4779
  %v4865 = vsub.f32 %v4625, %v4781
  %v4866 = vsub.f32 %v4626, %v4783
  %v4867 = vsub.f32 %v4627, %v4785
  %v4868 = vsub.f32 %v4628, %v4787
  %v4869 = vsub.f32 %v4629, %v4789
  %v4870 = vmul.f32 %v4790, 1.442695
  %v4871 = vpow.pop %v4870
  %v4872 = vmul.f32 %v4791, 1.442695
  %v4873 = vpow.pop %v4872
  %v4874 = vmul.f32 %v4792, 1.442695
  %v4875 = vpow.pop %v4874
  %v4876 = vmul.f32 %v4793, 1.442695
  %v4877 = vpow.pop %v4876
  %v4878 = vmul.f32 %v4794, 1.442695
  %v4879 = vpow.pop %v4878
  %v4880 = vmul.f32 %v4795, 1.442695
  %v4881 = vpow.pop %v4880
  %v4882 = vmul.f32 %v4796, 1.442695
  %v4883 = vpow.pop %v4882
  %v4884 = vmul.f32 %v4797, 1.442695
  %v4885 = vpow.pop %v4884
  %v4886 = vmul.f32 %v4798, 1.442695
  %v4887 = vpow.pop %v4886
  %v4888 = vmul.f32 %v4799, 1.442695
  %v4889 = vpow.pop %v4888
  %v4890 = vmul.f32 %v4800, 1.442695
  %v4891 = vpow.pop %v4890
  %v4892 = vmul.f32 %v4801, 1.442695
  %v4893 = vpow.pop %v4892
  %v4894 = vmul.f32 %v4802, 1.442695
  %v4895 = vpow.pop %v4894
  %v4896 = vmul.f32 %v4803, 1.442695
  %v4897 = vpow.pop %v4896
  %v4898 = vmul.f32 %v4804, 1.442695
  %v4899 = vpow.pop %v4898
  %v4900 = vmul.f32 %v4805, 1.442695
  %v4901 = vpow.pop %v4900
  %v4902 = vmul.f32 %v4806, 1.442695
  %v4903 = vpow.pop %v4902
  %v4904 = vmul.f32 %v4807, 1.442695
  %v4905 = vpow.pop %v4904
  %v4906 = vmul.f32 %v4808, 1.442695
  %v4907 = vpow.pop %v4906
  %v4908 = vmul.f32 %v4809, 1.442695
  %v4909 = vpow.pop %v4908
  %v4910 = vmul.f32 %v4810, 1.442695
  %v4911 = vpow.pop %v4910
  %v4912 = vmul.f32 %v4811, 1.442695
  %v4913 = vpow.pop %v4912
  %v4914 = vmul.f32 %v4812, 1.442695
  %v4915 = vpow.pop %v4914
  %v4916 = vmul.f32 %v4813, 1.442695
  %v4917 = vpow.pop %v4916
  %v4918 = vmul.f32 %v4814, 1.442695
  %v4919 = vpow.pop %v4918
  %v4920 = vmul.f32 %v4815, 1.442695
  %v4921 = vpow.pop %v4920
  %v4922 = vmul.f32 %v4816, 1.442695
  %v4923 = vpow.pop %v4922
  %v4924 = vmul.f32 %v4817, 1.442695
  %v4925 = vpow.pop %v4924
  %v4926 = vmul.f32 %v4818, 1.442695
  %v4927 = vpow.pop %v4926
  %v4928 = vmul.f32 %v4819, 1.442695
  %v4929 = vpow.pop %v4928
  %v4930 = vmul.f32 %v4820, 1.442695
  %v4931 = vpow.pop %v4930
  %v4932 = vmul.f32 %v4821, 1.442695
  %v4933 = vpow.pop %v4932
  %v4934 = vmul.f32 %v4822, 1.442695
  %v4935 = vpow.pop %v4934
  %v4936 = vmul.f32 %v4823, 1.442695
  %v4937 = vpow.pop %v4936
  %v4938 = vmul.f32 %v4824, 1.442695
  %v4939 = vpow.pop %v4938
  %v4940 = vmul.f32 %v4825, 1.442695
  %v4941 = vpow.pop %v4940
  %v4942 = vmul.f32 %v4826, 1.442695
  %v4943 = vpow.pop %v4942
  %v4944 = vmul.f32 %v4827, 1.442695
  %v4945 = vpow.pop %v4944
  %v4946 = vmul.f32 %v4828, 1.442695
  %v4947 = vpow.pop %v4946
  %v4948 = vmul.f32 %v4829, 1.442695
  %v4949 = vpow.pop %v4948
  %v4950 = vmul.f32 %v4830, 1.442695
  %v4951 = vpow.pop %v4950
  %v4952 = vmul.f32 %v4831, 1.442695
  %v4953 = vpow.pop %v4952
  %v4954 = vmul.f32 %v4832, 1.442695
  %v4955 = vpow.pop %v4954
  %v4956 = vmul.f32 %v4833, 1.442695
  %v4957 = vpow.pop %v4956
  %v4958 = vmul.f32 %v4834, 1.442695
  %v4959 = vpow.pop %v4958
  %v4960 = vmul.f32 %v4835, 1.442695
  %v4961 = vpow.pop %v4960
  %v4962 = vmul.f32 %v4836, 1.442695
  %v4963 = vpow.pop %v4962
  %v4964 = vmul.f32 %v4837, 1.442695
  %v4965 = vpow.pop %v4964
  %v4966 = vmul.f32 %v4838, 1.442695
  %v4967 = vpow.pop %v4966
  %v4968 = vmul.f32 %v4839, 1.442695
  %v4969 = vpow.pop %v4968
  %v4970 = vmul.f32 %v4840, 1.442695
  %v4971 = vpow.pop %v4970
  %v4972 = vmul.f32 %v4841, 1.442695
  %v4973 = vpow.pop %v4972
  %v4974 = vmul.f32 %v4842, 1.442695
  %v4975 = vpow.pop %v4974
  %v4976 = vmul.f32 %v4843, 1.442695
  %v4977 = vpow.pop %v4976
  %v4978 = vmul.f32 %v4844, 1.442695
  %v4979 = vpow.pop %v4978
  %v4980 = vmul.f32 %v4845, 1.442695
  %v4981 = vpow.pop %v4980
  %v4982 = vmul.f32 %v4846, 1.442695
  %v4983 = vpow.pop %v4982
  %v4984 = vmul.f32 %v4847, 1.442695
  %v4985 = vpow.pop %v4984
  %v4986 = vmul.f32 %v4848, 1.442695
  %v4987 = vpow.pop %v4986
  %v4988 = vmul.f32 %v4849, 1.442695
  %v4989 = vpow.pop %v4988
  %v4990 = vmul.f32 %v4850, 1.442695
  %v4991 = vpow.pop %v4990
  %v4992 = vmul.f32 %v4851, 1.442695
  %v4993 = vpow.pop %v4992
  %v4994 = vmul.f32 %v4852, 1.442695
  %v4995 = vpow.pop %v4994
  %v4996 = vmul.f32 %v4853, 1.442695
  %v4997 = vpow.pop %v4996
  %v4998 = vmul.f32 %v4854, 1.442695
  %v4999 = vpow.pop %v4998
  %v5000 = vmul.f32 %v4855, 1.442695
  %v5001 = vpow.pop %v5000
  %v5002 = vmul.f32 %v4856, 1.442695
  %v5003 = vpow.pop %v5002
  %v5004 = vmul.f32 %v4857, 1.442695
  %v5005 = vpow.pop %v5004
  %v5006 = vmul.f32 %v4858, 1.442695
  %v5007 = vpow.pop %v5006
  %v5008 = vmul.f32 %v4859, 1.442695
  %v5009 = vpow.pop %v5008
  %v5010 = vmul.f32 %v4860, 1.442695
  %v5011 = vpow.pop %v5010
  %v5012 = vmul.f32 %v4861, 1.442695
  %v5013 = vpow.pop %v5012
  %v5014 = vmul.f32 %v4862, 1.442695
  %v5015 = vpow.pop %v5014
  %v5016 = vmul.f32 %v4863, 1.442695
  %v5017 = vpow.pop %v5016
  %v5018 = vmul.f32 %v4864, 1.442695
  %v5019 = vpow.pop %v5018
  %v5020 = vmul.f32 %v4865, 1.442695
  %v5021 = vpow.pop %v5020
  %v5022 = vmul.f32 %v4866, 1.442695
  %v5023 = vpow.pop %v5022
  %v5024 = vmul.f32 %v4867, 1.442695
  %v5025 = vpow.pop %v5024
  %v5026 = vmul.f32 %v4868, 1.442695
  %v5027 = vpow.pop %v5026
  %v5028 = vmul.f32 %v4869, 1.442695
  %v5029 = vpow.pop %v5028
  %v5030 = vsel %vm4549, %v4871, 0.0
  %v5031 = vsel %vm4549, %v4873, 0.0
  %v5032 = vsel %vm4549, %v4875, 0.0
  %v5033 = vsel %vm4549, %v4877, 0.0
  %v5034 = vsel %vm4549, %v4879, 0.0
  %v5035 = vsel %vm4549, %v4881, 0.0
  %v5036 = vsel %vm4549, %v4883, 0.0
  %v5037 = vsel %vm4549, %v4885, 0.0
  %v5038 = vsel %vm4549, %v4887, 0.0
  %v5039 = vsel %vm4549, %v4889, 0.0
  %v5040 = vsel %vm4549, %v4891, 0.0
  %v5041 = vsel %vm4549, %v4893, 0.0
  %v5042 = vsel %vm4549, %v4895, 0.0
  %v5043 = vsel %vm4549, %v4897, 0.0
  %v5044 = vsel %vm4549, %v4899, 0.0
  %v5045 = vsel %vm4549, %v4901, 0.0
  %v5046 = vsel %vm4549, %v4903, 0.0
  %v5047 = vsel %vm4549, %v4905, 0.0
  %v5048 = vsel %vm4549, %v4907, 0.0
  %v5049 = vsel %vm4549, %v4909, 0.0
  %v5050 = vsel %vm4549, %v4911, 0.0
  %v5051 = vsel %vm4549, %v4913, 0.0
  %v5052 = vsel %vm4549, %v4915, 0.0
  %v5053 = vsel %vm4549, %v4917, 0.0
  %v5054 = vsel %vm4549, %v4919, 0.0
  %v5055 = vsel %vm4549, %v4921, 0.0
  %v5056 = vsel %vm4549, %v4923, 0.0
  %v5057 = vsel %vm4549, %v4925, 0.0
  %v5058 = vsel %vm4549, %v4927, 0.0
  %v5059 = vsel %vm4549, %v4929, 0.0
  %v5060 = vsel %vm4549, %v4931, 0.0
  %v5061 = vsel %vm4549, %v4933, 0.0
  %v5062 = vsel %vm4549, %v4935, 0.0
  %v5063 = vsel %vm4549, %v4937, 0.0
  %v5064 = vsel %vm4549, %v4939, 0.0
  %v5065 = vsel %vm4549, %v4941, 0.0
  %v5066 = vsel %vm4549, %v4943, 0.0
  %v5067 = vsel %vm4549, %v4945, 0.0
  %v5068 = vsel %vm4549, %v4947, 0.0
  %v5069 = vsel %vm4549, %v4949, 0.0
  %v5070 = vsel %vm4549, %v4951, 0.0
  %v5071 = vsel %vm4549, %v4953, 0.0
  %v5072 = vsel %vm4549, %v4955, 0.0
  %v5073 = vsel %vm4549, %v4957, 0.0
  %v5074 = vsel %vm4549, %v4959, 0.0
  %v5075 = vsel %vm4549, %v4961, 0.0
  %v5076 = vsel %vm4549, %v4963, 0.0
  %v5077 = vsel %vm4549, %v4965, 0.0
  %v5078 = vsel %vm4549, %v4967, 0.0
  %v5079 = vsel %vm4549, %v4969, 0.0
  %v5080 = vsel %vm4549, %v4971, 0.0
  %v5081 = vsel %vm4549, %v4973, 0.0
  %v5082 = vsel %vm4549, %v4975, 0.0
  %v5083 = vsel %vm4549, %v4977, 0.0
  %v5084 = vsel %vm4549, %v4979, 0.0
  %v5085 = vsel %vm4549, %v4981, 0.0
  %v5086 = vsel %vm4549, %v4983, 0.0
  %v5087 = vsel %vm4549, %v4985, 0.0
  %v5088 = vsel %vm4549, %v4987, 0.0
  %v5089 = vsel %vm4549, %v4989, 0.0
  %v5090 = vsel %vm4549, %v4991, 0.0
  %v5091 = vsel %vm4549, %v4993, 0.0
  %v5092 = vsel %vm4549, %v4995, 0.0
  %v5093 = vsel %vm4549, %v4997, 0.0
  %v5094 = vsel %vm4549, %v4999, 0.0
  %v5095 = vsel %vm4549, %v5001, 0.0
  %v5096 = vsel %vm4549, %v5003, 0.0
  %v5097 = vsel %vm4549, %v5005, 0.0
  %v5098 = vsel %vm4549, %v5007, 0.0
  %v5099 = vsel %vm4549, %v5009, 0.0
  %v5100 = vsel %vm4549, %v5011, 0.0
  %v5101 = vsel %vm4549, %v5013, 0.0
  %v5102 = vsel %vm4549, %v5015, 0.0
  %v5103 = vsel %vm4549, %v5017, 0.0
  %v5104 = vsel %vm4549, %v5019, 0.0
  %v5105 = vsel %vm4549, %v5021, 0.0
  %v5106 = vsel %vm4549, %v5023, 0.0
  %v5107 = vsel %vm4549, %v5025, 0.0
  %v5108 = vsel %vm4549, %v5027, 0.0
  %v5109 = vsel %vm4549, %v5029, 0.0
  %5110 = vadd.xlane.f32.xlu0 %v5030
  %v5111 = vpop.xlane.xlu0 %5110
  %5112 = vadd.xlane.f32.xlu0 %v5031
  %v5113 = vpop.xlane.xlu0 %5112
  %5114 = vadd.xlane.f32.xlu0 %v5032
  %v5115 = vpop.xlane.xlu0 %5114
  %5116 = vadd.xlane.f32.xlu0 %v5033
  %v5117 = vpop.xlane.xlu0 %5116
  %5118 = vadd.xlane.f32.xlu0 %v5034
  %v5119 = vpop.xlane.xlu0 %5118
  %5120 = vadd.xlane.f32.xlu0 %v5035
  %v5121 = vpop.xlane.xlu0 %5120
  %5122 = vadd.xlane.f32.xlu0 %v5036
  %v5123 = vpop.xlane.xlu0 %5122
  %5124 = vadd.xlane.f32.xlu0 %v5037
  %v5125 = vpop.xlane.xlu0 %5124
  %5126 = vadd.xlane.f32.xlu0 %v5038
  %v5127 = vpop.xlane.xlu0 %5126
  %5128 = vadd.xlane.f32.xlu0 %v5039
  %v5129 = vpop.xlane.xlu0 %5128
  %5130 = vadd.xlane.f32.xlu0 %v5040
  %v5131 = vpop.xlane.xlu0 %5130
  %5132 = vadd.xlane.f32.xlu0 %v5041
  %v5133 = vpop.xlane.xlu0 %5132
  %5134 = vadd.xlane.f32.xlu0 %v5042
  %v5135 = vpop.xlane.xlu0 %5134
  %5136 = vadd.xlane.f32.xlu0 %v5043
  %v5137 = vpop.xlane.xlu0 %5136
  %5138 = vadd.xlane.f32.xlu0 %v5044
  %v5139 = vpop.xlane.xlu0 %5138
  %5140 = vadd.xlane.f32.xlu0 %v5045
  %v5141 = vpop.xlane.xlu0 %5140
  %5142 = vadd.xlane.f32.xlu0 %v5046
  %v5143 = vpop.xlane.xlu0 %5142
  %5144 = vadd.xlane.f32.xlu0 %v5047
  %v5145 = vpop.xlane.xlu0 %5144
  %5146 = vadd.xlane.f32.xlu0 %v5048
  %v5147 = vpop.xlane.xlu0 %5146
  %5148 = vadd.xlane.f32.xlu0 %v5049
  %v5149 = vpop.xlane.xlu0 %5148
  %5150 = vadd.xlane.f32.xlu0 %v5050
  %v5151 = vpop.xlane.xlu0 %5150
  %5152 = vadd.xlane.f32.xlu0 %v5051
  %v5153 = vpop.xlane.xlu0 %5152
  %5154 = vadd.xlane.f32.xlu0 %v5052
  %v5155 = vpop.xlane.xlu0 %5154
  %5156 = vadd.xlane.f32.xlu0 %v5053
  %v5157 = vpop.xlane.xlu0 %5156
  %5158 = vadd.xlane.f32.xlu0 %v5054
  %v5159 = vpop.xlane.xlu0 %5158
  %5160 = vadd.xlane.f32.xlu0 %v5055
  %v5161 = vpop.xlane.xlu0 %5160
  %5162 = vadd.xlane.f32.xlu0 %v5056
  %v5163 = vpop.xlane.xlu0 %5162
  %5164 = vadd.xlane.f32.xlu0 %v5057
  %v5165 = vpop.xlane.xlu0 %5164
  %5166 = vadd.xlane.f32.xlu0 %v5058
  %v5167 = vpop.xlane.xlu0 %5166
  %5168 = vadd.xlane.f32.xlu0 %v5059
  %v5169 = vpop.xlane.xlu0 %5168
  %5170 = vadd.xlane.f32.xlu0 %v5060
  %v5171 = vpop.xlane.xlu0 %5170
  %5172 = vadd.xlane.f32.xlu0 %v5061
  %v5173 = vpop.xlane.xlu0 %5172
  %5174 = vadd.xlane.f32.xlu0 %v5062
  %v5175 = vpop.xlane.xlu0 %5174
  %5176 = vadd.xlane.f32.xlu0 %v5063
  %v5177 = vpop.xlane.xlu0 %5176
  %5178 = vadd.xlane.f32.xlu0 %v5064
  %v5179 = vpop.xlane.xlu0 %5178
  %5180 = vadd.xlane.f32.xlu0 %v5065
  %v5181 = vpop.xlane.xlu0 %5180
  %5182 = vadd.xlane.f32.xlu0 %v5066
  %v5183 = vpop.xlane.xlu0 %5182
  %5184 = vadd.xlane.f32.xlu0 %v5067
  %v5185 = vpop.xlane.xlu0 %5184
  %5186 = vadd.xlane.f32.xlu0 %v5068
  %v5187 = vpop.xlane.xlu0 %5186
  %5188 = vadd.xlane.f32.xlu0 %v5069
  %v5189 = vpop.xlane.xlu0 %5188
  %5190 = vadd.xlane.f32.xlu0 %v5070
  %v5191 = vpop.xlane.xlu0 %5190
  %5192 = vadd.xlane.f32.xlu0 %v5071
  %v5193 = vpop.xlane.xlu0 %5192
  %5194 = vadd.xlane.f32.xlu0 %v5072
  %v5195 = vpop.xlane.xlu0 %5194
  %5196 = vadd.xlane.f32.xlu0 %v5073
  %v5197 = vpop.xlane.xlu0 %5196
  %5198 = vadd.xlane.f32.xlu0 %v5074
  %v5199 = vpop.xlane.xlu0 %5198
  %5200 = vadd.xlane.f32.xlu0 %v5075
  %v5201 = vpop.xlane.xlu0 %5200
  %5202 = vadd.xlane.f32.xlu0 %v5076
  %v5203 = vpop.xlane.xlu0 %5202
  %5204 = vadd.xlane.f32.xlu0 %v5077
  %v5205 = vpop.xlane.xlu0 %5204
  %5206 = vadd.xlane.f32.xlu0 %v5078
  %v5207 = vpop.xlane.xlu0 %5206
  %5208 = vadd.xlane.f32.xlu0 %v5079
  %v5209 = vpop.xlane.xlu0 %5208
  %5210 = vadd.xlane.f32.xlu0 %v5080
  %v5211 = vpop.xlane.xlu0 %5210
  %5212 = vadd.xlane.f32.xlu0 %v5081
  %v5213 = vpop.xlane.xlu0 %5212
  %5214 = vadd.xlane.f32.xlu0 %v5082
  %v5215 = vpop.xlane.xlu0 %5214
  %5216 = vadd.xlane.f32.xlu0 %v5083
  %v5217 = vpop.xlane.xlu0 %5216
  %5218 = vadd.xlane.f32.xlu0 %v5084
  %v5219 = vpop.xlane.xlu0 %5218
  %5220 = vadd.xlane.f32.xlu0 %v5085
  %v5221 = vpop.xlane.xlu0 %5220
  %5222 = vadd.xlane.f32.xlu0 %v5086
  %v5223 = vpop.xlane.xlu0 %5222
  %5224 = vadd.xlane.f32.xlu0 %v5087
  %v5225 = vpop.xlane.xlu0 %5224
  %5226 = vadd.xlane.f32.xlu0 %v5088
  %v5227 = vpop.xlane.xlu0 %5226
  %5228 = vadd.xlane.f32.xlu0 %v5089
  %v5229 = vpop.xlane.xlu0 %5228
  %5230 = vadd.xlane.f32.xlu0 %v5090
  %v5231 = vpop.xlane.xlu0 %5230
  %5232 = vadd.xlane.f32.xlu0 %v5091
  %v5233 = vpop.xlane.xlu0 %5232
  %5234 = vadd.xlane.f32.xlu0 %v5092
  %v5235 = vpop.xlane.xlu0 %5234
  %5236 = vadd.xlane.f32.xlu0 %v5093
  %v5237 = vpop.xlane.xlu0 %5236
  %5238 = vadd.xlane.f32.xlu0 %v5094
  %v5239 = vpop.xlane.xlu0 %5238
  %5240 = vadd.xlane.f32.xlu0 %v5095
  %v5241 = vpop.xlane.xlu0 %5240
  %5242 = vadd.xlane.f32.xlu0 %v5096
  %v5243 = vpop.xlane.xlu0 %5242
  %5244 = vadd.xlane.f32.xlu0 %v5097
  %v5245 = vpop.xlane.xlu0 %5244
  %5246 = vadd.xlane.f32.xlu0 %v5098
  %v5247 = vpop.xlane.xlu0 %5246
  %5248 = vadd.xlane.f32.xlu0 %v5099
  %v5249 = vpop.xlane.xlu0 %5248
  %5250 = vadd.xlane.f32.xlu0 %v5100
  %v5251 = vpop.xlane.xlu0 %5250
  %5252 = vadd.xlane.f32.xlu0 %v5101
  %v5253 = vpop.xlane.xlu0 %5252
  %5254 = vadd.xlane.f32.xlu0 %v5102
  %v5255 = vpop.xlane.xlu0 %5254
  %5256 = vadd.xlane.f32.xlu0 %v5103
  %v5257 = vpop.xlane.xlu0 %5256
  %5258 = vadd.xlane.f32.xlu0 %v5104
  %v5259 = vpop.xlane.xlu0 %5258
  %5260 = vadd.xlane.f32.xlu0 %v5105
  %v5261 = vpop.xlane.xlu0 %5260
  %5262 = vadd.xlane.f32.xlu0 %v5106
  %v5263 = vpop.xlane.xlu0 %5262
  %5264 = vadd.xlane.f32.xlu0 %v5107
  %v5265 = vpop.xlane.xlu0 %5264
  %5266 = vadd.xlane.f32.xlu0 %v5108
  %v5267 = vpop.xlane.xlu0 %5266
  %5268 = vadd.xlane.f32.xlu0 %v5109
  %v5269 = vpop.xlane.xlu0 %5268
  %v5270 = vlog2.pop %v5111
  %v5271 = vmul.f32 %v5270, 0.6931472
  %v5272 = vlog2.pop %v5113
  %v5273 = vmul.f32 %v5272, 0.6931472
  %v5274 = vlog2.pop %v5115
  %v5275 = vmul.f32 %v5274, 0.6931472
  %v5276 = vlog2.pop %v5117
  %v5277 = vmul.f32 %v5276, 0.6931472
  %v5278 = vlog2.pop %v5119
  %v5279 = vmul.f32 %v5278, 0.6931472
  %v5280 = vlog2.pop %v5121
  %v5281 = vmul.f32 %v5280, 0.6931472
  %v5282 = vlog2.pop %v5123
  %v5283 = vmul.f32 %v5282, 0.6931472
  %v5284 = vlog2.pop %v5125
  %v5285 = vmul.f32 %v5284, 0.6931472
  %v5286 = vlog2.pop %v5127
  %v5287 = vmul.f32 %v5286, 0.6931472
  %v5288 = vlog2.pop %v5129
  %v5289 = vmul.f32 %v5288, 0.6931472
  %v5290 = vlog2.pop %v5131
  %v5291 = vmul.f32 %v5290, 0.6931472
  %v5292 = vlog2.pop %v5133
  %v5293 = vmul.f32 %v5292, 0.6931472
  %v5294 = vlog2.pop %v5135
  %v5295 = vmul.f32 %v5294, 0.6931472
  %v5296 = vlog2.pop %v5137
  %v5297 = vmul.f32 %v5296, 0.6931472
  %v5298 = vlog2.pop %v5139
  %v5299 = vmul.f32 %v5298, 0.6931472
  %v5300 = vlog2.pop %v5141
  %v5301 = vmul.f32 %v5300, 0.6931472
  %v5302 = vlog2.pop %v5143
  %v5303 = vmul.f32 %v5302, 0.6931472
  %v5304 = vlog2.pop %v5145
  %v5305 = vmul.f32 %v5304, 0.6931472
  %v5306 = vlog2.pop %v5147
  %v5307 = vmul.f32 %v5306, 0.6931472
  %v5308 = vlog2.pop %v5149
  %v5309 = vmul.f32 %v5308, 0.6931472
  %v5310 = vlog2.pop %v5151
  %v5311 = vmul.f32 %v5310, 0.6931472
  %v5312 = vlog2.pop %v5153
  %v5313 = vmul.f32 %v5312, 0.6931472
  %v5314 = vlog2.pop %v5155
  %v5315 = vmul.f32 %v5314, 0.6931472
  %v5316 = vlog2.pop %v5157
  %v5317 = vmul.f32 %v5316, 0.6931472
  %v5318 = vlog2.pop %v5159
  %v5319 = vmul.f32 %v5318, 0.6931472
  %v5320 = vlog2.pop %v5161
  %v5321 = vmul.f32 %v5320, 0.6931472
  %v5322 = vlog2.pop %v5163
  %v5323 = vmul.f32 %v5322, 0.6931472
  %v5324 = vlog2.pop %v5165
  %v5325 = vmul.f32 %v5324, 0.6931472
  %v5326 = vlog2.pop %v5167
  %v5327 = vmul.f32 %v5326, 0.6931472
  %v5328 = vlog2.pop %v5169
  %v5329 = vmul.f32 %v5328, 0.6931472
  %v5330 = vlog2.pop %v5171
  %v5331 = vmul.f32 %v5330, 0.6931472
  %v5332 = vlog2.pop %v5173
  %v5333 = vmul.f32 %v5332, 0.6931472
  %v5334 = vlog2.pop %v5175
  %v5335 = vmul.f32 %v5334, 0.6931472
  %v5336 = vlog2.pop %v5177
  %v5337 = vmul.f32 %v5336, 0.6931472
  %v5338 = vlog2.pop %v5179
  %v5339 = vmul.f32 %v5338, 0.6931472
  %v5340 = vlog2.pop %v5181
  %v5341 = vmul.f32 %v5340, 0.6931472
  %v5342 = vlog2.pop %v5183
  %v5343 = vmul.f32 %v5342, 0.6931472
  %v5344 = vlog2.pop %v5185
  %v5345 = vmul.f32 %v5344, 0.6931472
  %v5346 = vlog2.pop %v5187
  %v5347 = vmul.f32 %v5346, 0.6931472
  %v5348 = vlog2.pop %v5189
  %v5349 = vmul.f32 %v5348, 0.6931472
  %v5350 = vlog2.pop %v5191
  %v5351 = vmul.f32 %v5350, 0.6931472
  %v5352 = vlog2.pop %v5193
  %v5353 = vmul.f32 %v5352, 0.6931472
  %v5354 = vlog2.pop %v5195
  %v5355 = vmul.f32 %v5354, 0.6931472
  %v5356 = vlog2.pop %v5197
  %v5357 = vmul.f32 %v5356, 0.6931472
  %v5358 = vlog2.pop %v5199
  %v5359 = vmul.f32 %v5358, 0.6931472
  %v5360 = vlog2.pop %v5201
  %v5361 = vmul.f32 %v5360, 0.6931472
  %v5362 = vlog2.pop %v5203
  %v5363 = vmul.f32 %v5362, 0.6931472
  %v5364 = vlog2.pop %v5205
  %v5365 = vmul.f32 %v5364, 0.6931472
  %v5366 = vlog2.pop %v5207
  %v5367 = vmul.f32 %v5366, 0.6931472
  %v5368 = vlog2.pop %v5209
  %v5369 = vmul.f32 %v5368, 0.6931472
  %v5370 = vlog2.pop %v5211
  %v5371 = vmul.f32 %v5370, 0.6931472
  %v5372 = vlog2.pop %v5213
  %v5373 = vmul.f32 %v5372, 0.6931472
  %v5374 = vlog2.pop %v5215
  %v5375 = vmul.f32 %v5374, 0.6931472
  %v5376 = vlog2.pop %v5217
  %v5377 = vmul.f32 %v5376, 0.6931472
  %v5378 = vlog2.pop %v5219
  %v5379 = vmul.f32 %v5378, 0.6931472
  %v5380 = vlog2.pop %v5221
  %v5381 = vmul.f32 %v5380, 0.6931472
  %v5382 = vlog2.pop %v5223
  %v5383 = vmul.f32 %v5382, 0.6931472
  %v5384 = vlog2.pop %v5225
  %v5385 = vmul.f32 %v5384, 0.6931472
  %v5386 = vlog2.pop %v5227
  %v5387 = vmul.f32 %v5386, 0.6931472
  %v5388 = vlog2.pop %v5229
  %v5389 = vmul.f32 %v5388, 0.6931472
  %v5390 = vlog2.pop %v5231
  %v5391 = vmul.f32 %v5390, 0.6931472
  %v5392 = vlog2.pop %v5233
  %v5393 = vmul.f32 %v5392, 0.6931472
  %v5394 = vlog2.pop %v5235
  %v5395 = vmul.f32 %v5394, 0.6931472
  %v5396 = vlog2.pop %v5237
  %v5397 = vmul.f32 %v5396, 0.6931472
  %v5398 = vlog2.pop %v5239
  %v5399 = vmul.f32 %v5398, 0.6931472
  %v5400 = vlog2.pop %v5241
  %v5401 = vmul.f32 %v5400, 0.6931472
  %v5402 = vlog2.pop %v5243
  %v5403 = vmul.f32 %v5402, 0.6931472
  %v5404 = vlog2.pop %v5245
  %v5405 = vmul.f32 %v5404, 0.6931472
  %v5406 = vlog2.pop %v5247
  %v5407 = vmul.f32 %v5406, 0.6931472
  %v5408 = vlog2.pop %v5249
  %v5409 = vmul.f32 %v5408, 0.6931472
  %v5410 = vlog2.pop %v5251
  %v5411 = vmul.f32 %v5410, 0.6931472
  %v5412 = vlog2.pop %v5253
  %v5413 = vmul.f32 %v5412, 0.6931472
  %v5414 = vlog2.pop %v5255
  %v5415 = vmul.f32 %v5414, 0.6931472
  %v5416 = vlog2.pop %v5257
  %v5417 = vmul.f32 %v5416, 0.6931472
  %v5418 = vlog2.pop %v5259
  %v5419 = vmul.f32 %v5418, 0.6931472
  %v5420 = vlog2.pop %v5261
  %v5421 = vmul.f32 %v5420, 0.6931472
  %v5422 = vlog2.pop %v5263
  %v5423 = vmul.f32 %v5422, 0.6931472
  %v5424 = vlog2.pop %v5265
  %v5425 = vmul.f32 %v5424, 0.6931472
  %v5426 = vlog2.pop %v5267
  %v5427 = vmul.f32 %v5426, 0.6931472
  %v5428 = vlog2.pop %v5269
  %v5429 = vmul.f32 %v5428, 0.6931472
  %v5430 = vsub.f32 %v4790, %v5271
  %v5431 = vsub.f32 %v4791, %v5273
  %v5432 = vsub.f32 %v4792, %v5275
  %v5433 = vsub.f32 %v4793, %v5277
  %v5434 = vsub.f32 %v4794, %v5279
  %v5435 = vsub.f32 %v4795, %v5281
  %v5436 = vsub.f32 %v4796, %v5283
  %v5437 = vsub.f32 %v4797, %v5285
  %v5438 = vsub.f32 %v4798, %v5287
  %v5439 = vsub.f32 %v4799, %v5289
  %v5440 = vsub.f32 %v4800, %v5291
  %v5441 = vsub.f32 %v4801, %v5293
  %v5442 = vsub.f32 %v4802, %v5295
  %v5443 = vsub.f32 %v4803, %v5297
  %v5444 = vsub.f32 %v4804, %v5299
  %v5445 = vsub.f32 %v4805, %v5301
  %v5446 = vsub.f32 %v4806, %v5303
  %v5447 = vsub.f32 %v4807, %v5305
  %v5448 = vsub.f32 %v4808, %v5307
  %v5449 = vsub.f32 %v4809, %v5309
  %v5450 = vsub.f32 %v4810, %v5311
  %v5451 = vsub.f32 %v4811, %v5313
  %v5452 = vsub.f32 %v4812, %v5315
  %v5453 = vsub.f32 %v4813, %v5317
  %v5454 = vsub.f32 %v4814, %v5319
  %v5455 = vsub.f32 %v4815, %v5321
  %v5456 = vsub.f32 %v4816, %v5323
  %v5457 = vsub.f32 %v4817, %v5325
  %v5458 = vsub.f32 %v4818, %v5327
  %v5459 = vsub.f32 %v4819, %v5329
  %v5460 = vsub.f32 %v4820, %v5331
  %v5461 = vsub.f32 %v4821, %v5333
  %v5462 = vsub.f32 %v4822, %v5335
  %v5463 = vsub.f32 %v4823, %v5337
  %v5464 = vsub.f32 %v4824, %v5339
  %v5465 = vsub.f32 %v4825, %v5341
  %v5466 = vsub.f32 %v4826, %v5343
  %v5467 = vsub.f32 %v4827, %v5345
  %v5468 = vsub.f32 %v4828, %v5347
  %v5469 = vsub.f32 %v4829, %v5349
  %v5470 = vsub.f32 %v4830, %v5351
  %v5471 = vsub.f32 %v4831, %v5353
  %v5472 = vsub.f32 %v4832, %v5355
  %v5473 = vsub.f32 %v4833, %v5357
  %v5474 = vsub.f32 %v4834, %v5359
  %v5475 = vsub.f32 %v4835, %v5361
  %v5476 = vsub.f32 %v4836, %v5363
  %v5477 = vsub.f32 %v4837, %v5365
  %v5478 = vsub.f32 %v4838, %v5367
  %v5479 = vsub.f32 %v4839, %v5369
  %v5480 = vsub.f32 %v4840, %v5371
  %v5481 = vsub.f32 %v4841, %v5373
  %v5482 = vsub.f32 %v4842, %v5375
  %v5483 = vsub.f32 %v4843, %v5377
  %v5484 = vsub.f32 %v4844, %v5379
  %v5485 = vsub.f32 %v4845, %v5381
  %v5486 = vsub.f32 %v4846, %v5383
  %v5487 = vsub.f32 %v4847, %v5385
  %v5488 = vsub.f32 %v4848, %v5387
  %v5489 = vsub.f32 %v4849, %v5389
  %v5490 = vsub.f32 %v4850, %v5391
  %v5491 = vsub.f32 %v4851, %v5393
  %v5492 = vsub.f32 %v4852, %v5395
  %v5493 = vsub.f32 %v4853, %v5397
  %v5494 = vsub.f32 %v4854, %v5399
  %v5495 = vsub.f32 %v4855, %v5401
  %v5496 = vsub.f32 %v4856, %v5403
  %v5497 = vsub.f32 %v4857, %v5405
  %v5498 = vsub.f32 %v4858, %v5407
  %v5499 = vsub.f32 %v4859, %v5409
  %v5500 = vsub.f32 %v4860, %v5411
  %v5501 = vsub.f32 %v4861, %v5413
  %v5502 = vsub.f32 %v4862, %v5415
  %v5503 = vsub.f32 %v4863, %v5417
  %v5504 = vsub.f32 %v4864, %v5419
  %v5505 = vsub.f32 %v4865, %v5421
  %v5506 = vsub.f32 %v4866, %v5423
  %v5507 = vsub.f32 %v4867, %v5425
  %v5508 = vsub.f32 %v4868, %v5427
  %v5509 = vsub.f32 %v4869, %v5429
  %v5510 = vsel %vm4549, %v5430, 0.0
  %v5511 = vsel %vm4549, %v5431, 0.0
  %v5512 = vsel %vm4549, %v5432, 0.0
  %v5513 = vsel %vm4549, %v5433, 0.0
  %v5514 = vsel %vm4549, %v5434, 0.0
  %v5515 = vsel %vm4549, %v5435, 0.0
  %v5516 = vsel %vm4549, %v5436, 0.0
  %v5517 = vsel %vm4549, %v5437, 0.0
  %v5518 = vsel %vm4549, %v5438, 0.0
  %v5519 = vsel %vm4549, %v5439, 0.0
  %v5520 = vsel %vm4549, %v5440, 0.0
  %v5521 = vsel %vm4549, %v5441, 0.0
  %v5522 = vsel %vm4549, %v5442, 0.0
  %v5523 = vsel %vm4549, %v5443, 0.0
  %v5524 = vsel %vm4549, %v5444, 0.0
  %v5525 = vsel %vm4549, %v5445, 0.0
  %v5526 = vsel %vm4549, %v5446, 0.0
  %v5527 = vsel %vm4549, %v5447, 0.0
  %v5528 = vsel %vm4549, %v5448, 0.0
  %v5529 = vsel %vm4549, %v5449, 0.0
  %v5530 = vsel %vm4549, %v5450, 0.0
  %v5531 = vsel %vm4549, %v5451, 0.0
  %v5532 = vsel %vm4549, %v5452, 0.0
  %v5533 = vsel %vm4549, %v5453, 0.0
  %v5534 = vsel %vm4549, %v5454, 0.0
  %v5535 = vsel %vm4549, %v5455, 0.0
  %v5536 = vsel %vm4549, %v5456, 0.0
  %v5537 = vsel %vm4549, %v5457, 0.0
  %v5538 = vsel %vm4549, %v5458, 0.0
  %v5539 = vsel %vm4549, %v5459, 0.0
  %v5540 = vsel %vm4549, %v5460, 0.0
  %v5541 = vsel %vm4549, %v5461, 0.0
  %v5542 = vsel %vm4549, %v5462, 0.0
  %v5543 = vsel %vm4549, %v5463, 0.0
  %v5544 = vsel %vm4549, %v5464, 0.0
  %v5545 = vsel %vm4549, %v5465, 0.0
  %v5546 = vsel %vm4549, %v5466, 0.0
  %v5547 = vsel %vm4549, %v5467, 0.0
  %v5548 = vsel %vm4549, %v5468, 0.0
  %v5549 = vsel %vm4549, %v5469, 0.0
  %v5550 = vsel %vm4549, %v5470, 0.0
  %v5551 = vsel %vm4549, %v5471, 0.0
  %v5552 = vsel %vm4549, %v5472, 0.0
  %v5553 = vsel %vm4549, %v5473, 0.0
  %v5554 = vsel %vm4549, %v5474, 0.0
  %v5555 = vsel %vm4549, %v5475, 0.0
  %v5556 = vsel %vm4549, %v5476, 0.0
  %v5557 = vsel %vm4549, %v5477, 0.0
  %v5558 = vsel %vm4549, %v5478, 0.0
  %v5559 = vsel %vm4549, %v5479, 0.0
  %v5560 = vsel %vm4549, %v5480, 0.0
  %v5561 = vsel %vm4549, %v5481, 0.0
  %v5562 = vsel %vm4549, %v5482, 0.0
  %v5563 = vsel %vm4549, %v5483, 0.0
  %v5564 = vsel %vm4549, %v5484, 0.0
  %v5565 = vsel %vm4549, %v5485, 0.0
  %v5566 = vsel %vm4549, %v5486, 0.0
  %v5567 = vsel %vm4549, %v5487, 0.0
  %v5568 = vsel %vm4549, %v5488, 0.0
  %v5569 = vsel %vm4549, %v5489, 0.0
  %v5570 = vsel %vm4549, %v5490, 0.0
  %v5571 = vsel %vm4549, %v5491, 0.0
  %v5572 = vsel %vm4549, %v5492, 0.0
  %v5573 = vsel %vm4549, %v5493, 0.0
  %v5574 = vsel %vm4549, %v5494, 0.0
  %v5575 = vsel %vm4549, %v5495, 0.0
  %v5576 = vsel %vm4549, %v5496, 0.0
  %v5577 = vsel %vm4549, %v5497, 0.0
  %v5578 = vsel %vm4549, %v5498, 0.0
  %v5579 = vsel %vm4549, %v5499, 0.0
  %v5580 = vsel %vm4549, %v5500, 0.0
  %v5581 = vsel %vm4549, %v5501, 0.0
  %v5582 = vsel %vm4549, %v5502, 0.0
  %v5583 = vsel %vm4549, %v5503, 0.0
  %v5584 = vsel %vm4549, %v5504, 0.0
  %v5585 = vsel %vm4549, %v5505, 0.0
  %v5586 = vsel %vm4549, %v5506, 0.0
  %v5587 = vsel %vm4549, %v5507, 0.0
  %v5588 = vsel %vm4549, %v5508, 0.0
  %v5589 = vsel %vm4549, %v5509, 0.0
  %5590 = vst [vmem:[%s6] sm:$0xff] %v5510
  %5591 = vst [vmem:[%s6 + $0x8] sm:$0xff] %v5511
  %5592 = vst [vmem:[%s6 + $0x10] sm:$0xff] %v5512
  %5593 = vst [vmem:[%s6 + $0x18] sm:$0xff] %v5513
  %5594 = vst [vmem:[%s6 + $0x20] sm:$0xff] %v5514
  %5595 = vst [vmem:[%s6 + $0x28] sm:$0xff] %v5515
  %5596 = vst [vmem:[%s6 + $0x30] sm:$0xff] %v5516
  %5597 = vst [vmem:[%s6 + $0x38] sm:$0xff] %v5517
  %5598 = vst [vmem:[%s6 + $0x40] sm:$0xff] %v5518
  %5599 = vst [vmem:[%s6 + $0x48] sm:$0xff] %v5519
  %5600 = vst [vmem:[%s6 + $0x50] sm:$0xff] %v5520
  %5601 = vst [vmem:[%s6 + $0x58] sm:$0xff] %v5521
  %5602 = vst [vmem:[%s6 + $0x60] sm:$0xff] %v5522
  %5603 = vst [vmem:[%s6 + $0x68] sm:$0xff] %v5523
  %5604 = vst [vmem:[%s6 + $0x70] sm:$0xff] %v5524
  %5605 = vst [vmem:[%s6 + $0x78] sm:$0xff] %v5525
  %5606 = vst [vmem:[%s6 + $0x80] sm:$0xff] %v5526
  %5607 = vst [vmem:[%s6 + $0x88] sm:$0xff] %v5527
  %5608 = vst [vmem:[%s6 + $0x90] sm:$0xff] %v5528
  %5609 = vst [vmem:[%s6 + $0x98] sm:$0xff] %v5529
  %5610 = vst [vmem:[%s6 + $0xa0] sm:$0xff] %v5530
  %5611 = vst [vmem:[%s6 + $0xa8] sm:$0xff] %v5531
  %5612 = vst [vmem:[%s6 + $0xb0] sm:$0xff] %v5532
  %5613 = vst [vmem:[%s6 + $0xb8] sm:$0xff] %v5533
  %5614 = vst [vmem:[%s6 + $0xc0] sm:$0xff] %v5534
  %5615 = vst [vmem:[%s6 + $0xc8] sm:$0xff] %v5535
  %5616 = vst [vmem:[%s6 + $0xd0] sm:$0xff] %v5536
  %5617 = vst [vmem:[%s6 + $0xd8] sm:$0xff] %v5537
  %5618 = vst [vmem:[%s6 + $0xe0] sm:$0xff] %v5538
  %5619 = vst [vmem:[%s6 + $0xe8] sm:$0xff] %v5539
  %5620 = vst [vmem:[%s6 + $0xf0] sm:$0xff] %v5540
  %5621 = vst [vmem:[%s6 + $0xf8] sm:$0xff] %v5541
  %5622 = vst [vmem:[%s6 + $0x100] sm:$0xff] %v5542
  %5623 = vst [vmem:[%s6 + $0x108] sm:$0xff] %v5543
  %5624 = vst [vmem:[%s6 + $0x110] sm:$0xff] %v5544
  %5625 = vst [vmem:[%s6 + $0x118] sm:$0xff] %v5545
  %5626 = vst [vmem:[%s6 + $0x120] sm:$0xff] %v5546
  %5627 = vst [vmem:[%s6 + $0x128] sm:$0xff] %v5547
  %5628 = vst [vmem:[%s6 + $0x130] sm:$0xff] %v5548
  %5629 = vst [vmem:[%s6 + $0x138] sm:$0xff] %v5549
  %5630 = vst [vmem:[%s6 + $0x140] sm:$0xff] %v5550
  %5631 = vst [vmem:[%s6 + $0x148] sm:$0xff] %v5551
  %5632 = vst [vmem:[%s6 + $0x150] sm:$0xff] %v5552
  %5633 = vst [vmem:[%s6 + $0x158] sm:$0xff] %v5553
  %5634 = vst [vmem:[%s6 + $0x160] sm:$0xff] %v5554
  %5635 = vst [vmem:[%s6 + $0x168] sm:$0xff] %v5555
  %5636 = vst [vmem:[%s6 + $0x170] sm:$0xff] %v5556
  %5637 = vst [vmem:[%s6 + $0x178] sm:$0xff] %v5557
  %5638 = vst [vmem:[%s6 + $0x180] sm:$0xff] %v5558
  %5639 = vst [vmem:[%s6 + $0x188] sm:$0xff] %v5559
  %5640 = vst [vmem:[%s6 + $0x190] sm:$0xff] %v5560
  %5641 = vst [vmem:[%s6 + $0x198] sm:$0xff] %v5561
  %5642 = vst [vmem:[%s6 + $0x1a0] sm:$0xff] %v5562
  %5643 = vst [vmem:[%s6 + $0x1a8] sm:$0xff] %v5563
  %5644 = vst [vmem:[%s6 + $0x1b0] sm:$0xff] %v5564
  %5645 = vst [vmem:[%s6 + $0x1b8] sm:$0xff] %v5565
  %5646 = vst [vmem:[%s6 + $0x1c0] sm:$0xff] %v5566
  %5647 = vst [vmem:[%s6 + $0x1c8] sm:$0xff] %v5567
  %5648 = vst [vmem:[%s6 + $0x1d0] sm:$0xff] %v5568
  %5649 = vst [vmem:[%s6 + $0x1d8] sm:$0xff] %v5569
  %5650 = vst [vmem:[%s6 + $0x1e0] sm:$0xff] %v5570
  %5651 = vst [vmem:[%s6 + $0x1e8] sm:$0xff] %v5571
  %5652 = vst [vmem:[%s6 + $0x1f0] sm:$0xff] %v5572
  %5653 = vst [vmem:[%s6 + $0x1f8] sm:$0xff] %v5573
  %5654 = vst [vmem:[%s6 + $0x200] sm:$0xff] %v5574
  %5655 = vst [vmem:[%s6 + $0x208] sm:$0xff] %v5575
  %5656 = vst [vmem:[%s6 + $0x210] sm:$0xff] %v5576
  %5657 = vst [vmem:[%s6 + $0x218] sm:$0xff] %v5577
  %5658 = vst [vmem:[%s6 + $0x220] sm:$0xff] %v5578
  %5659 = vst [vmem:[%s6 + $0x228] sm:$0xff] %v5579
  %5660 = vst [vmem:[%s6 + $0x230] sm:$0xff] %v5580
  %5661 = vst [vmem:[%s6 + $0x238] sm:$0xff] %v5581
  %5662 = vst [vmem:[%s6 + $0x240] sm:$0xff] %v5582
  %5663 = vst [vmem:[%s6 + $0x248] sm:$0xff] %v5583
  %5664 = vst [vmem:[%s6 + $0x250] sm:$0xff] %v5584
  %5665 = vst [vmem:[%s6 + $0x258] sm:$0xff] %v5585
  %5666 = vst [vmem:[%s6 + $0x260] sm:$0xff] %v5586
  %5667 = vst [vmem:[%s6 + $0x268] sm:$0xff] %v5587
  %5668 = vst [vmem:[%s6 + $0x270] sm:$0xff] %v5588
  %5669 = vst [vmem:[%s6 + $0x278] sm:$0xff] %v5589
  // Predicated region
  $region26: #{gcn_net_forward.1} parent=0 // pred_check
    _
  $region27: #{gcn_net_forward.1} parent=0 // pred_check_branch
    %5671 = sbr.rel (0) target = $region29
  $region28: #{gcn_net_forward.1} parent=0 // pred_region
    _
  $region29: #{gcn_net_forward.1} parent=0 // pred_fallthru
    _
  // Predicated region
  $region30: #{gcn_net_forward.1} parent=0 // pred_check
    _
  $region31: #{gcn_net_forward.1} parent=0 // pred_check_branch
    %5673 = sbr.rel (0) target = $region33
  $region32: #{gcn_net_forward.1} parent=0 // pred_region
    _
  $region33: #{gcn_net_forward.1} parent=0 // pred_fallthru
    _

</llo_original>
